<compile_context>
chip_gen: v5e
topology: v5e:2x2
jax: 0.10.0
libtpu: 0.0.40
codegen_flags: <defaults>
</compile_context>

<pallas_src>
import functools
import math

import jax
import jax.numpy as jnp
from jax.experimental import pallas as pl
from jax.experimental.pallas import tpu as pltpu


_VMEM_LIMIT = 48 * 1024 * 1024   # > v5e 16MiB default, < v7x 64MiB physical


# ------------------------------- helpers ------------------------------------

def _pick_tile(dim, target):
    """Full-dim block for small dims, otherwise the (8/128-aligned) target."""
    return dim if dim <= target else target


def _round_up(x, m):
    return ((x + m - 1) // m) * m


def _pad2(a, rows, cols):
    r, c = a.shape
    if r == rows and c == cols:
        return a
    return jnp.pad(a, ((0, rows - r), (0, cols - c)))


# --------------------------- tiled linear kernel -----------------------------

def _linear_kernel(x_ref, w_ref, b_ref, o_ref, acc_ref):
    @pl.when(pl.program_id(2) == 0)
    def _():
        acc_ref[...] = jnp.zeros_like(acc_ref)

    acc_ref[...] += jnp.dot(x_ref[...], w_ref[...],
                            preferred_element_type=jnp.float32)

    @pl.when(pl.program_id(2) == pl.num_programs(2) - 1)
    def _():
        y = acc_ref[...] + b_ref[...].astype(jnp.float32)
        o_ref[...] = y.astype(o_ref.dtype)


def linear(x, w, b, *, out_dtype=None, tm=256, tn=512, tk=512):
    """x:(M,K) @ w:(K,N) + b:(1,N), tiled over (M, N, K) with f32 accumulation."""
    M, K = x.shape
    N = w.shape[1]
    out_dtype = out_dtype or x.dtype
    tm, tn, tk = _pick_tile(M, tm), _pick_tile(N, tn), _pick_tile(K, tk)
    Mp, Np, Kp = _round_up(M, tm), _round_up(N, tn), _round_up(K, tk)
    xp, wp, bp = _pad2(x, Mp, Kp), _pad2(w, Kp, Np), _pad2(b, 1, Np)
    grid = (Mp // tm, Np // tn, Kp // tk)
    cost = pl.CostEstimate(
        flops=2 * M * K * N, transcendentals=0,
        bytes_accessed=int(x.size * x.dtype.itemsize
                           + w.size * w.dtype.itemsize
                           + M * N * jnp.dtype(out_dtype).itemsize))
    out = pl.pallas_call(
        _linear_kernel,
        out_shape=jax.ShapeDtypeStruct((Mp, Np), out_dtype),
        grid=grid,
        in_specs=[pl.BlockSpec((tm, tk), lambda i, j, k: (i, k)),
                  pl.BlockSpec((tk, tn), lambda i, j, k: (k, j)),
                  pl.BlockSpec((1, tn), lambda i, j, k: (0, j))],
        out_specs=pl.BlockSpec((tm, tn), lambda i, j, k: (i, j)),
        scratch_shapes=[pltpu.VMEM((tm, tn), jnp.float32)],
        compiler_params=pltpu.CompilerParams(
            dimension_semantics=("parallel", "parallel", "arbitrary"),
            vmem_limit_bytes=_VMEM_LIMIT),
        cost_estimate=cost,
    )(xp, wp, bp)
    if Mp != M or Np != N:
        out = out[:M, :N]
    return out


# ----------------- linear fused with residual-add + LayerNorm ----------------
# Used for the attention output projections: out = LN(residual + (x @ w + b)).
# tn == full output width E, so the whole row is present at finalize.

def _linear_add_ln_kernel(x_ref, w_ref, b_ref, r_ref, g_ref, bn_ref, o_ref,
                          acc_ref, *, eps):
    @pl.when(pl.program_id(1) == 0)
    def _():
        acc_ref[...] = jnp.zeros_like(acc_ref)

    acc_ref[...] += jnp.dot(x_ref[...], w_ref[...],
                            preferred_element_type=jnp.float32)

    @pl.when(pl.program_id(1) == pl.num_programs(1) - 1)
    def _():
        z = (acc_ref[...] + b_ref[...].astype(jnp.float32)
             + r_ref[...].astype(jnp.float32))
        mu = jnp.mean(z, axis=-1, keepdims=True)
        var = jnp.mean(jnp.square(z - mu), axis=-1, keepdims=True)
        zn = (z - mu) * jax.lax.rsqrt(var + eps)
        o_ref[...] = (zn * g_ref[...].astype(jnp.float32)
                      + bn_ref[...].astype(jnp.float32)).astype(o_ref.dtype)


def linear_add_layernorm(x, w, b, residual, gamma, beta, *,
                         eps=1e-5, tm=256, tk=512):
    """LayerNorm(residual + x @ w + b); fused epilogue, f32 LN math."""
    M, K = x.shape
    N = w.shape[1]                       # == E, kept whole (never padded)
    tm, tk = _pick_tile(M, tm), _pick_tile(K, tk)
    Mp, Kp = _round_up(M, tm), _round_up(K, tk)
    xp, wp, rp = _pad2(x, Mp, Kp), _pad2(w, Kp, N), _pad2(residual, Mp, N)
    grid = (Mp // tm, Kp // tk)
    cost = pl.CostEstimate(
        flops=2 * M * K * N + 10 * M * N, transcendentals=0,
        bytes_accessed=int(x.size * x.dtype.itemsize
                           + w.size * w.dtype.itemsize
                           + residual.size * residual.dtype.itemsize
                           + M * N * x.dtype.itemsize))
    out = pl.pallas_call(
        functools.partial(_linear_add_ln_kernel, eps=eps),
        out_shape=jax.ShapeDtypeStruct((Mp, N), x.dtype),
        grid=grid,
        in_specs=[pl.BlockSpec((tm, tk), lambda i, k: (i, k)),
                  pl.BlockSpec((tk, N), lambda i, k: (k, 0)),
                  pl.BlockSpec((1, N), lambda i, k: (0, 0)),
                  pl.BlockSpec((tm, N), lambda i, k: (i, 0)),
                  pl.BlockSpec((1, N), lambda i, k: (0, 0)),
                  pl.BlockSpec((1, N), lambda i, k: (0, 0))],
        out_specs=pl.BlockSpec((tm, N), lambda i, k: (i, 0)),
        scratch_shapes=[pltpu.VMEM((tm, N), jnp.float32)],
        compiler_params=pltpu.CompilerParams(
            dimension_semantics=("parallel", "arbitrary"),
            vmem_limit_bytes=_VMEM_LIMIT),
        cost_estimate=cost,
    )(xp, wp, b, rp, gamma, beta)
    return out[:M] if Mp != M else out


# ---------------- fused FFN + residual + LayerNorm (weight-resident) ----------
# w1/w2 use full-extent blocks with constant index_map -> DMA'd once per core;
# the (tm, FF) intermediate never leaves VMEM.  Residual is the FFN input.

def _ffn_add_ln_kernel(x_ref, w1_ref, b1_ref, w2_ref, b2_ref, g_ref, bn_ref,
                       o_ref, *, eps):
    x = x_ref[...]
    h = jnp.dot(x, w1_ref[...], preferred_element_type=jnp.float32)
    h = jnp.maximum(h + b1_ref[...].astype(jnp.float32), 0.0)
    y = jnp.dot(h.astype(x.dtype), w2_ref[...],
                preferred_element_type=jnp.float32)
    z = y + b2_ref[...].astype(jnp.float32) + x.astype(jnp.float32)
    mu = jnp.mean(z, axis=-1, keepdims=True)
    var = jnp.mean(jnp.square(z - mu), axis=-1, keepdims=True)
    zn = (z - mu) * jax.lax.rsqrt(var + eps)
    o_ref[...] = (zn * g_ref[...].astype(jnp.float32)
                  + bn_ref[...].astype(jnp.float32)).astype(o_ref.dtype)


def ffn_add_layernorm(x, w1, b1, w2, b2, gamma, beta, *, eps=1e-5, tm=256):
    """LayerNorm(x + ReLU(x@w1+b1)@w2 + b2); FFN weights stay VMEM-resident."""
    M, E = x.shape
    FF = w1.shape[1]
    tm = _pick_tile(M, tm)
    Mp = _round_up(M, tm)
    xp = _pad2(x, Mp, E)
    grid = (Mp // tm,)
    cost = pl.CostEstimate(
        flops=4 * M * E * FF, transcendentals=0,
        bytes_accessed=int(2 * x.size * x.dtype.itemsize
                           + (w1.size + w2.size) * w1.dtype.itemsize
                           + M * E * x.dtype.itemsize))
    out = pl.pallas_call(
        functools.partial(_ffn_add_ln_kernel, eps=eps),
        out_shape=jax.ShapeDtypeStruct((Mp, E), x.dtype),
        grid=grid,
        in_specs=[pl.BlockSpec((tm, E), lambda i: (i, 0)),
                  pl.BlockSpec((E, FF), lambda i: (0, 0)),   # resident
                  pl.BlockSpec((1, FF), lambda i: (0, 0)),
                  pl.BlockSpec((FF, E), lambda i: (0, 0)),   # resident
                  pl.BlockSpec((1, E), lambda i: (0, 0)),
                  pl.BlockSpec((1, E), lambda i: (0, 0)),
                  pl.BlockSpec((1, E), lambda i: (0, 0))],
        out_specs=pl.BlockSpec((tm, E), lambda i: (i, 0)),
        compiler_params=pltpu.CompilerParams(
            dimension_semantics=("parallel",),
            vmem_limit_bytes=_VMEM_LIMIT),
        cost_estimate=cost,
    )(xp, w1, b1, w2, b2, gamma, beta)
    return out[:M] if Mp != M else out


# ----------------------------- attention kernel ------------------------------
# Reference semantics: softmax over the BATCH axis, per sequence position and
# per head.  HBM-facing layout stays (S, B, E) (lane-dense); head split/merge
# is done in-kernel via static lane slices.  MXU operands stay bf16; only the
# softmax math is f32.  Each head writes straight into its o_ref lane slice.

def _attention_kernel(q_ref, k_ref, v_ref, o_ref, *, num_heads, scale):
    q = q_ref[...]
    k = k_ref[...]
    v = v_ref[...]
    E = q.shape[-1]
    dh = E // num_heads
    for h in range(num_heads):                 # static unroll over heads
        sl = slice(h * dh, (h + 1) * dh)
        s = jnp.einsum("sqd,skd->sqk", q[:, :, sl], k[:, :, sl],
                       preferred_element_type=jnp.float32)
        s = s * scale
        s = s - jnp.max(s, axis=-1, keepdims=True)
        p = jnp.exp(s)
        p = p / jnp.sum(p, axis=-1, keepdims=True)     # exact normalization
        oh = jnp.einsum("sqk,skd->sqd", p.astype(v.dtype), v[:, :, sl],
                        preferred_element_type=jnp.float32)
        o_ref[:, :, sl] = oh.astype(o_ref.dtype)


def attention(q, k, v, num_heads):
    """q, k, v: (S, B, E); attention over the B axis per (position, head)."""
    S, B, E = q.shape
    scale = 1.0 / math.sqrt(E // num_heads)
    ts = min(S, 64)                      # large S tile; pad S, slice after
    Sp = _round_up(S, ts)
    if Sp != S:
        pad = ((0, Sp - S), (0, 0), (0, 0))
        q, k, v = jnp.pad(q, pad), jnp.pad(k, pad), jnp.pad(v, pad)
    spec = pl.BlockSpec((ts, B, E), lambda i: (i, 0, 0))
    out = pl.pallas_call(
        functools.partial(_attention_kernel, num_heads=num_heads, scale=scale),
        out_shape=jax.ShapeDtypeStruct((Sp, B, E), q.dtype),
        grid=(Sp // ts,),
        in_specs=[spec, spec, spec],
        out_specs=spec,
        compiler_params=pltpu.CompilerParams(
            dimension_semantics=("parallel",),
            vmem_limit_bytes=_VMEM_LIMIT),
    )(q, k, v)
    return out[:S] if Sp != S else out


# ------------------------------- model glue ----------------------------------

def decoder_layer(x_flat, mem_k, mem_v, p, num_heads, S, B):
    E = x_flat.shape[-1]

    # --- self-attention; residual + LN1 fused into the output projection ---
    sp = p["self_attn"]
    qkv = linear(x_flat, sp["w_qkv"], sp["b_qkv"])        # (S*B, 3E) lane-dense
    q3 = qkv[:, :E].reshape(S, B, E)
    k3 = qkv[:, E:2 * E].reshape(S, B, E)
    v3 = qkv[:, 2 * E:].reshape(S, B, E)
    attn = attention(q3, k3, v3, num_heads)               # (S, B, E)
    x_flat = linear_add_layernorm(attn.reshape(S * B, E), sp["wo"], sp["bo"],
                                  x_flat, p["ln1_g"], p["ln1_b"])

    # --- cross-attention; residual + LN2 fused into the output projection ---
    cp = p["cross_attn"]
    qc = linear(x_flat, cp["wq"], cp["bq"]).reshape(S, B, E)
    cattn = attention(qc, mem_k, mem_v, num_heads)
    x_flat = linear_add_layernorm(cattn.reshape(S * B, E), cp["wo"], cp["bo"],
                                  x_flat, p["ln2_g"], p["ln2_b"])

    # --- FFN; residual + LN3 fused, FFN weights VMEM-resident ---
    x_flat = ffn_add_layernorm(x_flat, p["w_ff1"], p["b_ff1"],
                               p["w_ff2"], p["b_ff2"],
                               p["ln3_g"], p["ln3_b"])
    return x_flat, (k3, v3)


def transformer_decoder_only(tokens, params, num_heads, num_layers):
    """tokens: (B, S) int32 -> (logits (B, S, V), [(K, V)] * num_layers)."""
    B, S = tokens.shape
    E = params["embedding"].shape[1]

    # embedding gather + positional encoding (left to XLA), seq-major layout
    emb = jnp.take(params["embedding"], tokens.T, axis=0)    # (S, B, E) f32
    x = emb + params["pos"][0, :S][:, None, :]
    # dropout -> identity (inference)
    x_flat = x.astype(jnp.bfloat16).reshape(S * B, E)

    lp = params["layer"]
    # Cross-attn K/V of the fixed memory: weights are shared across layers and
    # memory is the same embedded input, so compute once and reuse.
    pc = lp["cross_attn"]
    mem_k = linear(x_flat, pc["wk"], pc["bk"]).reshape(S, B, E)
    mem_v = linear(x_flat, pc["wv"], pc["bv"]).reshape(S, B, E)

    new_key_values = []
    for _ in range(num_layers):          # all layers share the same params
        x_flat, kv = decoder_layer(x_flat, mem_k, mem_v, lp, num_heads, S, B)
        new_key_values.append(kv)

    x = x_flat.reshape(S, B, E).transpose(1, 0, 2).reshape(B * S, E)
    # large tm so each vocab-column weight tile amortizes over many rows
    logits = linear(x, params["w_out"], params["b_out"],
                    out_dtype=jnp.float32, tm=1024)
    return logits.reshape(B, S, -1), new_key_values


# --------------------------- parameter creation -------------------------------

def init_params(key, vocab_size, embed_dim, ff_dim, max_len=512):
    keys = iter(jax.random.split(key, 40))

    def lin(din, dout):
        w = (jax.random.normal(next(keys), (din, dout), jnp.float32)
             * din ** -0.5).astype(jnp.bfloat16)              # bf16 weights
        b = jax.random.normal(next(keys), (1, dout), jnp.float32) * 0.02
        return w, b

    def attn_params():
        wq, bq = lin(embed_dim, embed_dim)
        wk, bk = lin(embed_dim, embed_dim)
        wv, bv = lin(embed_dim, embed_dim)
        wo, bo = lin(embed_dim, embed_dim)
        return dict(
            w_qkv=jnp.concatenate([wq, wk, wv], axis=1),   # (E, 3E) bf16
            b_qkv=jnp.concatenate([bq, bk, bv], axis=1),   # (1, 3E) f32
            wq=wq, bq=bq, wk=wk, bk=bk, wv=wv, bv=bv, wo=wo, bo=bo)

    w_ff1, b_ff1 = lin(embed_dim, ff_dim)
    w_ff2, b_ff2 = lin(ff_dim, embed_dim)
    layer = dict(
        self_attn=attn_params(), cross_attn=attn_params(),
        w_ff1=w_ff1, b_ff1=b_ff1, w_ff2=w_ff2, b_ff2=b_ff2,
        ln1_g=jnp.ones((1, embed_dim), jnp.float32),
        ln1_b=jnp.zeros((1, embed_dim), jnp.float32),
        ln2_g=jnp.ones((1, embed_dim), jnp.float32),
        ln2_b=jnp.zeros((1, embed_dim), jnp.float32),
        ln3_g=jnp.ones((1, embed_dim), jnp.float32),
        ln3_b=jnp.zeros((1, embed_dim), jnp.float32))

    embedding = jax.random.normal(next(keys), (vocab_size, embed_dim),
                                  jnp.float32) * 0.02
    pos = jax.random.normal(next(keys), (1, max_len, embed_dim),
                            jnp.float32) * 0.02
    w_out, b_out = lin(embed_dim, vocab_size)

    return dict(embedding=embedding, pos=pos, layer=layer,
                w_out=w_out, b_out=b_out)


# ----------------------------------- main -------------------------------------

if __name__ == "__main__":
    # Small shapes consistent with the module (reference hardcodes E=512,
    # ffn=2048, vocab=10000, L=6 — scaled down here, ffn kept at 4*E).
    B, S = 8, 8
    VOCAB, E, H, L = 64, 32, 4, 2
    FF = 4 * E

    key = jax.random.PRNGKey(0)
    k_params, k_tokens = jax.random.split(key)
    params = init_params(k_params, VOCAB, E, FF, max_len=512)
    tokens = jax.random.randint(k_tokens, (B, S), 0, VOCAB, dtype=jnp.int32)

    fwd = jax.jit(lambda t: transformer_decoder_only(t, params, H, L))
    logits, new_kv = fwd(tokens)
    jax.block_until_ready((logits, new_kv))

    assert logits.shape == (B, S, VOCAB), logits.shape
    assert len(new_kv) == L
    assert new_kv[0][0].shape == (S, B, E) and new_kv[0][1].shape == (S, B, E)
    assert bool(jnp.all(jnp.isfinite(logits)))

    print("KERNEL_OK")
</pallas_src>

<mosaic_0001>
module attributes {stable_mosaic.version = 11 : i64} {
  func.func @_linear_kernel(%arg0: i32, %arg1: i32, %arg2: i32, %arg3: memref<64x32xbf16, #tpu.memory_space<vmem>>, %arg4: memref<32x32xbf16, #tpu.memory_space<vmem>>, %arg5: memref<1x32xf32, #tpu.memory_space<vmem>>, %arg6: memref<64x32xbf16, #tpu.memory_space<vmem>>, %arg7: memref<64x32xf32, #tpu.memory_space<vmem>>) attributes {dimension_semantics = [#tpu.dimension_semantics<parallel>, #tpu.dimension_semantics<parallel>, #tpu.dimension_semantics<arbitrary>], iteration_bounds = array<i64: 1, 1, 1>, scalar_prefetch = 0 : i64, scratch_operands = 1 : i64, tpu.core_type = #tpu.core_type<tc>, window_params = [{transform_indices = @transform_0, window_bounds = array<i64: 64, 32>}, {transform_indices = @transform_1, window_bounds = array<i64: 32, 32>}, {transform_indices = @transform_2, window_bounds = array<i64: 1, 32>}, {transform_indices = @transform_3, window_bounds = array<i64: 64, 32>}]} {
    %c0_i32 = arith.constant 0 : i32
    %0 = arith.cmpi eq, %arg2, %c0_i32 : i32
    %1 = arith.extui %0 : i1 to i32
    %c0_i32_0 = arith.constant 0 : i32
    %2 = arith.cmpi ne, %1, %c0_i32_0 : i32
    scf.if %2 {
      %cst_10 = arith.constant 0.000000e+00 : f32
      %12 = vector.broadcast %cst_10 : f32 to vector<64x32xf32>
      %c0_11 = arith.constant 0 : index
      %c0_12 = arith.constant 0 : index
      %13 = vector.load %arg7[%c0_11, %c0_12] : memref<64x32xf32, #tpu.memory_space<vmem>>, vector<64x32xf32>
      tpu.vector_store %arg7[%c0_11, %c0_12], %12 {strides = array<i32>} : memref<64x32xf32, #tpu.memory_space<vmem>>, vector<64x32xf32>,
    } else {
    }
    %c0 = arith.constant 0 : index
    %c0_1 = arith.constant 0 : index
    %3 = vector.load %arg7[%c0, %c0_1] : memref<64x32xf32, #tpu.memory_space<vmem>>, vector<64x32xf32>
    %c0_2 = arith.constant 0 : index
    %c0_3 = arith.constant 0 : index
    %4 = vector.load %arg3[%c0_2, %c0_3] : memref<64x32xbf16, #tpu.memory_space<vmem>>, vector<64x32xbf16>
    %c0_4 = arith.constant 0 : index
    %c0_5 = arith.constant 0 : index
    %5 = vector.load %arg4[%c0_4, %c0_5] : memref<32x32xbf16, #tpu.memory_space<vmem>>, vector<32x32xbf16>
    %cst = arith.constant dense<0.000000e+00> : vector<64x32xf32>
    %6 = tpu.matmul %4, %5, %cst {dimension_numbers = #tpu.dot_dimension_numbers<[1], [0], [0], [1], [0, 0, 1, 1], [], []>} : vector<64x32xbf16>, vector<32x32xbf16>, vector<64x32xf32> -> vector<64x32xf32>
    %7 = arith.addf %3, %6 : vector<64x32xf32>
    %c0_6 = arith.constant 0 : index
    %c0_7 = arith.constant 0 : index
    %8 = vector.load %arg7[%c0_6, %c0_7] : memref<64x32xf32, #tpu.memory_space<vmem>>, vector<64x32xf32>
    tpu.vector_store %arg7[%c0_6, %c0_7], %7 {strides = array<i32>} : memref<64x32xf32, #tpu.memory_space<vmem>>, vector<64x32xf32>,
    %c0_i32_8 = arith.constant 0 : i32
    %9 = arith.cmpi eq, %arg2, %c0_i32_8 : i32
    %10 = arith.extui %9 : i1 to i32
    %c0_i32_9 = arith.constant 0 : i32
    %11 = arith.cmpi ne, %10, %c0_i32_9 : i32
    scf.if %11 {
      %c0_10 = arith.constant 0 : index
      %c0_11 = arith.constant 0 : index
      %12 = vector.load %arg7[%c0_10, %c0_11] : memref<64x32xf32, #tpu.memory_space<vmem>>, vector<64x32xf32>
      %c0_12 = arith.constant 0 : index
      %c0_13 = arith.constant 0 : index
      %13 = vector.load %arg5[%c0_12, %c0_13] : memref<1x32xf32, #tpu.memory_space<vmem>>, vector<1x32xf32>
      %14 = vector.broadcast %13 : vector<1x32xf32> to vector<64x32xf32>
      %15 = arith.addf %12, %14 : vector<64x32xf32>
      %16 = arith.truncf %15 : vector<64x32xf32> to vector<64x32xbf16>
      %c0_14 = arith.constant 0 : index
      %c0_15 = arith.constant 0 : index
      %17 = vector.load %arg6[%c0_14, %c0_15] : memref<64x32xbf16, #tpu.memory_space<vmem>>, vector<64x32xbf16>
      tpu.vector_store %arg6[%c0_14, %c0_15], %16 {strides = array<i32>} : memref<64x32xbf16, #tpu.memory_space<vmem>>, vector<64x32xbf16>,
    } else {
    }
    return
  }
  func.func @transform_0(%arg0: i32, %arg1: i32, %arg2: i32) -> (i32, i32) {
    %c0_i32 = arith.constant 0 : i32
    return %arg0, %arg2 : i32, i32
  }
  func.func @transform_1(%arg0: i32, %arg1: i32, %arg2: i32) -> (i32, i32) {
    %c0_i32 = arith.constant 0 : i32
    return %arg2, %arg1 : i32, i32
  }
  func.func @transform_2(%arg0: i32, %arg1: i32, %arg2: i32) -> (i32, i32) {
    %c0_i32 = arith.constant 0 : i32
    %c0_i32_0 = arith.constant 0 : i32
    return %c0_i32, %arg1 : i32, i32
  }
  func.func @transform_3(%arg0: i32, %arg1: i32, %arg2: i32) -> (i32, i32) {
    %c0_i32 = arith.constant 0 : i32
    return %arg0, %arg1 : i32, i32
  }
}

module attributes {stable_mosaic.version = 11 : i64} {
  func.func @_attention_kernel(%arg0: i32, %arg1: memref<8x8x32xbf16, #tpu.memory_space<vmem>>, %arg2: memref<8x8x32xbf16, #tpu.memory_space<vmem>>, %arg3: memref<8x8x32xbf16, #tpu.memory_space<vmem>>, %arg4: memref<8x8x32xbf16, #tpu.memory_space<vmem>>) attributes {dimension_semantics = [#tpu.dimension_semantics<parallel>], iteration_bounds = array<i64: 1>, scalar_prefetch = 0 : i64, scratch_operands = 0 : i64, tpu.core_type = #tpu.core_type<tc>, window_params = [{transform_indices = @transform_0, window_bounds = array<i64: 8, 8, 32>}, {transform_indices = @transform_1, window_bounds = array<i64: 8, 8, 32>}, {transform_indices = @transform_2, window_bounds = array<i64: 8, 8, 32>}, {transform_indices = @transform_3, window_bounds = array<i64: 8, 8, 32>}]} {
    %c0 = arith.constant 0 : index
    %c0_0 = arith.constant 0 : index
    %c0_1 = arith.constant 0 : index
    %0 = vector.load %arg1[%c0, %c0_0, %c0_1] : memref<8x8x32xbf16, #tpu.memory_space<vmem>>, vector<8x8x32xbf16>
    %c0_2 = arith.constant 0 : index
    %c0_3 = arith.constant 0 : index
    %c0_4 = arith.constant 0 : index
    %1 = vector.load %arg2[%c0_2, %c0_3, %c0_4] : memref<8x8x32xbf16, #tpu.memory_space<vmem>>, vector<8x8x32xbf16>
    %c0_5 = arith.constant 0 : index
    %c0_6 = arith.constant 0 : index
    %c0_7 = arith.constant 0 : index
    %2 = vector.load %arg3[%c0_5, %c0_6, %c0_7] : memref<8x8x32xbf16, #tpu.memory_space<vmem>>, vector<8x8x32xbf16>
    %3 = vector.extract_strided_slice %0 {offsets = [0, 0, 0], sizes = [8, 8, 8], strides = [1, 1, 1]} : vector<8x8x32xbf16> to vector<8x8x8xbf16>
    %4 = vector.extract_strided_slice %1 {offsets = [0, 0, 0], sizes = [8, 8, 8], strides = [1, 1, 1]} : vector<8x8x32xbf16> to vector<8x8x8xbf16>
    "tpu.trace_start"() <{level = 10 : i32, message = "sqd,skd->sqk"}> : () -> ()
    %cst = arith.constant dense<0.000000e+00> : vector<8x8x8xf32>
    %5 = tpu.matmul %3, %4, %cst {dimension_numbers = #tpu.dot_dimension_numbers<[2], [2], [1], [1], [0, 0, 0, 1, 1, 1], [0], [0]>} : vector<8x8x8xbf16>, vector<8x8x8xbf16>, vector<8x8x8xf32> -> vector<8x8x8xf32>
    "tpu.trace_stop"() : () -> ()
    %cst_8 = arith.constant 0.353553385 : f32
    %6 = vector.broadcast %cst_8 : f32 to vector<8x8x8xf32>
    %7 = arith.mulf %5, %6 : vector<8x8x8xf32>
    %cst_9 = arith.constant dense<0xFF800000> : vector<8x8xf32>
    %8 = vector.multi_reduction <maximumf>, %7, %cst_9 [2] : vector<8x8x8xf32> to vector<8x8xf32>
    %9 = vector.shape_cast %8 : vector<8x8xf32> to vector<8x8x1xf32>
    %10 = vector.broadcast %9 : vector<8x8x1xf32> to vector<8x8x8xf32>
    %11 = arith.subf %7, %10 : vector<8x8x8xf32>
    %12 = math.exp %11 : vector<8x8x8xf32>
    %cst_10 = arith.constant dense<0.000000e+00> : vector<8x8xf32>
    %13 = vector.multi_reduction <add>, %12, %cst_10 [2] : vector<8x8x8xf32> to vector<8x8xf32>
    %14 = vector.shape_cast %13 : vector<8x8xf32> to vector<8x8x1xf32>
    %15 = vector.broadcast %14 : vector<8x8x1xf32> to vector<8x8x8xf32>
    %16 = arith.divf %12, %15 : vector<8x8x8xf32>
    %17 = arith.truncf %16 : vector<8x8x8xf32> to vector<8x8x8xbf16>
    %18 = vector.extract_strided_slice %2 {offsets = [0, 0, 0], sizes = [8, 8, 8], strides = [1, 1, 1]} : vector<8x8x32xbf16> to vector<8x8x8xbf16>
    "tpu.trace_start"() <{level = 10 : i32, message = "sqk,skd->sqd"}> : () -> ()
    %cst_11 = arith.constant dense<0.000000e+00> : vector<8x8x8xf32>
    %19 = tpu.matmul %17, %18, %cst_11 {dimension_numbers = #tpu.dot_dimension_numbers<[2], [1], [1], [2], [0, 0, 0, 1, 1, 2], [0], [0]>} : vector<8x8x8xbf16>, vector<8x8x8xbf16>, vector<8x8x8xf32> -> vector<8x8x8xf32>
    "tpu.trace_stop"() : () -> ()
    %20 = arith.truncf %19 : vector<8x8x8xf32> to vector<8x8x8xbf16>
    %c0_12 = arith.constant 0 : index
    %c0_13 = arith.constant 0 : index
    %c0_14 = arith.constant 0 : index
    %21 = vector.load %arg4[%c0_12, %c0_13, %c0_14] : memref<8x8x32xbf16, #tpu.memory_space<vmem>>, vector<8x8x8xbf16>
    tpu.vector_store %arg4[%c0_12, %c0_13, %c0_14], %20 {strides = array<i32>} : memref<8x8x32xbf16, #tpu.memory_space<vmem>>, vector<8x8x8xbf16>,
    %22 = vector.extract_strided_slice %0 {offsets = [0, 0, 8], sizes = [8, 8, 8], strides = [1, 1, 1]} : vector<8x8x32xbf16> to vector<8x8x8xbf16>
    %23 = vector.extract_strided_slice %1 {offsets = [0, 0, 8], sizes = [8, 8, 8], strides = [1, 1, 1]} : vector<8x8x32xbf16> to vector<8x8x8xbf16>
    "tpu.trace_start"() <{level = 10 : i32, message = "sqd,skd->sqk"}> : () -> ()
    %cst_15 = arith.constant dense<0.000000e+00> : vector<8x8x8xf32>
    %24 = tpu.matmul %22, %23, %cst_15 {dimension_numbers = #tpu.dot_dimension_numbers<[2], [2], [1], [1], [0, 0, 0, 1, 1, 1], [0], [0]>} : vector<8x8x8xbf16>, vector<8x8x8xbf16>, vector<8x8x8xf32> -> vector<8x8x8xf32>
    "tpu.trace_stop"() : () -> ()
    %cst_16 = arith.constant 0.353553385 : f32
    %25 = vector.broadcast %cst_16 : f32 to vector<8x8x8xf32>
    %26 = arith.mulf %24, %25 : vector<8x8x8xf32>
    %cst_17 = arith.constant dense<0xFF800000> : vector<8x8xf32>
    %27 = vector.multi_reduction <maximumf>, %26, %cst_17 [2] : vector<8x8x8xf32> to vector<8x8xf32>
    %28 = vector.shape_cast %27 : vector<8x8xf32> to vector<8x8x1xf32>
    %29 = vector.broadcast %28 : vector<8x8x1xf32> to vector<8x8x8xf32>
    %30 = arith.subf %26, %29 : vector<8x8x8xf32>
    %31 = math.exp %30 : vector<8x8x8xf32>
    %cst_18 = arith.constant dense<0.000000e+00> : vector<8x8xf32>
    %32 = vector.multi_reduction <add>, %31, %cst_18 [2] : vector<8x8x8xf32> to vector<8x8xf32>
    %33 = vector.shape_cast %32 : vector<8x8xf32> to vector<8x8x1xf32>
    %34 = vector.broadcast %33 : vector<8x8x1xf32> to vector<8x8x8xf32>
    %35 = arith.divf %31, %34 : vector<8x8x8xf32>
    %36 = arith.truncf %35 : vector<8x8x8xf32> to vector<8x8x8xbf16>
    %37 = vector.extract_strided_slice %2 {offsets = [0, 0, 8], sizes = [8, 8, 8], strides = [1, 1, 1]} : vector<8x8x32xbf16> to vector<8x8x8xbf16>
    "tpu.trace_start"() <{level = 10 : i32, message = "sqk,skd->sqd"}> : () -> ()
    %cst_19 = arith.constant dense<0.000000e+00> : vector<8x8x8xf32>
    %38 = tpu.matmul %36, %37, %cst_19 {dimension_numbers = #tpu.dot_dimension_numbers<[2], [1], [1], [2], [0, 0, 0, 1, 1, 2], [0], [0]>} : vector<8x8x8xbf16>, vector<8x8x8xbf16>, vector<8x8x8xf32> -> vector<8x8x8xf32>
    "tpu.trace_stop"() : () -> ()
    %39 = arith.truncf %38 : vector<8x8x8xf32> to vector<8x8x8xbf16>
    %c0_20 = arith.constant 0 : index
    %c0_21 = arith.constant 0 : index
    %c8 = arith.constant 8 : index
    %40 = vector.load %arg4[%c0_20, %c0_21, %c8] : memref<8x8x32xbf16, #tpu.memory_space<vmem>>, vector<8x8x8xbf16>
    tpu.vector_store %arg4[%c0_20, %c0_21, %c8], %39 {strides = array<i32>} : memref<8x8x32xbf16, #tpu.memory_space<vmem>>, vector<8x8x8xbf16>,
    %41 = vector.extract_strided_slice %0 {offsets = [0, 0, 16], sizes = [8, 8, 8], strides = [1, 1, 1]} : vector<8x8x32xbf16> to vector<8x8x8xbf16>
    %42 = vector.extract_strided_slice %1 {offsets = [0, 0, 16], sizes = [8, 8, 8], strides = [1, 1, 1]} : vector<8x8x32xbf16> to vector<8x8x8xbf16>
    "tpu.trace_start"() <{level = 10 : i32, message = "sqd,skd->sqk"}> : () -> ()
    %cst_22 = arith.constant dense<0.000000e+00> : vector<8x8x8xf32>
    %43 = tpu.matmul %41, %42, %cst_22 {dimension_numbers = #tpu.dot_dimension_numbers<[2], [2], [1], [1], [0, 0, 0, 1, 1, 1], [0], [0]>} : vector<8x8x8xbf16>, vector<8x8x8xbf16>, vector<8x8x8xf32> -> vector<8x8x8xf32>
    "tpu.trace_stop"() : () -> ()
    %cst_23 = arith.constant 0.353553385 : f32
    %44 = vector.broadcast %cst_23 : f32 to vector<8x8x8xf32>
    %45 = arith.mulf %43, %44 : vector<8x8x8xf32>
    %cst_24 = arith.constant dense<0xFF800000> : vector<8x8xf32>
    %46 = vector.multi_reduction <maximumf>, %45, %cst_24 [2] : vector<8x8x8xf32> to vector<8x8xf32>
    %47 = vector.shape_cast %46 : vector<8x8xf32> to vector<8x8x1xf32>
    %48 = vector.broadcast %47 : vector<8x8x1xf32> to vector<8x8x8xf32>
    %49 = arith.subf %45, %48 : vector<8x8x8xf32>
    %50 = math.exp %49 : vector<8x8x8xf32>
    %cst_25 = arith.constant dense<0.000000e+00> : vector<8x8xf32>
    %51 = vector.multi_reduction <add>, %50, %cst_25 [2] : vector<8x8x8xf32> to vector<8x8xf32>
    %52 = vector.shape_cast %51 : vector<8x8xf32> to vector<8x8x1xf32>
    %53 = vector.broadcast %52 : vector<8x8x1xf32> to vector<8x8x8xf32>
    %54 = arith.divf %50, %53 : vector<8x8x8xf32>
    %55 = arith.truncf %54 : vector<8x8x8xf32> to vector<8x8x8xbf16>
    %56 = vector.extract_strided_slice %2 {offsets = [0, 0, 16], sizes = [8, 8, 8], strides = [1, 1, 1]} : vector<8x8x32xbf16> to vector<8x8x8xbf16>
    "tpu.trace_start"() <{level = 10 : i32, message = "sqk,skd->sqd"}> : () -> ()
    %cst_26 = arith.constant dense<0.000000e+00> : vector<8x8x8xf32>
    %57 = tpu.matmul %55, %56, %cst_26 {dimension_numbers = #tpu.dot_dimension_numbers<[2], [1], [1], [2], [0, 0, 0, 1, 1, 2], [0], [0]>} : vector<8x8x8xbf16>, vector<8x8x8xbf16>, vector<8x8x8xf32> -> vector<8x8x8xf32>
    "tpu.trace_stop"() : () -> ()
    %58 = arith.truncf %57 : vector<8x8x8xf32> to vector<8x8x8xbf16>
    %c0_27 = arith.constant 0 : index
    %c0_28 = arith.constant 0 : index
    %c16 = arith.constant 16 : index
    %59 = vector.load %arg4[%c0_27, %c0_28, %c16] : memref<8x8x32xbf16, #tpu.memory_space<vmem>>, vector<8x8x8xbf16>
    tpu.vector_store %arg4[%c0_27, %c0_28, %c16], %58 {strides = array<i32>} : memref<8x8x32xbf16, #tpu.memory_space<vmem>>, vector<8x8x8xbf16>,
    %60 = vector.extract_strided_slice %0 {offsets = [0, 0, 24], sizes = [8, 8, 8], strides = [1, 1, 1]} : vector<8x8x32xbf16> to vector<8x8x8xbf16>
    %61 = vector.extract_strided_slice %1 {offsets = [0, 0, 24], sizes = [8, 8, 8], strides = [1, 1, 1]} : vector<8x8x32xbf16> to vector<8x8x8xbf16>
    "tpu.trace_start"() <{level = 10 : i32, message = "sqd,skd->sqk"}> : () -> ()
    %cst_29 = arith.constant dense<0.000000e+00> : vector<8x8x8xf32>
    %62 = tpu.matmul %60, %61, %cst_29 {dimension_numbers = #tpu.dot_dimension_numbers<[2], [2], [1], [1], [0, 0, 0, 1, 1, 1], [0], [0]>} : vector<8x8x8xbf16>, vector<8x8x8xbf16>, vector<8x8x8xf32> -> vector<8x8x8xf32>
    "tpu.trace_stop"() : () -> ()
    %cst_30 = arith.constant 0.353553385 : f32
    %63 = vector.broadcast %cst_30 : f32 to vector<8x8x8xf32>
    %64 = arith.mulf %62, %63 : vector<8x8x8xf32>
    %cst_31 = arith.constant dense<0xFF800000> : vector<8x8xf32>
    %65 = vector.multi_reduction <maximumf>, %64, %cst_31 [2] : vector<8x8x8xf32> to vector<8x8xf32>
    %66 = vector.shape_cast %65 : vector<8x8xf32> to vector<8x8x1xf32>
    %67 = vector.broadcast %66 : vector<8x8x1xf32> to vector<8x8x8xf32>
    %68 = arith.subf %64, %67 : vector<8x8x8xf32>
    %69 = math.exp %68 : vector<8x8x8xf32>
    %cst_32 = arith.constant dense<0.000000e+00> : vector<8x8xf32>
    %70 = vector.multi_reduction <add>, %69, %cst_32 [2] : vector<8x8x8xf32> to vector<8x8xf32>
    %71 = vector.shape_cast %70 : vector<8x8xf32> to vector<8x8x1xf32>
    %72 = vector.broadcast %71 : vector<8x8x1xf32> to vector<8x8x8xf32>
    %73 = arith.divf %69, %72 : vector<8x8x8xf32>
    %74 = arith.truncf %73 : vector<8x8x8xf32> to vector<8x8x8xbf16>
    %75 = vector.extract_strided_slice %2 {offsets = [0, 0, 24], sizes = [8, 8, 8], strides = [1, 1, 1]} : vector<8x8x32xbf16> to vector<8x8x8xbf16>
    "tpu.trace_start"() <{level = 10 : i32, message = "sqk,skd->sqd"}> : () -> ()
    %cst_33 = arith.constant dense<0.000000e+00> : vector<8x8x8xf32>
    %76 = tpu.matmul %74, %75, %cst_33 {dimension_numbers = #tpu.dot_dimension_numbers<[2], [1], [1], [2], [0, 0, 0, 1, 1, 2], [0], [0]>} : vector<8x8x8xbf16>, vector<8x8x8xbf16>, vector<8x8x8xf32> -> vector<8x8x8xf32>
    "tpu.trace_stop"() : () -> ()
    %77 = arith.truncf %76 : vector<8x8x8xf32> to vector<8x8x8xbf16>
    %c0_34 = arith.constant 0 : index
    %c0_35 = arith.constant 0 : index
    %c24 = arith.constant 24 : index
    %78 = vector.load %arg4[%c0_34, %c0_35, %c24] : memref<8x8x32xbf16, #tpu.memory_space<vmem>>, vector<8x8x8xbf16>
    tpu.vector_store %arg4[%c0_34, %c0_35, %c24], %77 {strides = array<i32>} : memref<8x8x32xbf16, #tpu.memory_space<vmem>>, vector<8x8x8xbf16>,
    return
  }
  func.func @transform_0(%arg0: i32) -> (i32, i32, i32) {
    %c0_i32 = arith.constant 0 : i32
    %c0_i32_0 = arith.constant 0 : i32
    %c0_i32_1 = arith.constant 0 : i32
    return %arg0, %c0_i32, %c0_i32_0 : i32, i32, i32
  }
  func.func @transform_1(%arg0: i32) -> (i32, i32, i32) {
    %c0_i32 = arith.constant 0 : i32
    %c0_i32_0 = arith.constant 0 : i32
    %c0_i32_1 = arith.constant 0 : i32
    return %arg0, %c0_i32, %c0_i32_0 : i32, i32, i32
  }
  func.func @transform_2(%arg0: i32) -> (i32, i32, i32) {
    %c0_i32 = arith.constant 0 : i32
    %c0_i32_0 = arith.constant 0 : i32
    %c0_i32_1 = arith.constant 0 : i32
    return %arg0, %c0_i32, %c0_i32_0 : i32, i32, i32
  }
  func.func @transform_3(%arg0: i32) -> (i32, i32, i32) {
    %c0_i32 = arith.constant 0 : i32
    %c0_i32_0 = arith.constant 0 : i32
    %c0_i32_1 = arith.constant 0 : i32
    return %arg0, %c0_i32, %c0_i32_0 : i32, i32, i32
  }
}

module attributes {stable_mosaic.version = 11 : i64} {
  func.func @_linear_kernel(%arg0: i32, %arg1: i32, %arg2: i32, %arg3: memref<64x32xbf16, #tpu.memory_space<vmem>>, %arg4: memref<32x96xbf16, #tpu.memory_space<vmem>>, %arg5: memref<1x96xf32, #tpu.memory_space<vmem>>, %arg6: memref<64x96xbf16, #tpu.memory_space<vmem>>, %arg7: memref<64x96xf32, #tpu.memory_space<vmem>>) attributes {dimension_semantics = [#tpu.dimension_semantics<parallel>, #tpu.dimension_semantics<parallel>, #tpu.dimension_semantics<arbitrary>], iteration_bounds = array<i64: 1, 1, 1>, scalar_prefetch = 0 : i64, scratch_operands = 1 : i64, tpu.core_type = #tpu.core_type<tc>, window_params = [{transform_indices = @transform_0, window_bounds = array<i64: 64, 32>}, {transform_indices = @transform_1, window_bounds = array<i64: 32, 96>}, {transform_indices = @transform_2, window_bounds = array<i64: 1, 96>}, {transform_indices = @transform_3, window_bounds = array<i64: 64, 96>}]} {
    %c0_i32 = arith.constant 0 : i32
    %0 = arith.cmpi eq, %arg2, %c0_i32 : i32
    %1 = arith.extui %0 : i1 to i32
    %c0_i32_0 = arith.constant 0 : i32
    %2 = arith.cmpi ne, %1, %c0_i32_0 : i32
    scf.if %2 {
      %cst_10 = arith.constant 0.000000e+00 : f32
      %12 = vector.broadcast %cst_10 : f32 to vector<64x96xf32>
      %c0_11 = arith.constant 0 : index
      %c0_12 = arith.constant 0 : index
      %13 = vector.load %arg7[%c0_11, %c0_12] : memref<64x96xf32, #tpu.memory_space<vmem>>, vector<64x96xf32>
      tpu.vector_store %arg7[%c0_11, %c0_12], %12 {strides = array<i32>} : memref<64x96xf32, #tpu.memory_space<vmem>>, vector<64x96xf32>,
    } else {
    }
    %c0 = arith.constant 0 : index
    %c0_1 = arith.constant 0 : index
    %3 = vector.load %arg7[%c0, %c0_1] : memref<64x96xf32, #tpu.memory_space<vmem>>, vector<64x96xf32>
    %c0_2 = arith.constant 0 : index
    %c0_3 = arith.constant 0 : index
    %4 = vector.load %arg3[%c0_2, %c0_3] : memref<64x32xbf16, #tpu.memory_space<vmem>>, vector<64x32xbf16>
    %c0_4 = arith.constant 0 : index
    %c0_5 = arith.constant 0 : index
    %5 = vector.load %arg4[%c0_4, %c0_5] : memref<32x96xbf16, #tpu.memory_space<vmem>>, vector<32x96xbf16>
    %cst = arith.constant dense<0.000000e+00> : vector<64x96xf32>
    %6 = tpu.matmul %4, %5, %cst {dimension_numbers = #tpu.dot_dimension_numbers<[1], [0], [0], [1], [0, 0, 1, 1], [], []>} : vector<64x32xbf16>, vector<32x96xbf16>, vector<64x96xf32> -> vector<64x96xf32>
    %7 = arith.addf %3, %6 : vector<64x96xf32>
    %c0_6 = arith.constant 0 : index
    %c0_7 = arith.constant 0 : index
    %8 = vector.load %arg7[%c0_6, %c0_7] : memref<64x96xf32, #tpu.memory_space<vmem>>, vector<64x96xf32>
    tpu.vector_store %arg7[%c0_6, %c0_7], %7 {strides = array<i32>} : memref<64x96xf32, #tpu.memory_space<vmem>>, vector<64x96xf32>,
    %c0_i32_8 = arith.constant 0 : i32
    %9 = arith.cmpi eq, %arg2, %c0_i32_8 : i32
    %10 = arith.extui %9 : i1 to i32
    %c0_i32_9 = arith.constant 0 : i32
    %11 = arith.cmpi ne, %10, %c0_i32_9 : i32
    scf.if %11 {
      %c0_10 = arith.constant 0 : index
      %c0_11 = arith.constant 0 : index
      %12 = vector.load %arg7[%c0_10, %c0_11] : memref<64x96xf32, #tpu.memory_space<vmem>>, vector<64x96xf32>
      %c0_12 = arith.constant 0 : index
      %c0_13 = arith.constant 0 : index
      %13 = vector.load %arg5[%c0_12, %c0_13] : memref<1x96xf32, #tpu.memory_space<vmem>>, vector<1x96xf32>
      %14 = vector.broadcast %13 : vector<1x96xf32> to vector<64x96xf32>
      %15 = arith.addf %12, %14 : vector<64x96xf32>
      %16 = arith.truncf %15 : vector<64x96xf32> to vector<64x96xbf16>
      %c0_14 = arith.constant 0 : index
      %c0_15 = arith.constant 0 : index
      %17 = vector.load %arg6[%c0_14, %c0_15] : memref<64x96xbf16, #tpu.memory_space<vmem>>, vector<64x96xbf16>
      tpu.vector_store %arg6[%c0_14, %c0_15], %16 {strides = array<i32>} : memref<64x96xbf16, #tpu.memory_space<vmem>>, vector<64x96xbf16>,
    } else {
    }
    return
  }
  func.func @transform_0(%arg0: i32, %arg1: i32, %arg2: i32) -> (i32, i32) {
    %c0_i32 = arith.constant 0 : i32
    return %arg0, %arg2 : i32, i32
  }
  func.func @transform_1(%arg0: i32, %arg1: i32, %arg2: i32) -> (i32, i32) {
    %c0_i32 = arith.constant 0 : i32
    return %arg2, %arg1 : i32, i32
  }
  func.func @transform_2(%arg0: i32, %arg1: i32, %arg2: i32) -> (i32, i32) {
    %c0_i32 = arith.constant 0 : i32
    %c0_i32_0 = arith.constant 0 : i32
    return %c0_i32, %arg1 : i32, i32
  }
  func.func @transform_3(%arg0: i32, %arg1: i32, %arg2: i32) -> (i32, i32) {
    %c0_i32 = arith.constant 0 : i32
    return %arg0, %arg1 : i32, i32
  }
}

module attributes {stable_mosaic.version = 11 : i64} {
  func.func @_linear_add_ln_kernel(%arg0: i32, %arg1: i32, %arg2: memref<64x32xbf16, #tpu.memory_space<vmem>>, %arg3: memref<32x32xbf16, #tpu.memory_space<vmem>>, %arg4: memref<1x32xf32, #tpu.memory_space<vmem>>, %arg5: memref<64x32xbf16, #tpu.memory_space<vmem>>, %arg6: memref<1x32xf32, #tpu.memory_space<vmem>>, %arg7: memref<1x32xf32, #tpu.memory_space<vmem>>, %arg8: memref<64x32xbf16, #tpu.memory_space<vmem>>, %arg9: memref<64x32xf32, #tpu.memory_space<vmem>>) attributes {dimension_semantics = [#tpu.dimension_semantics<parallel>, #tpu.dimension_semantics<arbitrary>], iteration_bounds = array<i64: 1, 1>, scalar_prefetch = 0 : i64, scratch_operands = 1 : i64, tpu.core_type = #tpu.core_type<tc>, window_params = [{transform_indices = @transform_0, window_bounds = array<i64: 64, 32>}, {transform_indices = @transform_1, window_bounds = array<i64: 32, 32>}, {pipeline_mode = #tpu.pipeline_mode<synchronous>, transform_indices = @transform_2, window_bounds = array<i64: 1, 32>}, {transform_indices = @transform_3, window_bounds = array<i64: 64, 32>}, {pipeline_mode = #tpu.pipeline_mode<synchronous>, transform_indices = @transform_4, window_bounds = array<i64: 1, 32>}, {pipeline_mode = #tpu.pipeline_mode<synchronous>, transform_indices = @transform_5, window_bounds = array<i64: 1, 32>}, {transform_indices = @transform_6, window_bounds = array<i64: 64, 32>}]} {
    %c0_i32 = arith.constant 0 : i32
    %0 = arith.cmpi eq, %arg1, %c0_i32 : i32
    %1 = arith.extui %0 : i1 to i32
    %c0_i32_0 = arith.constant 0 : i32
    %2 = arith.cmpi ne, %1, %c0_i32_0 : i32
    scf.if %2 {
      %cst_10 = arith.constant 0.000000e+00 : f32
      %12 = vector.broadcast %cst_10 : f32 to vector<64x32xf32>
      %c0_11 = arith.constant 0 : index
      %c0_12 = arith.constant 0 : index
      %13 = vector.load %arg9[%c0_11, %c0_12] : memref<64x32xf32, #tpu.memory_space<vmem>>, vector<64x32xf32>
      tpu.vector_store %arg9[%c0_11, %c0_12], %12 {strides = array<i32>} : memref<64x32xf32, #tpu.memory_space<vmem>>, vector<64x32xf32>,
    } else {
    }
    %c0 = arith.constant 0 : index
    %c0_1 = arith.constant 0 : index
    %3 = vector.load %arg9[%c0, %c0_1] : memref<64x32xf32, #tpu.memory_space<vmem>>, vector<64x32xf32>
    %c0_2 = arith.constant 0 : index
    %c0_3 = arith.constant 0 : index
    %4 = vector.load %arg2[%c0_2, %c0_3] : memref<64x32xbf16, #tpu.memory_space<vmem>>, vector<64x32xbf16>
    %c0_4 = arith.constant 0 : index
    %c0_5 = arith.constant 0 : index
    %5 = vector.load %arg3[%c0_4, %c0_5] : memref<32x32xbf16, #tpu.memory_space<vmem>>, vector<32x32xbf16>
    %cst = arith.constant dense<0.000000e+00> : vector<64x32xf32>
    %6 = tpu.matmul %4, %5, %cst {dimension_numbers = #tpu.dot_dimension_numbers<[1], [0], [0], [1], [0, 0, 1, 1], [], []>} : vector<64x32xbf16>, vector<32x32xbf16>, vector<64x32xf32> -> vector<64x32xf32>
    %7 = arith.addf %3, %6 : vector<64x32xf32>
    %c0_6 = arith.constant 0 : index
    %c0_7 = arith.constant 0 : index
    %8 = vector.load %arg9[%c0_6, %c0_7] : memref<64x32xf32, #tpu.memory_space<vmem>>, vector<64x32xf32>
    tpu.vector_store %arg9[%c0_6, %c0_7], %7 {strides = array<i32>} : memref<64x32xf32, #tpu.memory_space<vmem>>, vector<64x32xf32>,
    %c0_i32_8 = arith.constant 0 : i32
    %9 = arith.cmpi eq, %arg1, %c0_i32_8 : i32
    %10 = arith.extui %9 : i1 to i32
    %c0_i32_9 = arith.constant 0 : i32
    %11 = arith.cmpi ne, %10, %c0_i32_9 : i32
    scf.if %11 {
      %c0_10 = arith.constant 0 : index
      %c0_11 = arith.constant 0 : index
      %12 = vector.load %arg9[%c0_10, %c0_11] : memref<64x32xf32, #tpu.memory_space<vmem>>, vector<64x32xf32>
      %c0_12 = arith.constant 0 : index
      %c0_13 = arith.constant 0 : index
      %13 = vector.load %arg4[%c0_12, %c0_13] : memref<1x32xf32, #tpu.memory_space<vmem>>, vector<1x32xf32>
      %14 = vector.broadcast %13 : vector<1x32xf32> to vector<64x32xf32>
      %15 = arith.addf %12, %14 : vector<64x32xf32>
      %c0_14 = arith.constant 0 : index
      %c0_15 = arith.constant 0 : index
      %16 = vector.load %arg5[%c0_14, %c0_15] : memref<64x32xbf16, #tpu.memory_space<vmem>>, vector<64x32xbf16>
      %17 = arith.extf %16 : vector<64x32xbf16> to vector<64x32xf32>
      %18 = arith.addf %15, %17 : vector<64x32xf32>
      %cst_16 = arith.constant dense<0.000000e+00> : vector<64xf32>
      %19 = vector.multi_reduction <add>, %18, %cst_16 [1] : vector<64x32xf32> to vector<64xf32>
      %20 = vector.shape_cast %19 : vector<64xf32> to vector<64x1xf32>
      %cst_17 = arith.constant 3.200000e+01 : f32
      %21 = vector.broadcast %cst_17 : f32 to vector<64x1xf32>
      %22 = arith.divf %20, %21 : vector<64x1xf32>
      %23 = vector.broadcast %22 : vector<64x1xf32> to vector<64x32xf32>
      %24 = arith.subf %18, %23 : vector<64x32xf32>
      %25 = arith.mulf %24, %24 : vector<64x32xf32>
      %cst_18 = arith.constant dense<0.000000e+00> : vector<64xf32>
      %26 = vector.multi_reduction <add>, %25, %cst_18 [1] : vector<64x32xf32> to vector<64xf32>
      %27 = vector.shape_cast %26 : vector<64xf32> to vector<64x1xf32>
      %cst_19 = arith.constant 3.200000e+01 : f32
      %28 = vector.broadcast %cst_19 : f32 to vector<64x1xf32>
      %29 = arith.divf %27, %28 : vector<64x1xf32>
      %30 = vector.broadcast %22 : vector<64x1xf32> to vector<64x32xf32>
      %31 = arith.subf %18, %30 : vector<64x32xf32>
      %cst_20 = arith.constant 9.99999974E-6 : f32
      %32 = vector.broadcast %cst_20 : f32 to vector<64x1xf32>
      %33 = arith.addf %29, %32 : vector<64x1xf32>
      %34 = math.rsqrt %33 : vector<64x1xf32>
      %35 = vector.broadcast %34 : vector<64x1xf32> to vector<64x32xf32>
      %36 = arith.mulf %31, %35 : vector<64x32xf32>
      %c0_21 = arith.constant 0 : index
      %c0_22 = arith.constant 0 : index
      %37 = vector.load %arg6[%c0_21, %c0_22] : memref<1x32xf32, #tpu.memory_space<vmem>>, vector<1x32xf32>
      %38 = vector.broadcast %37 : vector<1x32xf32> to vector<64x32xf32>
      %39 = arith.mulf %36, %38 : vector<64x32xf32>
      %c0_23 = arith.constant 0 : index
      %c0_24 = arith.constant 0 : index
      %40 = vector.load %arg7[%c0_23, %c0_24] : memref<1x32xf32, #tpu.memory_space<vmem>>, vector<1x32xf32>
      %41 = vector.broadcast %40 : vector<1x32xf32> to vector<64x32xf32>
      %42 = arith.addf %39, %41 : vector<64x32xf32>
      %43 = arith.truncf %42 : vector<64x32xf32> to vector<64x32xbf16>
      %c0_25 = arith.constant 0 : index
      %c0_26 = arith.constant 0 : index
      %44 = vector.load %arg8[%c0_25, %c0_26] : memref<64x32xbf16, #tpu.memory_space<vmem>>, vector<64x32xbf16>
      tpu.vector_store %arg8[%c0_25, %c0_26], %43 {strides = array<i32>} : memref<64x32xbf16, #tpu.memory_space<vmem>>, vector<64x32xbf16>,
    } else {
    }
    return
  }
  func.func @transform_0(%arg0: i32, %arg1: i32) -> (i32, i32) {
    %c0_i32 = arith.constant 0 : i32
    return %arg0, %arg1 : i32, i32
  }
  func.func @transform_1(%arg0: i32, %arg1: i32) -> (i32, i32) {
    %c0_i32 = arith.constant 0 : i32
    %c0_i32_0 = arith.constant 0 : i32
    return %arg1, %c0_i32 : i32, i32
  }
  func.func @transform_2(%arg0: i32, %arg1: i32) -> (i32, i32) {
    %c0_i32 = arith.constant 0 : i32
    %c0_i32_0 = arith.constant 0 : i32
    %c0_i32_1 = arith.constant 0 : i32
    return %c0_i32, %c0_i32_0 : i32, i32
  }
  func.func @transform_3(%arg0: i32, %arg1: i32) -> (i32, i32) {
    %c0_i32 = arith.constant 0 : i32
    %c0_i32_0 = arith.constant 0 : i32
    return %arg0, %c0_i32 : i32, i32
  }
  func.func @transform_4(%arg0: i32, %arg1: i32) -> (i32, i32) {
    %c0_i32 = arith.constant 0 : i32
    %c0_i32_0 = arith.constant 0 : i32
    %c0_i32_1 = arith.constant 0 : i32
    return %c0_i32, %c0_i32_0 : i32, i32
  }
  func.func @transform_5(%arg0: i32, %arg1: i32) -> (i32, i32) {
    %c0_i32 = arith.constant 0 : i32
    %c0_i32_0 = arith.constant 0 : i32
    %c0_i32_1 = arith.constant 0 : i32
    return %c0_i32, %c0_i32_0 : i32, i32
  }
  func.func @transform_6(%arg0: i32, %arg1: i32) -> (i32, i32) {
    %c0_i32 = arith.constant 0 : i32
    %c0_i32_0 = arith.constant 0 : i32
    return %arg0, %c0_i32 : i32, i32
  }
}

module attributes {stable_mosaic.version = 11 : i64} {
  func.func @_ffn_add_ln_kernel(%arg0: i32, %arg1: memref<64x32xbf16, #tpu.memory_space<vmem>>, %arg2: memref<32x128xbf16, #tpu.memory_space<vmem>>, %arg3: memref<1x128xf32, #tpu.memory_space<vmem>>, %arg4: memref<128x32xbf16, #tpu.memory_space<vmem>>, %arg5: memref<1x32xf32, #tpu.memory_space<vmem>>, %arg6: memref<1x32xf32, #tpu.memory_space<vmem>>, %arg7: memref<1x32xf32, #tpu.memory_space<vmem>>, %arg8: memref<64x32xbf16, #tpu.memory_space<vmem>>) attributes {dimension_semantics = [#tpu.dimension_semantics<parallel>], iteration_bounds = array<i64: 1>, scalar_prefetch = 0 : i64, scratch_operands = 0 : i64, tpu.core_type = #tpu.core_type<tc>, window_params = [{transform_indices = @transform_0, window_bounds = array<i64: 64, 32>}, {pipeline_mode = #tpu.pipeline_mode<synchronous>, transform_indices = @transform_1, window_bounds = array<i64: 32, 128>}, {pipeline_mode = #tpu.pipeline_mode<synchronous>, transform_indices = @transform_2, window_bounds = array<i64: 1, 128>}, {pipeline_mode = #tpu.pipeline_mode<synchronous>, transform_indices = @transform_3, window_bounds = array<i64: 128, 32>}, {pipeline_mode = #tpu.pipeline_mode<synchronous>, transform_indices = @transform_4, window_bounds = array<i64: 1, 32>}, {pipeline_mode = #tpu.pipeline_mode<synchronous>, transform_indices = @transform_5, window_bounds = array<i64: 1, 32>}, {pipeline_mode = #tpu.pipeline_mode<synchronous>, transform_indices = @transform_6, window_bounds = array<i64: 1, 32>}, {transform_indices = @transform_7, window_bounds = array<i64: 64, 32>}]} {
    %c0 = arith.constant 0 : index
    %c0_0 = arith.constant 0 : index
    %0 = vector.load %arg1[%c0, %c0_0] : memref<64x32xbf16, #tpu.memory_space<vmem>>, vector<64x32xbf16>
    %c0_1 = arith.constant 0 : index
    %c0_2 = arith.constant 0 : index
    %1 = vector.load %arg2[%c0_1, %c0_2] : memref<32x128xbf16, #tpu.memory_space<vmem>>, vector<32x128xbf16>
    %cst = arith.constant dense<0.000000e+00> : vector<64x128xf32>
    %2 = tpu.matmul %0, %1, %cst {dimension_numbers = #tpu.dot_dimension_numbers<[1], [0], [0], [1], [0, 0, 1, 1], [], []>} : vector<64x32xbf16>, vector<32x128xbf16>, vector<64x128xf32> -> vector<64x128xf32>
    %c0_3 = arith.constant 0 : index
    %c0_4 = arith.constant 0 : index
    %3 = vector.load %arg3[%c0_3, %c0_4] : memref<1x128xf32, #tpu.memory_space<vmem>>, vector<1x128xf32>
    %4 = vector.broadcast %3 : vector<1x128xf32> to vector<64x128xf32>
    %5 = arith.addf %2, %4 : vector<64x128xf32>
    %cst_5 = arith.constant 0.000000e+00 : f32
    %6 = vector.broadcast %cst_5 : f32 to vector<64x128xf32>
    %7 = arith.maximumf %5, %6 : vector<64x128xf32>
    %8 = arith.truncf %7 : vector<64x128xf32> to vector<64x128xbf16>
    %c0_6 = arith.constant 0 : index
    %c0_7 = arith.constant 0 : index
    %9 = vector.load %arg4[%c0_6, %c0_7] : memref<128x32xbf16, #tpu.memory_space<vmem>>, vector<128x32xbf16>
    %cst_8 = arith.constant dense<0.000000e+00> : vector<64x32xf32>
    %10 = tpu.matmul %8, %9, %cst_8 {dimension_numbers = #tpu.dot_dimension_numbers<[1], [0], [0], [1], [0, 0, 1, 1], [], []>} : vector<64x128xbf16>, vector<128x32xbf16>, vector<64x32xf32> -> vector<64x32xf32>
    %c0_9 = arith.constant 0 : index
    %c0_10 = arith.constant 0 : index
    %11 = vector.load %arg5[%c0_9, %c0_10] : memref<1x32xf32, #tpu.memory_space<vmem>>, vector<1x32xf32>
    %12 = vector.broadcast %11 : vector<1x32xf32> to vector<64x32xf32>
    %13 = arith.addf %10, %12 : vector<64x32xf32>
    %14 = arith.extf %0 : vector<64x32xbf16> to vector<64x32xf32>
    %15 = arith.addf %13, %14 : vector<64x32xf32>
    %cst_11 = arith.constant dense<0.000000e+00> : vector<64xf32>
    %16 = vector.multi_reduction <add>, %15, %cst_11 [1] : vector<64x32xf32> to vector<64xf32>
    %17 = vector.shape_cast %16 : vector<64xf32> to vector<64x1xf32>
    %cst_12 = arith.constant 3.200000e+01 : f32
    %18 = vector.broadcast %cst_12 : f32 to vector<64x1xf32>
    %19 = arith.divf %17, %18 : vector<64x1xf32>
    %20 = vector.broadcast %19 : vector<64x1xf32> to vector<64x32xf32>
    %21 = arith.subf %15, %20 : vector<64x32xf32>
    %22 = arith.mulf %21, %21 : vector<64x32xf32>
    %cst_13 = arith.constant dense<0.000000e+00> : vector<64xf32>
    %23 = vector.multi_reduction <add>, %22, %cst_13 [1] : vector<64x32xf32> to vector<64xf32>
    %24 = vector.shape_cast %23 : vector<64xf32> to vector<64x1xf32>
    %cst_14 = arith.constant 3.200000e+01 : f32
    %25 = vector.broadcast %cst_14 : f32 to vector<64x1xf32>
    %26 = arith.divf %24, %25 : vector<64x1xf32>
    %27 = vector.broadcast %19 : vector<64x1xf32> to vector<64x32xf32>
    %28 = arith.subf %15, %27 : vector<64x32xf32>
    %cst_15 = arith.constant 9.99999974E-6 : f32
    %29 = vector.broadcast %cst_15 : f32 to vector<64x1xf32>
    %30 = arith.addf %26, %29 : vector<64x1xf32>
    %31 = math.rsqrt %30 : vector<64x1xf32>
    %32 = vector.broadcast %31 : vector<64x1xf32> to vector<64x32xf32>
    %33 = arith.mulf %28, %32 : vector<64x32xf32>
    %c0_16 = arith.constant 0 : index
    %c0_17 = arith.constant 0 : index
    %34 = vector.load %arg6[%c0_16, %c0_17] : memref<1x32xf32, #tpu.memory_space<vmem>>, vector<1x32xf32>
    %35 = vector.broadcast %34 : vector<1x32xf32> to vector<64x32xf32>
    %36 = arith.mulf %33, %35 : vector<64x32xf32>
    %c0_18 = arith.constant 0 : index
    %c0_19 = arith.constant 0 : index
    %37 = vector.load %arg7[%c0_18, %c0_19] : memref<1x32xf32, #tpu.memory_space<vmem>>, vector<1x32xf32>
    %38 = vector.broadcast %37 : vector<1x32xf32> to vector<64x32xf32>
    %39 = arith.addf %36, %38 : vector<64x32xf32>
    %40 = arith.truncf %39 : vector<64x32xf32> to vector<64x32xbf16>
    %c0_20 = arith.constant 0 : index
    %c0_21 = arith.constant 0 : index
    %41 = vector.load %arg8[%c0_20, %c0_21] : memref<64x32xbf16, #tpu.memory_space<vmem>>, vector<64x32xbf16>
    tpu.vector_store %arg8[%c0_20, %c0_21], %40 {strides = array<i32>} : memref<64x32xbf16, #tpu.memory_space<vmem>>, vector<64x32xbf16>,
    return
  }
  func.func @transform_0(%arg0: i32) -> (i32, i32) {
    %c0_i32 = arith.constant 0 : i32
    %c0_i32_0 = arith.constant 0 : i32
    return %arg0, %c0_i32 : i32, i32
  }
  func.func @transform_1(%arg0: i32) -> (i32, i32) {
    %c0_i32 = arith.constant 0 : i32
    %c0_i32_0 = arith.constant 0 : i32
    %c0_i32_1 = arith.constant 0 : i32
    return %c0_i32, %c0_i32_0 : i32, i32
  }
  func.func @transform_2(%arg0: i32) -> (i32, i32) {
    %c0_i32 = arith.constant 0 : i32
    %c0_i32_0 = arith.constant 0 : i32
    %c0_i32_1 = arith.constant 0 : i32
    return %c0_i32, %c0_i32_0 : i32, i32
  }
  func.func @transform_3(%arg0: i32) -> (i32, i32) {
    %c0_i32 = arith.constant 0 : i32
    %c0_i32_0 = arith.constant 0 : i32
    %c0_i32_1 = arith.constant 0 : i32
    return %c0_i32, %c0_i32_0 : i32, i32
  }
  func.func @transform_4(%arg0: i32) -> (i32, i32) {
    %c0_i32 = arith.constant 0 : i32
    %c0_i32_0 = arith.constant 0 : i32
    %c0_i32_1 = arith.constant 0 : i32
    return %c0_i32, %c0_i32_0 : i32, i32
  }
  func.func @transform_5(%arg0: i32) -> (i32, i32) {
    %c0_i32 = arith.constant 0 : i32
    %c0_i32_0 = arith.constant 0 : i32
    %c0_i32_1 = arith.constant 0 : i32
    return %c0_i32, %c0_i32_0 : i32, i32
  }
  func.func @transform_6(%arg0: i32) -> (i32, i32) {
    %c0_i32 = arith.constant 0 : i32
    %c0_i32_0 = arith.constant 0 : i32
    %c0_i32_1 = arith.constant 0 : i32
    return %c0_i32, %c0_i32_0 : i32, i32
  }
  func.func @transform_7(%arg0: i32) -> (i32, i32) {
    %c0_i32 = arith.constant 0 : i32
    %c0_i32_0 = arith.constant 0 : i32
    return %arg0, %c0_i32 : i32, i32
  }
}

module attributes {stable_mosaic.version = 11 : i64} {
  func.func @_linear_kernel(%arg0: i32, %arg1: i32, %arg2: i32, %arg3: memref<64x32xbf16, #tpu.memory_space<vmem>>, %arg4: memref<32x64xbf16, #tpu.memory_space<vmem>>, %arg5: memref<1x64xf32, #tpu.memory_space<vmem>>, %arg6: memref<64x64xf32, #tpu.memory_space<vmem>>, %arg7: memref<64x64xf32, #tpu.memory_space<vmem>>) attributes {dimension_semantics = [#tpu.dimension_semantics<parallel>, #tpu.dimension_semantics<parallel>, #tpu.dimension_semantics<arbitrary>], iteration_bounds = array<i64: 1, 1, 1>, scalar_prefetch = 0 : i64, scratch_operands = 1 : i64, tpu.core_type = #tpu.core_type<tc>, window_params = [{transform_indices = @transform_0, window_bounds = array<i64: 64, 32>}, {transform_indices = @transform_1, window_bounds = array<i64: 32, 64>}, {transform_indices = @transform_2, window_bounds = array<i64: 1, 64>}, {transform_indices = @transform_3, window_bounds = array<i64: 64, 64>}]} {
    %c0_i32 = arith.constant 0 : i32
    %0 = arith.cmpi eq, %arg2, %c0_i32 : i32
    %1 = arith.extui %0 : i1 to i32
    %c0_i32_0 = arith.constant 0 : i32
    %2 = arith.cmpi ne, %1, %c0_i32_0 : i32
    scf.if %2 {
      %cst_10 = arith.constant 0.000000e+00 : f32
      %12 = vector.broadcast %cst_10 : f32 to vector<64x64xf32>
      %c0_11 = arith.constant 0 : index
      %c0_12 = arith.constant 0 : index
      %13 = vector.load %arg7[%c0_11, %c0_12] : memref<64x64xf32, #tpu.memory_space<vmem>>, vector<64x64xf32>
      tpu.vector_store %arg7[%c0_11, %c0_12], %12 {strides = array<i32>} : memref<64x64xf32, #tpu.memory_space<vmem>>, vector<64x64xf32>,
    } else {
    }
    %c0 = arith.constant 0 : index
    %c0_1 = arith.constant 0 : index
    %3 = vector.load %arg7[%c0, %c0_1] : memref<64x64xf32, #tpu.memory_space<vmem>>, vector<64x64xf32>
    %c0_2 = arith.constant 0 : index
    %c0_3 = arith.constant 0 : index
    %4 = vector.load %arg3[%c0_2, %c0_3] : memref<64x32xbf16, #tpu.memory_space<vmem>>, vector<64x32xbf16>
    %c0_4 = arith.constant 0 : index
    %c0_5 = arith.constant 0 : index
    %5 = vector.load %arg4[%c0_4, %c0_5] : memref<32x64xbf16, #tpu.memory_space<vmem>>, vector<32x64xbf16>
    %cst = arith.constant dense<0.000000e+00> : vector<64x64xf32>
    %6 = tpu.matmul %4, %5, %cst {dimension_numbers = #tpu.dot_dimension_numbers<[1], [0], [0], [1], [0, 0, 1, 1], [], []>} : vector<64x32xbf16>, vector<32x64xbf16>, vector<64x64xf32> -> vector<64x64xf32>
    %7 = arith.addf %3, %6 : vector<64x64xf32>
    %c0_6 = arith.constant 0 : index
    %c0_7 = arith.constant 0 : index
    %8 = vector.load %arg7[%c0_6, %c0_7] : memref<64x64xf32, #tpu.memory_space<vmem>>, vector<64x64xf32>
    tpu.vector_store %arg7[%c0_6, %c0_7], %7 {strides = array<i32>} : memref<64x64xf32, #tpu.memory_space<vmem>>, vector<64x64xf32>,
    %c0_i32_8 = arith.constant 0 : i32
    %9 = arith.cmpi eq, %arg2, %c0_i32_8 : i32
    %10 = arith.extui %9 : i1 to i32
    %c0_i32_9 = arith.constant 0 : i32
    %11 = arith.cmpi ne, %10, %c0_i32_9 : i32
    scf.if %11 {
      %c0_10 = arith.constant 0 : index
      %c0_11 = arith.constant 0 : index
      %12 = vector.load %arg7[%c0_10, %c0_11] : memref<64x64xf32, #tpu.memory_space<vmem>>, vector<64x64xf32>
      %c0_12 = arith.constant 0 : index
      %c0_13 = arith.constant 0 : index
      %13 = vector.load %arg5[%c0_12, %c0_13] : memref<1x64xf32, #tpu.memory_space<vmem>>, vector<1x64xf32>
      %14 = vector.broadcast %13 : vector<1x64xf32> to vector<64x64xf32>
      %15 = arith.addf %12, %14 : vector<64x64xf32>
      %c0_14 = arith.constant 0 : index
      %c0_15 = arith.constant 0 : index
      %16 = vector.load %arg6[%c0_14, %c0_15] : memref<64x64xf32, #tpu.memory_space<vmem>>, vector<64x64xf32>
      tpu.vector_store %arg6[%c0_14, %c0_15], %15 {strides = array<i32>} : memref<64x64xf32, #tpu.memory_space<vmem>>, vector<64x64xf32>,
    } else {
    }
    return
  }
  func.func @transform_0(%arg0: i32, %arg1: i32, %arg2: i32) -> (i32, i32) {
    %c0_i32 = arith.constant 0 : i32
    return %arg0, %arg2 : i32, i32
  }
  func.func @transform_1(%arg0: i32, %arg1: i32, %arg2: i32) -> (i32, i32) {
    %c0_i32 = arith.constant 0 : i32
    return %arg2, %arg1 : i32, i32
  }
  func.func @transform_2(%arg0: i32, %arg1: i32, %arg2: i32) -> (i32, i32) {
    %c0_i32 = arith.constant 0 : i32
    %c0_i32_0 = arith.constant 0 : i32
    return %c0_i32, %arg1 : i32, i32
  }
  func.func @transform_3(%arg0: i32, %arg1: i32, %arg2: i32) -> (i32, i32) {
    %c0_i32 = arith.constant 0 : i32
    return %arg0, %arg1 : i32, i32
  }
}

</mosaic_0001>

<llo_original>
// kernel: _lambda_.19
$region0: #{_lambda_.19}
  #allocation0 [shape = 'u32[]', space=smem, size = 0x4, offset = 0x4, fixed_abs, tag = 'smem constant byte address 0x4 - core index']
  #allocation1 [shape = 'u32[72,128]{1,0:T(1,128)}', space=vmem, size = 0x9000, scoped, tag = 'internal scratch']
  #allocation2 [shape = 'f32[64,96]{1,0:T(8,128)}', space=vmem, size = 0x8000, scoped, tag = 'scratch operand']
  %s0 = inlined_call_operand.vmem [shape: bf16[64,32], index: 0, kind: input, shape index: {}]
  %s1 = inlined_call_operand.vmem [shape: bf16[32,96], index: 1, kind: input, shape index: {}]
  %s2 = inlined_call_operand.vmem [shape: f32[1,96], index: 2, kind: input, shape index: {}]
  %s3 = inlined_call_operand.vmem [shape: bf16[64,96], index: 3, kind: output, shape index: {}]
  %s4 = sld [smem:[#allocation0]]
  $region30: #{_lambda_.19} parent=0
    _
  %s6 = ssub.s32 1, %s4
  %s7 = scalar_select 0, %s6, %s4
  // Predicated region
  $region2: #{_lambda_.19} parent=0 // pred_check
    _
  $region3: #{_lambda_.19} parent=0 // pred_check_branch
    %9 = sbr.rel (0) target = $region5
  $region4: #{_lambda_.19} parent=0 // pred_region
    _
  $region5: #{_lambda_.19} parent=0 // pred_fallthru
    _
  // Predicated region
  $region6: #{_lambda_.19} parent=0 // pred_check
    _
  $region7: #{_lambda_.19} parent=0 // pred_check_branch
    %11 = sbr.rel (0) target = $region9
  $region8: #{_lambda_.19} parent=0 // pred_region
    _
  $region9: #{_lambda_.19} parent=0 // pred_fallthru
    _
  // Predicated region
  $region10: #{_lambda_.19} parent=0 // pred_check
    _
  $region11: #{_lambda_.19} parent=0 // pred_check_branch
    %13 = sbr.rel (0) target = $region13
  $region12: #{_lambda_.19} parent=0 // pred_region
    _
  $region13: #{_lambda_.19} parent=0 // pred_fallthru
    _
  %p15 = scmp.eq.s32.totalorder 0, 0
  // Predicated region
  $region14: #{_lambda_.19} parent=0 // pred_check
    %p16 = pneg %p15
  $region15: #{_lambda_.19} parent=0 // pred_check_branch
    %18 = sbr.rel (%p16) target = $region17
  $region16: #{_lambda_.19} parent=0 // pred_region
    %vm19 = vcmask 785408
    %20 = vst.msk [vmem:[#allocation2] sm:$0xff] %vm19, 0.0
    %21 = vst.msk [vmem:[#allocation2 + $0x8] sm:$0xff] %vm19, 0.0
    %22 = vst.msk [vmem:[#allocation2 + $0x10] sm:$0xff] %vm19, 0.0
    %23 = vst.msk [vmem:[#allocation2 + $0x18] sm:$0xff] %vm19, 0.0
    %24 = vst.msk [vmem:[#allocation2 + $0x20] sm:$0xff] %vm19, 0.0
    %25 = vst.msk [vmem:[#allocation2 + $0x28] sm:$0xff] %vm19, 0.0
    %26 = vst.msk [vmem:[#allocation2 + $0x30] sm:$0xff] %vm19, 0.0
    %27 = vst.msk [vmem:[#allocation2 + $0x38] sm:$0xff] %vm19, 0.0
  $region17: #{_lambda_.19} parent=0 // pred_fallthru
    _
  %v28 = vld [vmem:[#allocation2] sm:$0xff]
  %v29 = vld [vmem:[#allocation2 + $0x8] sm:$0xff]
  %v30 = vld [vmem:[#allocation2 + $0x10] sm:$0xff]
  %v31 = vld [vmem:[#allocation2 + $0x18] sm:$0xff]
  %v32 = vld [vmem:[#allocation2 + $0x20] sm:$0xff]
  %v33 = vld [vmem:[#allocation2 + $0x28] sm:$0xff]
  %v34 = vld [vmem:[#allocation2 + $0x30] sm:$0xff]
  %v35 = vld [vmem:[#allocation2 + $0x38] sm:$0xff]
  %v36 = vld [vmem:[%s0] sm:$0xf]
  %v37 = vld [vmem:[%s0 + $0x4] sm:$0xf]
  %v38 = vld [vmem:[%s0 + $0x8] sm:$0xf]
  %v39 = vld [vmem:[%s0 + $0xc] sm:$0xf]
  %v40 = vld [vmem:[%s0 + $0x10] sm:$0xf]
  %v41 = vld [vmem:[%s0 + $0x14] sm:$0xf]
  %v42 = vld [vmem:[%s0 + $0x18] sm:$0xf]
  %v43 = vld [vmem:[%s0 + $0x1c] sm:$0xf]
  %v44 = vld [vmem:[%s1] sm:$0xf]
  %v45 = vld [vmem:[%s1 + $0x4] sm:$0xf]
  %v46 = vld [vmem:[%s1 + $0x8] sm:$0xf]
  %v47 = vld [vmem:[%s1 + $0xc] sm:$0xf]
  %v56 = vunpack.c.l.b16 %v36
  %v57 = vunpack.c.l.b16 %v37
  %v58 = vunpack.c.l.b16 %v38
  %v59 = vunpack.c.l.b16 %v39
  %v60 = vunpack.c.l.b16 %v40
  %v61 = vunpack.c.l.b16 %v41
  %v62 = vunpack.c.l.b16 %v42
  %v63 = vunpack.c.l.b16 %v43
  %v64 = vpack.c.b16 %v57, %v56
  %v65 = vpack.c.b16 %v59, %v58
  %v66 = vpack.c.b16 %v61, %v60
  %v67 = vpack.c.b16 %v63, %v62
  %v72 = vunpack.c.l.b16 %v44
  %v73 = vunpack.c.l.b16 %v45
  %v74 = vunpack.c.l.b16 %v46
  %v75 = vunpack.c.l.b16 %v47
  %v76 = vpack.c.b16 %v73, %v72
  %v77 = vpack.c.b16 %v75, %v74
  %vm80 = vcmask 261120
  %v82 = vsel %vm80, %v64, 0
  %v85 = vsel %vm80, %v65, 0
  %v88 = vsel %vm80, %v66, 0
  %v91 = vsel %vm80, %v67, 0
  %93 = vmatpush.bf16.msra.mxu0 0
  %94 = vmatpush.bf16.msra.mxu0 0
  %95 = vmatpush.bf16.msra.mxu0 0
  %96 = vmatpush.bf16.msra.mxu0 0
  %97 = vmatpush.bf16.msra.mxu0 0
  %98 = vmatpush.bf16.msra.mxu0 0
  %99 = vmatpush.bf16.msra.mxu0 %v77
  %100 = vmatpush.bf16.msra.mxu0 %v76
  %101 = vmatmul.bf16.gmra.mxu0 %v82
  %v102 = vpop.f32.mrf.mxu0
  %v103 = vadd.f32 0.0, %v102
  %v104 = vpop.f32.mrf.mxu0
  %v105 = vadd.f32 0.0, %v104
  %106 = vmatmul.bf16.gmra.mxu0 %v85
  %v107 = vpop.f32.mrf.mxu0
  %v108 = vadd.f32 0.0, %v107
  %v109 = vpop.f32.mrf.mxu0
  %v110 = vadd.f32 0.0, %v109
  %111 = vmatmul.bf16.gmra.mxu0 %v88
  %v112 = vpop.f32.mrf.mxu0
  %v113 = vadd.f32 0.0, %v112
  %v114 = vpop.f32.mrf.mxu0
  %v115 = vadd.f32 0.0, %v114
  %116 = vmatmul.bf16.gmra.mxu0 %v91
  %v117 = vpop.f32.mrf.mxu0
  %v118 = vadd.f32 0.0, %v117
  %v119 = vpop.f32.mrf.mxu0
  %v120 = vadd.f32 0.0, %v119
  %121 = vdwg.mxu0
  %v122 = vadd.f32 %v28, %v103
  %v123 = vadd.f32 %v29, %v105
  %v124 = vadd.f32 %v30, %v108
  %v125 = vadd.f32 %v31, %v110
  %v126 = vadd.f32 %v32, %v113
  %v127 = vadd.f32 %v33, %v115
  %v128 = vadd.f32 %v34, %v118
  %v129 = vadd.f32 %v35, %v120
  %vm130 = vcmask 785408
  %131 = vst.msk [vmem:[#allocation2] sm:$0xff] %vm130, %v122
  %132 = vst.msk [vmem:[#allocation2 + $0x8] sm:$0xff] %vm130, %v123
  %133 = vst.msk [vmem:[#allocation2 + $0x10] sm:$0xff] %vm130, %v124
  %134 = vst.msk [vmem:[#allocation2 + $0x18] sm:$0xff] %vm130, %v125
  %135 = vst.msk [vmem:[#allocation2 + $0x20] sm:$0xff] %vm130, %v126
  %136 = vst.msk [vmem:[#allocation2 + $0x28] sm:$0xff] %vm130, %v127
  %137 = vst.msk [vmem:[#allocation2 + $0x30] sm:$0xff] %vm130, %v128
  %138 = vst.msk [vmem:[#allocation2 + $0x38] sm:$0xff] %vm130, %v129
  // Predicated region
  $region18: #{_lambda_.19} parent=0 // pred_check
    %p139 = pneg %p15
  $region19: #{_lambda_.19} parent=0 // pred_check_branch
    %141 = sbr.rel (%p139) target = $region21
  $region20: #{_lambda_.19} parent=0 // pred_region
    %v142 = vld [vmem:[#allocation2] sm:$0xff]
    %v143 = vld [vmem:[#allocation2 + $0x8] sm:$0xff]
    %v144 = vld [vmem:[#allocation2 + $0x10] sm:$0xff]
    %v145 = vld [vmem:[#allocation2 + $0x18] sm:$0xff]
    %v146 = vld [vmem:[#allocation2 + $0x20] sm:$0xff]
    %v147 = vld [vmem:[#allocation2 + $0x28] sm:$0xff]
    %v148 = vld [vmem:[#allocation2 + $0x30] sm:$0xff]
    %v149 = vld [vmem:[#allocation2 + $0x38] sm:$0xff]
    %v150 = vld [vmem:[%s2] sm:$0x1]
    %v152 = vperm.slane %v150, 0
    %v154 = vadd.f32 %v142, %v152
    %v155 = vadd.f32 %v143, %v152
    %v156 = vadd.f32 %v144, %v152
    %v157 = vadd.f32 %v145, %v152
    %v158 = vadd.f32 %v146, %v152
    %v159 = vadd.f32 %v147, %v152
    %v160 = vadd.f32 %v148, %v152
    %v161 = vadd.f32 %v149, %v152
    %v162 = vpack.c.bf16 %v154, %v154
    %v163 = vpack.c.bf16 %v155, %v155
    %v164 = vpack.c.bf16 %v156, %v156
    %v165 = vpack.c.bf16 %v157, %v157
    %v166 = vpack.c.bf16 %v158, %v158
    %v167 = vpack.c.bf16 %v159, %v159
    %v168 = vpack.c.bf16 %v160, %v160
    %v169 = vpack.c.bf16 %v161, %v161
    %vm170 = vcmask 781312
    %171 = vst.msk [vmem:[%s3] sm:$0xf] %vm170, %v162
    %172 = vst.msk [vmem:[%s3 + $0x4] sm:$0xf] %vm170, %v163
    %173 = vst.msk [vmem:[%s3 + $0x8] sm:$0xf] %vm170, %v164
    %174 = vst.msk [vmem:[%s3 + $0xc] sm:$0xf] %vm170, %v165
    %175 = vst.msk [vmem:[%s3 + $0x10] sm:$0xf] %vm170, %v166
    %176 = vst.msk [vmem:[%s3 + $0x14] sm:$0xf] %vm170, %v167
    %177 = vst.msk [vmem:[%s3 + $0x18] sm:$0xf] %vm170, %v168
    %178 = vst.msk [vmem:[%s3 + $0x1c] sm:$0xf] %vm170, %v169
  $region21: #{_lambda_.19} parent=0 // pred_fallthru
    _
  // Predicated region
  $region22: #{_lambda_.19} parent=0 // pred_check
    _
  $region23: #{_lambda_.19} parent=0 // pred_check_branch
    %180 = sbr.rel (0) target = $region25
  $region24: #{_lambda_.19} parent=0 // pred_region
    _
  $region25: #{_lambda_.19} parent=0 // pred_fallthru
    _
  // Predicated region
  $region26: #{_lambda_.19} parent=0 // pred_check
    _
  $region27: #{_lambda_.19} parent=0 // pred_check_branch
    %182 = sbr.rel (0) target = $region29
  $region28: #{_lambda_.19} parent=0 // pred_region
    _
  $region29: #{_lambda_.19} parent=0 // pred_fallthru
    _

// kernel: _lambda_.18
$region0: #{_lambda_.18}
  #allocation0 [shape = 'u32[]', space=smem, size = 0x4, offset = 0x4, fixed_abs, tag = 'smem constant byte address 0x4 - core index']
  #allocation1 [shape = 'u32[72,128]{1,0:T(1,128)}', space=vmem, size = 0x9000, scoped, tag = 'internal scratch']
  #allocation2 [shape = 'f32[64,32]{1,0:T(8,128)}', space=vmem, size = 0x8000, scoped, tag = 'scratch operand']
  %s0 = inlined_call_operand.vmem [shape: bf16[64,32], index: 0, kind: input, shape index: {}]
  %s1 = inlined_call_operand.vmem [shape: bf16[32,32], index: 1, kind: input, shape index: {}]
  %s2 = inlined_call_operand.vmem [shape: f32[1,32], index: 2, kind: input, shape index: {}]
  %s3 = inlined_call_operand.vmem [shape: bf16[64,32], index: 3, kind: output, shape index: {}]
  %s4 = sld [smem:[#allocation0]]
  $region30: #{_lambda_.18} parent=0
    _
  %s6 = ssub.s32 1, %s4
  %s7 = scalar_select 0, %s6, %s4
  // Predicated region
  $region2: #{_lambda_.18} parent=0 // pred_check
    _
  $region3: #{_lambda_.18} parent=0 // pred_check_branch
    %9 = sbr.rel (0) target = $region5
  $region4: #{_lambda_.18} parent=0 // pred_region
    _
  $region5: #{_lambda_.18} parent=0 // pred_fallthru
    _
  // Predicated region
  $region6: #{_lambda_.18} parent=0 // pred_check
    _
  $region7: #{_lambda_.18} parent=0 // pred_check_branch
    %11 = sbr.rel (0) target = $region9
  $region8: #{_lambda_.18} parent=0 // pred_region
    _
  $region9: #{_lambda_.18} parent=0 // pred_fallthru
    _
  // Predicated region
  $region10: #{_lambda_.18} parent=0 // pred_check
    _
  $region11: #{_lambda_.18} parent=0 // pred_check_branch
    %13 = sbr.rel (0) target = $region13
  $region12: #{_lambda_.18} parent=0 // pred_region
    _
  $region13: #{_lambda_.18} parent=0 // pred_fallthru
    _
  %p15 = scmp.eq.s32.totalorder 0, 0
  // Predicated region
  $region14: #{_lambda_.18} parent=0 // pred_check
    %p16 = pneg %p15
  $region15: #{_lambda_.18} parent=0 // pred_check_branch
    %18 = sbr.rel (%p16) target = $region17
  $region16: #{_lambda_.18} parent=0 // pred_region
    %vm19 = vcmask 261120
    %20 = vst.msk [vmem:[#allocation2] sm:$0xff] %vm19, 0.0
    %21 = vst.msk [vmem:[#allocation2 + $0x8] sm:$0xff] %vm19, 0.0
    %22 = vst.msk [vmem:[#allocation2 + $0x10] sm:$0xff] %vm19, 0.0
    %23 = vst.msk [vmem:[#allocation2 + $0x18] sm:$0xff] %vm19, 0.0
    %24 = vst.msk [vmem:[#allocation2 + $0x20] sm:$0xff] %vm19, 0.0
    %25 = vst.msk [vmem:[#allocation2 + $0x28] sm:$0xff] %vm19, 0.0
    %26 = vst.msk [vmem:[#allocation2 + $0x30] sm:$0xff] %vm19, 0.0
    %27 = vst.msk [vmem:[#allocation2 + $0x38] sm:$0xff] %vm19, 0.0
  $region17: #{_lambda_.18} parent=0 // pred_fallthru
    _
  %v28 = vld [vmem:[#allocation2] sm:$0xff]
  %v29 = vld [vmem:[#allocation2 + $0x8] sm:$0xff]
  %v30 = vld [vmem:[#allocation2 + $0x10] sm:$0xff]
  %v31 = vld [vmem:[#allocation2 + $0x18] sm:$0xff]
  %v32 = vld [vmem:[#allocation2 + $0x20] sm:$0xff]
  %v33 = vld [vmem:[#allocation2 + $0x28] sm:$0xff]
  %v34 = vld [vmem:[#allocation2 + $0x30] sm:$0xff]
  %v35 = vld [vmem:[#allocation2 + $0x38] sm:$0xff]
  %v36 = vld [vmem:[%s0] sm:$0xf]
  %v37 = vld [vmem:[%s0 + $0x4] sm:$0xf]
  %v38 = vld [vmem:[%s0 + $0x8] sm:$0xf]
  %v39 = vld [vmem:[%s0 + $0xc] sm:$0xf]
  %v40 = vld [vmem:[%s0 + $0x10] sm:$0xf]
  %v41 = vld [vmem:[%s0 + $0x14] sm:$0xf]
  %v42 = vld [vmem:[%s0 + $0x18] sm:$0xf]
  %v43 = vld [vmem:[%s0 + $0x1c] sm:$0xf]
  %v44 = vld [vmem:[%s1] sm:$0xf]
  %v45 = vld [vmem:[%s1 + $0x4] sm:$0xf]
  %v46 = vld [vmem:[%s1 + $0x8] sm:$0xf]
  %v47 = vld [vmem:[%s1 + $0xc] sm:$0xf]
  %v56 = vunpack.c.l.b16 %v36
  %v57 = vunpack.c.l.b16 %v37
  %v58 = vunpack.c.l.b16 %v38
  %v59 = vunpack.c.l.b16 %v39
  %v60 = vunpack.c.l.b16 %v40
  %v61 = vunpack.c.l.b16 %v41
  %v62 = vunpack.c.l.b16 %v42
  %v63 = vunpack.c.l.b16 %v43
  %v64 = vpack.c.b16 %v57, %v56
  %v65 = vpack.c.b16 %v59, %v58
  %v66 = vpack.c.b16 %v61, %v60
  %v67 = vpack.c.b16 %v63, %v62
  %v72 = vunpack.c.l.b16 %v44
  %v73 = vunpack.c.l.b16 %v45
  %v74 = vunpack.c.l.b16 %v46
  %v75 = vunpack.c.l.b16 %v47
  %v76 = vpack.c.b16 %v73, %v72
  %v77 = vpack.c.b16 %v75, %v74
  %vm80 = vcmask 261120
  %v82 = vsel %vm80, %v64, 0
  %v85 = vsel %vm80, %v65, 0
  %v88 = vsel %vm80, %v66, 0
  %v91 = vsel %vm80, %v67, 0
  %93 = vmatpush.bf16.msra.mxu0 0
  %94 = vmatpush.bf16.msra.mxu0 0
  %95 = vmatpush.bf16.msra.mxu0 0
  %96 = vmatpush.bf16.msra.mxu0 0
  %97 = vmatpush.bf16.msra.mxu0 0
  %98 = vmatpush.bf16.msra.mxu0 0
  %99 = vmatpush.bf16.msra.mxu0 %v77
  %100 = vmatpush.bf16.msra.mxu0 %v76
  %101 = vmatmul.bf16.gmra.mxu0 %v82
  %v102 = vpop.f32.mrf.mxu0
  %v103 = vadd.f32 0.0, %v102
  %v104 = vpop.f32.mrf.mxu0
  %v105 = vadd.f32 0.0, %v104
  %106 = vmatmul.bf16.gmra.mxu0 %v85
  %v107 = vpop.f32.mrf.mxu0
  %v108 = vadd.f32 0.0, %v107
  %v109 = vpop.f32.mrf.mxu0
  %v110 = vadd.f32 0.0, %v109
  %111 = vmatmul.bf16.gmra.mxu0 %v88
  %v112 = vpop.f32.mrf.mxu0
  %v113 = vadd.f32 0.0, %v112
  %v114 = vpop.f32.mrf.mxu0
  %v115 = vadd.f32 0.0, %v114
  %116 = vmatmul.bf16.gmra.mxu0 %v91
  %v117 = vpop.f32.mrf.mxu0
  %v118 = vadd.f32 0.0, %v117
  %v119 = vpop.f32.mrf.mxu0
  %v120 = vadd.f32 0.0, %v119
  %121 = vdwg.mxu0
  %v122 = vadd.f32 %v28, %v103
  %v123 = vadd.f32 %v29, %v105
  %v124 = vadd.f32 %v30, %v108
  %v125 = vadd.f32 %v31, %v110
  %v126 = vadd.f32 %v32, %v113
  %v127 = vadd.f32 %v33, %v115
  %v128 = vadd.f32 %v34, %v118
  %v129 = vadd.f32 %v35, %v120
  %130 = vst.msk [vmem:[#allocation2] sm:$0xff] %vm80, %v122
  %131 = vst.msk [vmem:[#allocation2 + $0x8] sm:$0xff] %vm80, %v123
  %132 = vst.msk [vmem:[#allocation2 + $0x10] sm:$0xff] %vm80, %v124
  %133 = vst.msk [vmem:[#allocation2 + $0x18] sm:$0xff] %vm80, %v125
  %134 = vst.msk [vmem:[#allocation2 + $0x20] sm:$0xff] %vm80, %v126
  %135 = vst.msk [vmem:[#allocation2 + $0x28] sm:$0xff] %vm80, %v127
  %136 = vst.msk [vmem:[#allocation2 + $0x30] sm:$0xff] %vm80, %v128
  %137 = vst.msk [vmem:[#allocation2 + $0x38] sm:$0xff] %vm80, %v129
  // Predicated region
  $region18: #{_lambda_.18} parent=0 // pred_check
    %p138 = pneg %p15
  $region19: #{_lambda_.18} parent=0 // pred_check_branch
    %140 = sbr.rel (%p138) target = $region21
  $region20: #{_lambda_.18} parent=0 // pred_region
    %v141 = vld [vmem:[#allocation2] sm:$0xff]
    %v142 = vld [vmem:[#allocation2 + $0x8] sm:$0xff]
    %v143 = vld [vmem:[#allocation2 + $0x10] sm:$0xff]
    %v144 = vld [vmem:[#allocation2 + $0x18] sm:$0xff]
    %v145 = vld [vmem:[#allocation2 + $0x20] sm:$0xff]
    %v146 = vld [vmem:[#allocation2 + $0x28] sm:$0xff]
    %v147 = vld [vmem:[#allocation2 + $0x30] sm:$0xff]
    %v148 = vld [vmem:[#allocation2 + $0x38] sm:$0xff]
    %v149 = vld [vmem:[%s2] sm:$0x1]
    %v151 = vperm.slane %v149, 0
    %v153 = vadd.f32 %v141, %v151
    %v154 = vadd.f32 %v142, %v151
    %v155 = vadd.f32 %v143, %v151
    %v156 = vadd.f32 %v144, %v151
    %v157 = vadd.f32 %v145, %v151
    %v158 = vadd.f32 %v146, %v151
    %v159 = vadd.f32 %v147, %v151
    %v160 = vadd.f32 %v148, %v151
    %v161 = vpack.c.bf16 %v153, %v153
    %v162 = vpack.c.bf16 %v154, %v154
    %v163 = vpack.c.bf16 %v155, %v155
    %v164 = vpack.c.bf16 %v156, %v156
    %v165 = vpack.c.bf16 %v157, %v157
    %v166 = vpack.c.bf16 %v158, %v158
    %v167 = vpack.c.bf16 %v159, %v159
    %v168 = vpack.c.bf16 %v160, %v160
    %vm169 = vcmask 257024
    %170 = vst.msk [vmem:[%s3] sm:$0xf] %vm169, %v161
    %171 = vst.msk [vmem:[%s3 + $0x4] sm:$0xf] %vm169, %v162
    %172 = vst.msk [vmem:[%s3 + $0x8] sm:$0xf] %vm169, %v163
    %173 = vst.msk [vmem:[%s3 + $0xc] sm:$0xf] %vm169, %v164
    %174 = vst.msk [vmem:[%s3 + $0x10] sm:$0xf] %vm169, %v165
    %175 = vst.msk [vmem:[%s3 + $0x14] sm:$0xf] %vm169, %v166
    %176 = vst.msk [vmem:[%s3 + $0x18] sm:$0xf] %vm169, %v167
    %177 = vst.msk [vmem:[%s3 + $0x1c] sm:$0xf] %vm169, %v168
  $region21: #{_lambda_.18} parent=0 // pred_fallthru
    _
  // Predicated region
  $region22: #{_lambda_.18} parent=0 // pred_check
    _
  $region23: #{_lambda_.18} parent=0 // pred_check_branch
    %179 = sbr.rel (0) target = $region25
  $region24: #{_lambda_.18} parent=0 // pred_region
    _
  $region25: #{_lambda_.18} parent=0 // pred_fallthru
    _
  // Predicated region
  $region26: #{_lambda_.18} parent=0 // pred_check
    _
  $region27: #{_lambda_.18} parent=0 // pred_check_branch
    %181 = sbr.rel (0) target = $region29
  $region28: #{_lambda_.18} parent=0 // pred_region
    _
  $region29: #{_lambda_.18} parent=0 // pred_fallthru
    _

// kernel: _lambda_.21
$region0: #{_lambda_.21}
  #allocation0 [shape = 'u32[]', space=smem, size = 0x4, offset = 0x4, fixed_abs, tag = 'smem constant byte address 0x4 - core index']
  #allocation1 [shape = 'u32[72,128]{1,0:T(1,128)}', space=vmem, size = 0x9000, scoped, tag = 'internal scratch']
  #allocation2 [shape = 'f32[64,32]{1,0:T(8,128)}', space=vmem, size = 0x8000, scoped, tag = 'scratch operand']
  %s0 = inlined_call_operand.vmem [shape: bf16[64,32], index: 0, kind: input, shape index: {}]
  %s1 = inlined_call_operand.vmem [shape: bf16[32,32], index: 1, kind: input, shape index: {}]
  %s2 = inlined_call_operand.vmem [shape: f32[1,32], index: 2, kind: input, shape index: {}]
  %s3 = inlined_call_operand.vmem [shape: bf16[64,32], index: 3, kind: input, shape index: {}]
  %s4 = inlined_call_operand.vmem [shape: f32[1,32], index: 4, kind: input, shape index: {}]
  %s5 = inlined_call_operand.vmem [shape: f32[1,32], index: 5, kind: input, shape index: {}]
  %s6 = inlined_call_operand.vmem [shape: bf16[64,32], index: 6, kind: output, shape index: {}]
  %s7 = sld [smem:[#allocation0]]
  $region42: #{_lambda_.21} parent=0
    _
  %s9 = ssub.s32 1, %s7
  %s10 = scalar_select 0, %s9, %s7
  // Predicated region
  $region2: #{_lambda_.21} parent=0 // pred_check
    _
  $region3: #{_lambda_.21} parent=0 // pred_check_branch
    %12 = sbr.rel (0) target = $region5
  $region4: #{_lambda_.21} parent=0 // pred_region
    _
  $region5: #{_lambda_.21} parent=0 // pred_fallthru
    _
  // Predicated region
  $region6: #{_lambda_.21} parent=0 // pred_check
    _
  $region7: #{_lambda_.21} parent=0 // pred_check_branch
    %14 = sbr.rel (0) target = $region9
  $region8: #{_lambda_.21} parent=0 // pred_region
    _
  $region9: #{_lambda_.21} parent=0 // pred_fallthru
    _
  // Predicated region
  $region10: #{_lambda_.21} parent=0 // pred_check
    _
  $region11: #{_lambda_.21} parent=0 // pred_check_branch
    %16 = sbr.rel (0) target = $region13
  $region12: #{_lambda_.21} parent=0 // pred_region
    _
  $region13: #{_lambda_.21} parent=0 // pred_fallthru
    _
  // Predicated region
  $region14: #{_lambda_.21} parent=0 // pred_check
    _
  $region15: #{_lambda_.21} parent=0 // pred_check_branch
    %18 = sbr.rel (0) target = $region17
  $region16: #{_lambda_.21} parent=0 // pred_region
    _
  $region17: #{_lambda_.21} parent=0 // pred_fallthru
    _
  // Predicated region
  $region18: #{_lambda_.21} parent=0 // pred_check
    _
  $region19: #{_lambda_.21} parent=0 // pred_check_branch
    %20 = sbr.rel (0) target = $region21
  $region20: #{_lambda_.21} parent=0 // pred_region
    _
  $region21: #{_lambda_.21} parent=0 // pred_fallthru
    _
  // Predicated region
  $region22: #{_lambda_.21} parent=0 // pred_check
    _
  $region23: #{_lambda_.21} parent=0 // pred_check_branch
    %22 = sbr.rel (0) target = $region25
  $region24: #{_lambda_.21} parent=0 // pred_region
    _
  $region25: #{_lambda_.21} parent=0 // pred_fallthru
    _
  %p24 = scmp.eq.s32.totalorder 0, 0
  // Predicated region
  $region26: #{_lambda_.21} parent=0 // pred_check
    %p25 = pneg %p24
  $region27: #{_lambda_.21} parent=0 // pred_check_branch
    %27 = sbr.rel (%p25) target = $region29
  $region28: #{_lambda_.21} parent=0 // pred_region
    %vm28 = vcmask 261120
    %29 = vst.msk [vmem:[#allocation2] sm:$0xff] %vm28, 0.0
    %30 = vst.msk [vmem:[#allocation2 + $0x8] sm:$0xff] %vm28, 0.0
    %31 = vst.msk [vmem:[#allocation2 + $0x10] sm:$0xff] %vm28, 0.0
    %32 = vst.msk [vmem:[#allocation2 + $0x18] sm:$0xff] %vm28, 0.0
    %33 = vst.msk [vmem:[#allocation2 + $0x20] sm:$0xff] %vm28, 0.0
    %34 = vst.msk [vmem:[#allocation2 + $0x28] sm:$0xff] %vm28, 0.0
    %35 = vst.msk [vmem:[#allocation2 + $0x30] sm:$0xff] %vm28, 0.0
    %36 = vst.msk [vmem:[#allocation2 + $0x38] sm:$0xff] %vm28, 0.0
  $region29: #{_lambda_.21} parent=0 // pred_fallthru
    _
  %v37 = vld [vmem:[#allocation2] sm:$0xff]
  %v38 = vld [vmem:[#allocation2 + $0x8] sm:$0xff]
  %v39 = vld [vmem:[#allocation2 + $0x10] sm:$0xff]
  %v40 = vld [vmem:[#allocation2 + $0x18] sm:$0xff]
  %v41 = vld [vmem:[#allocation2 + $0x20] sm:$0xff]
  %v42 = vld [vmem:[#allocation2 + $0x28] sm:$0xff]
  %v43 = vld [vmem:[#allocation2 + $0x30] sm:$0xff]
  %v44 = vld [vmem:[#allocation2 + $0x38] sm:$0xff]
  %v45 = vld [vmem:[%s0] sm:$0xf]
  %v46 = vld [vmem:[%s0 + $0x4] sm:$0xf]
  %v47 = vld [vmem:[%s0 + $0x8] sm:$0xf]
  %v48 = vld [vmem:[%s0 + $0xc] sm:$0xf]
  %v49 = vld [vmem:[%s0 + $0x10] sm:$0xf]
  %v50 = vld [vmem:[%s0 + $0x14] sm:$0xf]
  %v51 = vld [vmem:[%s0 + $0x18] sm:$0xf]
  %v52 = vld [vmem:[%s0 + $0x1c] sm:$0xf]
  %v53 = vld [vmem:[%s1] sm:$0xf]
  %v54 = vld [vmem:[%s1 + $0x4] sm:$0xf]
  %v55 = vld [vmem:[%s1 + $0x8] sm:$0xf]
  %v56 = vld [vmem:[%s1 + $0xc] sm:$0xf]
  %v65 = vunpack.c.l.b16 %v45
  %v66 = vunpack.c.l.b16 %v46
  %v67 = vunpack.c.l.b16 %v47
  %v68 = vunpack.c.l.b16 %v48
  %v69 = vunpack.c.l.b16 %v49
  %v70 = vunpack.c.l.b16 %v50
  %v71 = vunpack.c.l.b16 %v51
  %v72 = vunpack.c.l.b16 %v52
  %v73 = vpack.c.b16 %v66, %v65
  %v74 = vpack.c.b16 %v68, %v67
  %v75 = vpack.c.b16 %v70, %v69
  %v76 = vpack.c.b16 %v72, %v71
  %v81 = vunpack.c.l.b16 %v53
  %v82 = vunpack.c.l.b16 %v54
  %v83 = vunpack.c.l.b16 %v55
  %v84 = vunpack.c.l.b16 %v56
  %v85 = vpack.c.b16 %v82, %v81
  %v86 = vpack.c.b16 %v84, %v83
  %vm89 = vcmask 261120
  %v91 = vsel %vm89, %v73, 0
  %v94 = vsel %vm89, %v74, 0
  %v97 = vsel %vm89, %v75, 0
  %v100 = vsel %vm89, %v76, 0
  %102 = vmatpush.bf16.msra.mxu0 0
  %103 = vmatpush.bf16.msra.mxu0 0
  %104 = vmatpush.bf16.msra.mxu0 0
  %105 = vmatpush.bf16.msra.mxu0 0
  %106 = vmatpush.bf16.msra.mxu0 0
  %107 = vmatpush.bf16.msra.mxu0 0
  %108 = vmatpush.bf16.msra.mxu0 %v86
  %109 = vmatpush.bf16.msra.mxu0 %v85
  %110 = vmatmul.bf16.gmra.mxu0 %v91
  %v111 = vpop.f32.mrf.mxu0
  %v112 = vadd.f32 0.0, %v111
  %v113 = vpop.f32.mrf.mxu0
  %v114 = vadd.f32 0.0, %v113
  %115 = vmatmul.bf16.gmra.mxu0 %v94
  %v116 = vpop.f32.mrf.mxu0
  %v117 = vadd.f32 0.0, %v116
  %v118 = vpop.f32.mrf.mxu0
  %v119 = vadd.f32 0.0, %v118
  %120 = vmatmul.bf16.gmra.mxu0 %v97
  %v121 = vpop.f32.mrf.mxu0
  %v122 = vadd.f32 0.0, %v121
  %v123 = vpop.f32.mrf.mxu0
  %v124 = vadd.f32 0.0, %v123
  %125 = vmatmul.bf16.gmra.mxu0 %v100
  %v126 = vpop.f32.mrf.mxu0
  %v127 = vadd.f32 0.0, %v126
  %v128 = vpop.f32.mrf.mxu0
  %v129 = vadd.f32 0.0, %v128
  %130 = vdwg.mxu0
  %v131 = vadd.f32 %v37, %v112
  %v132 = vadd.f32 %v38, %v114
  %v133 = vadd.f32 %v39, %v117
  %v134 = vadd.f32 %v40, %v119
  %v135 = vadd.f32 %v41, %v122
  %v136 = vadd.f32 %v42, %v124
  %v137 = vadd.f32 %v43, %v127
  %v138 = vadd.f32 %v44, %v129
  %139 = vst.msk [vmem:[#allocation2] sm:$0xff] %vm89, %v131
  %140 = vst.msk [vmem:[#allocation2 + $0x8] sm:$0xff] %vm89, %v132
  %141 = vst.msk [vmem:[#allocation2 + $0x10] sm:$0xff] %vm89, %v133
  %142 = vst.msk [vmem:[#allocation2 + $0x18] sm:$0xff] %vm89, %v134
  %143 = vst.msk [vmem:[#allocation2 + $0x20] sm:$0xff] %vm89, %v135
  %144 = vst.msk [vmem:[#allocation2 + $0x28] sm:$0xff] %vm89, %v136
  %145 = vst.msk [vmem:[#allocation2 + $0x30] sm:$0xff] %vm89, %v137
  %146 = vst.msk [vmem:[#allocation2 + $0x38] sm:$0xff] %vm89, %v138
  // Predicated region
  $region30: #{_lambda_.21} parent=0 // pred_check
    %p147 = pneg %p24
  $region31: #{_lambda_.21} parent=0 // pred_check_branch
    %149 = sbr.rel (%p147) target = $region33
  $region32: #{_lambda_.21} parent=0 // pred_region
    %v150 = vld [vmem:[#allocation2] sm:$0xff]
    %v151 = vld [vmem:[#allocation2 + $0x8] sm:$0xff]
    %v152 = vld [vmem:[#allocation2 + $0x10] sm:$0xff]
    %v153 = vld [vmem:[#allocation2 + $0x18] sm:$0xff]
    %v154 = vld [vmem:[#allocation2 + $0x20] sm:$0xff]
    %v155 = vld [vmem:[#allocation2 + $0x28] sm:$0xff]
    %v156 = vld [vmem:[#allocation2 + $0x30] sm:$0xff]
    %v157 = vld [vmem:[#allocation2 + $0x38] sm:$0xff]
    %v158 = vld [vmem:[%s2] sm:$0x1]
    %v160 = vperm.slane %v158, 0
    %v162 = vadd.f32 %v150, %v160
    %v163 = vadd.f32 %v151, %v160
    %v164 = vadd.f32 %v152, %v160
    %v165 = vadd.f32 %v153, %v160
    %v166 = vadd.f32 %v154, %v160
    %v167 = vadd.f32 %v155, %v160
    %v168 = vadd.f32 %v156, %v160
    %v169 = vadd.f32 %v157, %v160
    %v170 = vld [vmem:[%s3] sm:$0xf]
    %v171 = vld [vmem:[%s3 + $0x4] sm:$0xf]
    %v172 = vld [vmem:[%s3 + $0x8] sm:$0xf]
    %v173 = vld [vmem:[%s3 + $0xc] sm:$0xf]
    %v174 = vld [vmem:[%s3 + $0x10] sm:$0xf]
    %v175 = vld [vmem:[%s3 + $0x14] sm:$0xf]
    %v176 = vld [vmem:[%s3 + $0x18] sm:$0xf]
    %v177 = vld [vmem:[%s3 + $0x1c] sm:$0xf]
    %v178 = vunpack.c.l.bf16 %v170
    %v179 = vunpack.c.l.bf16 %v171
    %v180 = vunpack.c.l.bf16 %v172
    %v181 = vunpack.c.l.bf16 %v173
    %v182 = vunpack.c.l.bf16 %v174
    %v183 = vunpack.c.l.bf16 %v175
    %v184 = vunpack.c.l.bf16 %v176
    %v185 = vunpack.c.l.bf16 %v177
    %v186 = vadd.f32 %v162, %v178
    %v187 = vadd.f32 %v163, %v179
    %v188 = vadd.f32 %v164, %v180
    %v189 = vadd.f32 %v165, %v181
    %v190 = vadd.f32 %v166, %v182
    %v191 = vadd.f32 %v167, %v183
    %v192 = vadd.f32 %v168, %v184
    %v193 = vadd.f32 %v169, %v185
    %v194 = vsel %vm89, %v186, 0.0
    %195 = vadd.xlane.f32.xlu0 %v194
    %v196 = vpop.xlane.xlu0 %195
    %v197 = vsel %vm89, %v187, 0.0
    %198 = vadd.xlane.f32.xlu0 %v197
    %v199 = vpop.xlane.xlu0 %198
    %v200 = vsel %vm89, %v188, 0.0
    %201 = vadd.xlane.f32.xlu0 %v200
    %v202 = vpop.xlane.xlu0 %201
    %v203 = vsel %vm89, %v189, 0.0
    %204 = vadd.xlane.f32.xlu0 %v203
    %v205 = vpop.xlane.xlu0 %204
    %v206 = vsel %vm89, %v190, 0.0
    %207 = vadd.xlane.f32.xlu0 %v206
    %v208 = vpop.xlane.xlu0 %207
    %v209 = vsel %vm89, %v191, 0.0
    %210 = vadd.xlane.f32.xlu0 %v209
    %v211 = vpop.xlane.xlu0 %210
    %v212 = vsel %vm89, %v192, 0.0
    %213 = vadd.xlane.f32.xlu0 %v212
    %v214 = vpop.xlane.xlu0 %213
    %v215 = vsel %vm89, %v193, 0.0
    %216 = vadd.xlane.f32.xlu0 %v215
    %v217 = vpop.xlane.xlu0 %216
    %v218 = vrcp.pop 32.0
    %v219 = vmul.f32 32.0, %v218
    %v220 = vsub.f32 1.0, %v219
    %v221 = vmul.f32 %v218, %v220
    %v222 = vadd.f32 %v218, %v221
    %vm223 = vweird.f32 %v218
    %v224 = vsel %vm223, %v218, %v222
    %v225 = vmul.f32 %v196, %v224
    %v226 = vmul.f32 %v199, %v224
    %v227 = vmul.f32 %v202, %v224
    %v228 = vmul.f32 %v205, %v224
    %v229 = vmul.f32 %v208, %v224
    %v230 = vmul.f32 %v211, %v224
    %v231 = vmul.f32 %v214, %v224
    %v232 = vmul.f32 %v217, %v224
    %v233 = vsub.f32 %v186, %v225
    %v234 = vsub.f32 %v187, %v226
    %v235 = vsub.f32 %v188, %v227
    %v236 = vsub.f32 %v189, %v228
    %v237 = vsub.f32 %v190, %v229
    %v238 = vsub.f32 %v191, %v230
    %v239 = vsub.f32 %v192, %v231
    %v240 = vsub.f32 %v193, %v232
    %v241 = vmul.f32 %v233, %v233
    %v242 = vmul.f32 %v234, %v234
    %v243 = vmul.f32 %v235, %v235
    %v244 = vmul.f32 %v236, %v236
    %v245 = vmul.f32 %v237, %v237
    %v246 = vmul.f32 %v238, %v238
    %v247 = vmul.f32 %v239, %v239
    %v248 = vmul.f32 %v240, %v240
    %v249 = vsel %vm89, %v241, 0.0
    %250 = vadd.xlane.f32.xlu0 %v249
    %v251 = vpop.xlane.xlu0 %250
    %v252 = vsel %vm89, %v242, 0.0
    %253 = vadd.xlane.f32.xlu0 %v252
    %v254 = vpop.xlane.xlu0 %253
    %v255 = vsel %vm89, %v243, 0.0
    %256 = vadd.xlane.f32.xlu0 %v255
    %v257 = vpop.xlane.xlu0 %256
    %v258 = vsel %vm89, %v244, 0.0
    %259 = vadd.xlane.f32.xlu0 %v258
    %v260 = vpop.xlane.xlu0 %259
    %v261 = vsel %vm89, %v245, 0.0
    %262 = vadd.xlane.f32.xlu0 %v261
    %v263 = vpop.xlane.xlu0 %262
    %v264 = vsel %vm89, %v246, 0.0
    %265 = vadd.xlane.f32.xlu0 %v264
    %v266 = vpop.xlane.xlu0 %265
    %v267 = vsel %vm89, %v247, 0.0
    %268 = vadd.xlane.f32.xlu0 %v267
    %v269 = vpop.xlane.xlu0 %268
    %v270 = vsel %vm89, %v248, 0.0
    %271 = vadd.xlane.f32.xlu0 %v270
    %v272 = vpop.xlane.xlu0 %271
    %v273 = vmul.f32 %v251, %v224
    %v274 = vmul.f32 %v254, %v224
    %v275 = vmul.f32 %v257, %v224
    %v276 = vmul.f32 %v260, %v224
    %v277 = vmul.f32 %v263, %v224
    %v278 = vmul.f32 %v266, %v224
    %v279 = vmul.f32 %v269, %v224
    %v280 = vmul.f32 %v272, %v224
    %v281 = vadd.f32 %v273, 1e-05
    %v282 = vadd.f32 %v274, 1e-05
    %v283 = vadd.f32 %v275, 1e-05
    %v284 = vadd.f32 %v276, 1e-05
    %v285 = vadd.f32 %v277, 1e-05
    %v286 = vadd.f32 %v278, 1e-05
    %v287 = vadd.f32 %v279, 1e-05
    %v288 = vadd.f32 %v280, 1e-05
    %v289 = vrsqrt.pop %v281
    %v290 = vmul.f32 %v289, %v281
    %v291 = vmul.f32 %v290, %v289
    %v292 = vmul.f32 0.5, %v291
    %v293 = vsub.f32 1.5, %v292
    %v294 = vmul.f32 %v289, %v293
    %vm295 = vweird.f32 %v281
    %vm296 = vweird.f32 %v289
    %vm297 = vmor %vm295, %vm296
    %v298 = vsel %vm297, %v289, %v294
    %v299 = vrsqrt.pop %v282
    %v300 = vmul.f32 %v299, %v282
    %v301 = vmul.f32 %v300, %v299
    %v302 = vmul.f32 0.5, %v301
    %v303 = vsub.f32 1.5, %v302
    %v304 = vmul.f32 %v299, %v303
    %vm305 = vweird.f32 %v282
    %vm306 = vweird.f32 %v299
    %vm307 = vmor %vm305, %vm306
    %v308 = vsel %vm307, %v299, %v304
    %v309 = vrsqrt.pop %v283
    %v310 = vmul.f32 %v309, %v283
    %v311 = vmul.f32 %v310, %v309
    %v312 = vmul.f32 0.5, %v311
    %v313 = vsub.f32 1.5, %v312
    %v314 = vmul.f32 %v309, %v313
    %vm315 = vweird.f32 %v283
    %vm316 = vweird.f32 %v309
    %vm317 = vmor %vm315, %vm316
    %v318 = vsel %vm317, %v309, %v314
    %v319 = vrsqrt.pop %v284
    %v320 = vmul.f32 %v319, %v284
    %v321 = vmul.f32 %v320, %v319
    %v322 = vmul.f32 0.5, %v321
    %v323 = vsub.f32 1.5, %v322
    %v324 = vmul.f32 %v319, %v323
    %vm325 = vweird.f32 %v284
    %vm326 = vweird.f32 %v319
    %vm327 = vmor %vm325, %vm326
    %v328 = vsel %vm327, %v319, %v324
    %v329 = vrsqrt.pop %v285
    %v330 = vmul.f32 %v329, %v285
    %v331 = vmul.f32 %v330, %v329
    %v332 = vmul.f32 0.5, %v331
    %v333 = vsub.f32 1.5, %v332
    %v334 = vmul.f32 %v329, %v333
    %vm335 = vweird.f32 %v285
    %vm336 = vweird.f32 %v329
    %vm337 = vmor %vm335, %vm336
    %v338 = vsel %vm337, %v329, %v334
    %v339 = vrsqrt.pop %v286
    %v340 = vmul.f32 %v339, %v286
    %v341 = vmul.f32 %v340, %v339
    %v342 = vmul.f32 0.5, %v341
    %v343 = vsub.f32 1.5, %v342
    %v344 = vmul.f32 %v339, %v343
    %vm345 = vweird.f32 %v286
    %vm346 = vweird.f32 %v339
    %vm347 = vmor %vm345, %vm346
    %v348 = vsel %vm347, %v339, %v344
    %v349 = vrsqrt.pop %v287
    %v350 = vmul.f32 %v349, %v287
    %v351 = vmul.f32 %v350, %v349
    %v352 = vmul.f32 0.5, %v351
    %v353 = vsub.f32 1.5, %v352
    %v354 = vmul.f32 %v349, %v353
    %vm355 = vweird.f32 %v287
    %vm356 = vweird.f32 %v349
    %vm357 = vmor %vm355, %vm356
    %v358 = vsel %vm357, %v349, %v354
    %v359 = vrsqrt.pop %v288
    %v360 = vmul.f32 %v359, %v288
    %v361 = vmul.f32 %v360, %v359
    %v362 = vmul.f32 0.5, %v361
    %v363 = vsub.f32 1.5, %v362
    %v364 = vmul.f32 %v359, %v363
    %vm365 = vweird.f32 %v288
    %vm366 = vweird.f32 %v359
    %vm367 = vmor %vm365, %vm366
    %v368 = vsel %vm367, %v359, %v364
    %v369 = vmul.f32 %v233, %v298
    %v370 = vmul.f32 %v234, %v308
    %v371 = vmul.f32 %v235, %v318
    %v372 = vmul.f32 %v236, %v328
    %v373 = vmul.f32 %v237, %v338
    %v374 = vmul.f32 %v238, %v348
    %v375 = vmul.f32 %v239, %v358
    %v376 = vmul.f32 %v240, %v368
    %v377 = vld [vmem:[%s4] sm:$0x1]
    %v379 = vperm.slane %v377, 0
    %v381 = vmul.f32 %v369, %v379
    %v382 = vmul.f32 %v370, %v379
    %v383 = vmul.f32 %v371, %v379
    %v384 = vmul.f32 %v372, %v379
    %v385 = vmul.f32 %v373, %v379
    %v386 = vmul.f32 %v374, %v379
    %v387 = vmul.f32 %v375, %v379
    %v388 = vmul.f32 %v376, %v379
    %v389 = vld [vmem:[%s5] sm:$0x1]
    %v391 = vperm.slane %v389, 0
    %v393 = vadd.f32 %v381, %v391
    %v394 = vadd.f32 %v382, %v391
    %v395 = vadd.f32 %v383, %v391
    %v396 = vadd.f32 %v384, %v391
    %v397 = vadd.f32 %v385, %v391
    %v398 = vadd.f32 %v386, %v391
    %v399 = vadd.f32 %v387, %v391
    %v400 = vadd.f32 %v388, %v391
    %v401 = vpack.c.bf16 %v393, %v393
    %v402 = vpack.c.bf16 %v394, %v394
    %v403 = vpack.c.bf16 %v395, %v395
    %v404 = vpack.c.bf16 %v396, %v396
    %v405 = vpack.c.bf16 %v397, %v397
    %v406 = vpack.c.bf16 %v398, %v398
    %v407 = vpack.c.bf16 %v399, %v399
    %v408 = vpack.c.bf16 %v400, %v400
    %vm409 = vcmask 257024
    %410 = vst.msk [vmem:[%s6] sm:$0xf] %vm409, %v401
    %411 = vst.msk [vmem:[%s6 + $0x4] sm:$0xf] %vm409, %v402
    %412 = vst.msk [vmem:[%s6 + $0x8] sm:$0xf] %vm409, %v403
    %413 = vst.msk [vmem:[%s6 + $0xc] sm:$0xf] %vm409, %v404
    %414 = vst.msk [vmem:[%s6 + $0x10] sm:$0xf] %vm409, %v405
    %415 = vst.msk [vmem:[%s6 + $0x14] sm:$0xf] %vm409, %v406
    %416 = vst.msk [vmem:[%s6 + $0x18] sm:$0xf] %vm409, %v407
    %417 = vst.msk [vmem:[%s6 + $0x1c] sm:$0xf] %vm409, %v408
  $region33: #{_lambda_.21} parent=0 // pred_fallthru
    _
  // Predicated region
  $region34: #{_lambda_.21} parent=0 // pred_check
    _
  $region35: #{_lambda_.21} parent=0 // pred_check_branch
    %419 = sbr.rel (0) target = $region37
  $region36: #{_lambda_.21} parent=0 // pred_region
    _
  $region37: #{_lambda_.21} parent=0 // pred_fallthru
    _
  // Predicated region
  $region38: #{_lambda_.21} parent=0 // pred_check
    _
  $region39: #{_lambda_.21} parent=0 // pred_check_branch
    %421 = sbr.rel (0) target = $region41
  $region40: #{_lambda_.21} parent=0 // pred_region
    _
  $region41: #{_lambda_.21} parent=0 // pred_fallthru
    _

// kernel: _lambda_.25
$region0: #{_lambda_.25}
  #allocation0 [shape = 'u32[]', space=smem, size = 0x4, offset = 0x4, fixed_abs, tag = 'smem constant byte address 0x4 - core index']
  #allocation1 [shape = 'u32[72,128]{1,0:T(1,128)}', space=vmem, size = 0x9000, scoped, tag = 'internal scratch']
  %s0 = inlined_call_operand.vmem [shape: bf16[64,32], index: 0, kind: input, shape index: {}]
  %s1 = inlined_call_operand.vmem [shape: bf16[32,128], index: 1, kind: input, shape index: {}]
  %s2 = inlined_call_operand.vmem [shape: f32[1,128], index: 2, kind: input, shape index: {}]
  %s3 = inlined_call_operand.vmem [shape: bf16[128,32], index: 3, kind: input, shape index: {}]
  %s4 = inlined_call_operand.vmem [shape: f32[1,32], index: 4, kind: input, shape index: {}]
  %s5 = inlined_call_operand.vmem [shape: f32[1,32], index: 5, kind: input, shape index: {}]
  %s6 = inlined_call_operand.vmem [shape: f32[1,32], index: 6, kind: input, shape index: {}]
  %s7 = inlined_call_operand.vmem [shape: bf16[64,32], index: 7, kind: output, shape index: {}]
  %s8 = sld [smem:[#allocation0]]
  $region38: #{_lambda_.25} parent=0
    _
  %s10 = ssub.s32 1, %s8
  %s11 = scalar_select 0, %s10, %s8
  // Predicated region
  $region2: #{_lambda_.25} parent=0 // pred_check
    _
  $region3: #{_lambda_.25} parent=0 // pred_check_branch
    %13 = sbr.rel (0) target = $region5
  $region4: #{_lambda_.25} parent=0 // pred_region
    _
  $region5: #{_lambda_.25} parent=0 // pred_fallthru
    _
  // Predicated region
  $region6: #{_lambda_.25} parent=0 // pred_check
    _
  $region7: #{_lambda_.25} parent=0 // pred_check_branch
    %15 = sbr.rel (0) target = $region9
  $region8: #{_lambda_.25} parent=0 // pred_region
    _
  $region9: #{_lambda_.25} parent=0 // pred_fallthru
    _
  // Predicated region
  $region10: #{_lambda_.25} parent=0 // pred_check
    _
  $region11: #{_lambda_.25} parent=0 // pred_check_branch
    %17 = sbr.rel (0) target = $region13
  $region12: #{_lambda_.25} parent=0 // pred_region
    _
  $region13: #{_lambda_.25} parent=0 // pred_fallthru
    _
  // Predicated region
  $region14: #{_lambda_.25} parent=0 // pred_check
    _
  $region15: #{_lambda_.25} parent=0 // pred_check_branch
    %19 = sbr.rel (0) target = $region17
  $region16: #{_lambda_.25} parent=0 // pred_region
    _
  $region17: #{_lambda_.25} parent=0 // pred_fallthru
    _
  // Predicated region
  $region18: #{_lambda_.25} parent=0 // pred_check
    _
  $region19: #{_lambda_.25} parent=0 // pred_check_branch
    %21 = sbr.rel (0) target = $region21
  $region20: #{_lambda_.25} parent=0 // pred_region
    _
  $region21: #{_lambda_.25} parent=0 // pred_fallthru
    _
  // Predicated region
  $region22: #{_lambda_.25} parent=0 // pred_check
    _
  $region23: #{_lambda_.25} parent=0 // pred_check_branch
    %23 = sbr.rel (0) target = $region25
  $region24: #{_lambda_.25} parent=0 // pred_region
    _
  $region25: #{_lambda_.25} parent=0 // pred_fallthru
    _
  // Predicated region
  $region26: #{_lambda_.25} parent=0 // pred_check
    _
  $region27: #{_lambda_.25} parent=0 // pred_check_branch
    %25 = sbr.rel (0) target = $region29
  $region28: #{_lambda_.25} parent=0 // pred_region
    _
  $region29: #{_lambda_.25} parent=0 // pred_fallthru
    _
  %v27 = vld [vmem:[%s0] sm:$0xf]
  %v28 = vld [vmem:[%s0 + $0x4] sm:$0xf]
  %v29 = vld [vmem:[%s0 + $0x8] sm:$0xf]
  %v30 = vld [vmem:[%s0 + $0xc] sm:$0xf]
  %v31 = vld [vmem:[%s0 + $0x10] sm:$0xf]
  %v32 = vld [vmem:[%s0 + $0x14] sm:$0xf]
  %v33 = vld [vmem:[%s0 + $0x18] sm:$0xf]
  %v34 = vld [vmem:[%s0 + $0x1c] sm:$0xf]
  %v35 = vld [vmem:[%s1] sm:$0xf]
  %v36 = vld [vmem:[%s1 + $0x4] sm:$0xf]
  %v37 = vld [vmem:[%s1 + $0x8] sm:$0xf]
  %v38 = vld [vmem:[%s1 + $0xc] sm:$0xf]
  %v39 = vld [vmem:[%s2] sm:$0x1]
  %v41 = vperm.slane %v39, 0
  %v51 = vunpack.c.l.b16 %v27
  %v52 = vunpack.c.l.b16 %v28
  %v53 = vunpack.c.l.b16 %v29
  %v54 = vunpack.c.l.b16 %v30
  %v55 = vunpack.c.l.b16 %v31
  %v56 = vunpack.c.l.b16 %v32
  %v57 = vunpack.c.l.b16 %v33
  %v58 = vunpack.c.l.b16 %v34
  %v59 = vpack.c.b16 %v52, %v51
  %v60 = vpack.c.b16 %v54, %v53
  %v61 = vpack.c.b16 %v56, %v55
  %v62 = vpack.c.b16 %v58, %v57
  %v67 = vunpack.c.l.b16 %v35
  %v68 = vunpack.c.l.b16 %v36
  %v69 = vunpack.c.l.b16 %v37
  %v70 = vunpack.c.l.b16 %v38
  %v71 = vpack.c.b16 %v68, %v67
  %v72 = vpack.c.b16 %v70, %v69
  %vm75 = vcmask 261120
  %v77 = vsel %vm75, %v59, 0
  %v80 = vsel %vm75, %v60, 0
  %v83 = vsel %vm75, %v61, 0
  %v86 = vsel %vm75, %v62, 0
  %88 = vmatpush.bf16.msra.mxu0 0
  %89 = vmatpush.bf16.msra.mxu0 0
  %90 = vmatpush.bf16.msra.mxu0 0
  %91 = vmatpush.bf16.msra.mxu0 0
  %92 = vmatpush.bf16.msra.mxu0 0
  %93 = vmatpush.bf16.msra.mxu0 0
  %94 = vmatpush.bf16.msra.mxu0 %v72
  %95 = vmatpush.bf16.msra.mxu0 %v71
  %96 = vmatmul.bf16.gmra.mxu0 %v77
  %v97 = vpop.f32.mrf.mxu0
  %v98 = vadd.f32 %v41, %v97
  %v99 = vpop.f32.mrf.mxu0
  %v100 = vadd.f32 %v41, %v99
  %101 = vmatmul.bf16.gmra.mxu0 %v80
  %v102 = vpop.f32.mrf.mxu0
  %v103 = vadd.f32 %v41, %v102
  %v104 = vpop.f32.mrf.mxu0
  %v105 = vadd.f32 %v41, %v104
  %106 = vmatmul.bf16.gmra.mxu0 %v83
  %v107 = vpop.f32.mrf.mxu0
  %v108 = vadd.f32 %v41, %v107
  %v109 = vpop.f32.mrf.mxu0
  %v110 = vadd.f32 %v41, %v109
  %111 = vmatmul.bf16.gmra.mxu0 %v86
  %v112 = vpop.f32.mrf.mxu0
  %v113 = vadd.f32 %v41, %v112
  %v114 = vpop.f32.mrf.mxu0
  %v115 = vadd.f32 %v41, %v114
  %116 = vdwg.mxu0
  %v117 = vmax.f32 %v98, 0.0
  %v118 = vmax.f32 %v100, 0.0
  %v119 = vmax.f32 %v103, 0.0
  %v120 = vmax.f32 %v105, 0.0
  %v121 = vmax.f32 %v108, 0.0
  %v122 = vmax.f32 %v110, 0.0
  %v123 = vmax.f32 %v113, 0.0
  %v124 = vmax.f32 %v115, 0.0
  %v125 = vpack.c.bf16 %v118, %v117
  %v126 = vpack.c.bf16 %v120, %v119
  %v127 = vpack.c.bf16 %v122, %v121
  %v128 = vpack.c.bf16 %v124, %v123
  %v129 = vld [vmem:[%s3] sm:$0xf]
  %v130 = vld [vmem:[%s3 + $0x4] sm:$0xf]
  %v131 = vld [vmem:[%s3 + $0x8] sm:$0xf]
  %v132 = vld [vmem:[%s3 + $0xc] sm:$0xf]
  %v133 = vld [vmem:[%s3 + $0x10] sm:$0xf]
  %v134 = vld [vmem:[%s3 + $0x14] sm:$0xf]
  %v135 = vld [vmem:[%s3 + $0x18] sm:$0xf]
  %v136 = vld [vmem:[%s3 + $0x1c] sm:$0xf]
  %v137 = vld [vmem:[%s3 + $0x20] sm:$0xf]
  %v138 = vld [vmem:[%s3 + $0x24] sm:$0xf]
  %v139 = vld [vmem:[%s3 + $0x28] sm:$0xf]
  %v140 = vld [vmem:[%s3 + $0x2c] sm:$0xf]
  %v141 = vld [vmem:[%s3 + $0x30] sm:$0xf]
  %v142 = vld [vmem:[%s3 + $0x34] sm:$0xf]
  %v143 = vld [vmem:[%s3 + $0x38] sm:$0xf]
  %v144 = vld [vmem:[%s3 + $0x3c] sm:$0xf]
  %v145 = vld [vmem:[%s4] sm:$0x1]
  %v147 = vperm.slane %v145, 0
  %v165 = vunpack.c.l.b16 %v129
  %v166 = vunpack.c.l.b16 %v130
  %v167 = vunpack.c.l.b16 %v131
  %v168 = vunpack.c.l.b16 %v132
  %v169 = vunpack.c.l.b16 %v133
  %v170 = vunpack.c.l.b16 %v134
  %v171 = vunpack.c.l.b16 %v135
  %v172 = vunpack.c.l.b16 %v136
  %v173 = vunpack.c.l.b16 %v137
  %v174 = vunpack.c.l.b16 %v138
  %v175 = vunpack.c.l.b16 %v139
  %v176 = vunpack.c.l.b16 %v140
  %v177 = vunpack.c.l.b16 %v141
  %v178 = vunpack.c.l.b16 %v142
  %v179 = vunpack.c.l.b16 %v143
  %v180 = vunpack.c.l.b16 %v144
  %v181 = vpack.c.b16 %v166, %v165
  %v182 = vpack.c.b16 %v168, %v167
  %v183 = vpack.c.b16 %v170, %v169
  %v184 = vpack.c.b16 %v172, %v171
  %v185 = vpack.c.b16 %v174, %v173
  %v186 = vpack.c.b16 %v176, %v175
  %v187 = vpack.c.b16 %v178, %v177
  %v188 = vpack.c.b16 %v180, %v179
  %197 = vmatpush.bf16.msra.mxu0 %v188
  %198 = vmatpush.bf16.msra.mxu0 %v187
  %199 = vmatpush.bf16.msra.mxu0 %v186
  %200 = vmatpush.bf16.msra.mxu0 %v185
  %201 = vmatpush.bf16.msra.mxu0 %v184
  %202 = vmatpush.bf16.msra.mxu0 %v183
  %203 = vmatpush.bf16.msra.mxu0 %v182
  %204 = vmatpush.bf16.msra.mxu0 %v181
  %205 = vmatmul.bf16.gmra.mxu0 %v125
  %v206 = vpop.f32.mrf.mxu0
  %v207 = vadd.f32 %v147, %v206
  %v208 = vpop.f32.mrf.mxu0
  %v209 = vadd.f32 %v147, %v208
  %210 = vmatmul.bf16.gmra.mxu0 %v126
  %v211 = vpop.f32.mrf.mxu0
  %v212 = vadd.f32 %v147, %v211
  %v213 = vpop.f32.mrf.mxu0
  %v214 = vadd.f32 %v147, %v213
  %215 = vmatmul.bf16.gmra.mxu0 %v127
  %v216 = vpop.f32.mrf.mxu0
  %v217 = vadd.f32 %v147, %v216
  %v218 = vpop.f32.mrf.mxu0
  %v219 = vadd.f32 %v147, %v218
  %220 = vmatmul.bf16.gmra.mxu0 %v128
  %v221 = vpop.f32.mrf.mxu0
  %v222 = vadd.f32 %v147, %v221
  %v223 = vpop.f32.mrf.mxu0
  %v224 = vadd.f32 %v147, %v223
  %225 = vdwg.mxu0
  %v226 = vunpack.c.l.bf16 %v27
  %v227 = vunpack.c.l.bf16 %v28
  %v228 = vunpack.c.l.bf16 %v29
  %v229 = vunpack.c.l.bf16 %v30
  %v230 = vunpack.c.l.bf16 %v31
  %v231 = vunpack.c.l.bf16 %v32
  %v232 = vunpack.c.l.bf16 %v33
  %v233 = vunpack.c.l.bf16 %v34
  %v234 = vadd.f32 %v207, %v226
  %v235 = vadd.f32 %v209, %v227
  %v236 = vadd.f32 %v212, %v228
  %v237 = vadd.f32 %v214, %v229
  %v238 = vadd.f32 %v217, %v230
  %v239 = vadd.f32 %v219, %v231
  %v240 = vadd.f32 %v222, %v232
  %v241 = vadd.f32 %v224, %v233
  %v242 = vsel %vm75, %v234, 0.0
  %243 = vadd.xlane.f32.xlu0 %v242
  %v244 = vpop.xlane.xlu0 %243
  %v245 = vsel %vm75, %v235, 0.0
  %246 = vadd.xlane.f32.xlu0 %v245
  %v247 = vpop.xlane.xlu0 %246
  %v248 = vsel %vm75, %v236, 0.0
  %249 = vadd.xlane.f32.xlu0 %v248
  %v250 = vpop.xlane.xlu0 %249
  %v251 = vsel %vm75, %v237, 0.0
  %252 = vadd.xlane.f32.xlu0 %v251
  %v253 = vpop.xlane.xlu0 %252
  %v254 = vsel %vm75, %v238, 0.0
  %255 = vadd.xlane.f32.xlu0 %v254
  %v256 = vpop.xlane.xlu0 %255
  %v257 = vsel %vm75, %v239, 0.0
  %258 = vadd.xlane.f32.xlu0 %v257
  %v259 = vpop.xlane.xlu0 %258
  %v260 = vsel %vm75, %v240, 0.0
  %261 = vadd.xlane.f32.xlu0 %v260
  %v262 = vpop.xlane.xlu0 %261
  %v263 = vsel %vm75, %v241, 0.0
  %264 = vadd.xlane.f32.xlu0 %v263
  %v265 = vpop.xlane.xlu0 %264
  %v266 = vrcp.pop 32.0
  %v267 = vmul.f32 32.0, %v266
  %v268 = vsub.f32 1.0, %v267
  %v269 = vmul.f32 %v266, %v268
  %v270 = vadd.f32 %v266, %v269
  %vm271 = vweird.f32 %v266
  %v272 = vsel %vm271, %v266, %v270
  %v273 = vmul.f32 %v244, %v272
  %v274 = vmul.f32 %v247, %v272
  %v275 = vmul.f32 %v250, %v272
  %v276 = vmul.f32 %v253, %v272
  %v277 = vmul.f32 %v256, %v272
  %v278 = vmul.f32 %v259, %v272
  %v279 = vmul.f32 %v262, %v272
  %v280 = vmul.f32 %v265, %v272
  %v281 = vsub.f32 %v234, %v273
  %v282 = vsub.f32 %v235, %v274
  %v283 = vsub.f32 %v236, %v275
  %v284 = vsub.f32 %v237, %v276
  %v285 = vsub.f32 %v238, %v277
  %v286 = vsub.f32 %v239, %v278
  %v287 = vsub.f32 %v240, %v279
  %v288 = vsub.f32 %v241, %v280
  %v289 = vmul.f32 %v281, %v281
  %v290 = vmul.f32 %v282, %v282
  %v291 = vmul.f32 %v283, %v283
  %v292 = vmul.f32 %v284, %v284
  %v293 = vmul.f32 %v285, %v285
  %v294 = vmul.f32 %v286, %v286
  %v295 = vmul.f32 %v287, %v287
  %v296 = vmul.f32 %v288, %v288
  %v297 = vsel %vm75, %v289, 0.0
  %298 = vadd.xlane.f32.xlu0 %v297
  %v299 = vpop.xlane.xlu0 %298
  %v300 = vsel %vm75, %v290, 0.0
  %301 = vadd.xlane.f32.xlu0 %v300
  %v302 = vpop.xlane.xlu0 %301
  %v303 = vsel %vm75, %v291, 0.0
  %304 = vadd.xlane.f32.xlu0 %v303
  %v305 = vpop.xlane.xlu0 %304
  %v306 = vsel %vm75, %v292, 0.0
  %307 = vadd.xlane.f32.xlu0 %v306
  %v308 = vpop.xlane.xlu0 %307
  %v309 = vsel %vm75, %v293, 0.0
  %310 = vadd.xlane.f32.xlu0 %v309
  %v311 = vpop.xlane.xlu0 %310
  %v312 = vsel %vm75, %v294, 0.0
  %313 = vadd.xlane.f32.xlu0 %v312
  %v314 = vpop.xlane.xlu0 %313
  %v315 = vsel %vm75, %v295, 0.0
  %316 = vadd.xlane.f32.xlu0 %v315
  %v317 = vpop.xlane.xlu0 %316
  %v318 = vsel %vm75, %v296, 0.0
  %319 = vadd.xlane.f32.xlu0 %v318
  %v320 = vpop.xlane.xlu0 %319
  %v321 = vmul.f32 %v299, %v272
  %v322 = vmul.f32 %v302, %v272
  %v323 = vmul.f32 %v305, %v272
  %v324 = vmul.f32 %v308, %v272
  %v325 = vmul.f32 %v311, %v272
  %v326 = vmul.f32 %v314, %v272
  %v327 = vmul.f32 %v317, %v272
  %v328 = vmul.f32 %v320, %v272
  %v329 = vadd.f32 %v321, 1e-05
  %v330 = vadd.f32 %v322, 1e-05
  %v331 = vadd.f32 %v323, 1e-05
  %v332 = vadd.f32 %v324, 1e-05
  %v333 = vadd.f32 %v325, 1e-05
  %v334 = vadd.f32 %v326, 1e-05
  %v335 = vadd.f32 %v327, 1e-05
  %v336 = vadd.f32 %v328, 1e-05
  %v337 = vrsqrt.pop %v329
  %v338 = vmul.f32 %v337, %v329
  %v339 = vmul.f32 %v338, %v337
  %v340 = vmul.f32 0.5, %v339
  %v341 = vsub.f32 1.5, %v340
  %v342 = vmul.f32 %v337, %v341
  %vm343 = vweird.f32 %v329
  %vm344 = vweird.f32 %v337
  %vm345 = vmor %vm343, %vm344
  %v346 = vsel %vm345, %v337, %v342
  %v347 = vrsqrt.pop %v330
  %v348 = vmul.f32 %v347, %v330
  %v349 = vmul.f32 %v348, %v347
  %v350 = vmul.f32 0.5, %v349
  %v351 = vsub.f32 1.5, %v350
  %v352 = vmul.f32 %v347, %v351
  %vm353 = vweird.f32 %v330
  %vm354 = vweird.f32 %v347
  %vm355 = vmor %vm353, %vm354
  %v356 = vsel %vm355, %v347, %v352
  %v357 = vrsqrt.pop %v331
  %v358 = vmul.f32 %v357, %v331
  %v359 = vmul.f32 %v358, %v357
  %v360 = vmul.f32 0.5, %v359
  %v361 = vsub.f32 1.5, %v360
  %v362 = vmul.f32 %v357, %v361
  %vm363 = vweird.f32 %v331
  %vm364 = vweird.f32 %v357
  %vm365 = vmor %vm363, %vm364
  %v366 = vsel %vm365, %v357, %v362
  %v367 = vrsqrt.pop %v332
  %v368 = vmul.f32 %v367, %v332
  %v369 = vmul.f32 %v368, %v367
  %v370 = vmul.f32 0.5, %v369
  %v371 = vsub.f32 1.5, %v370
  %v372 = vmul.f32 %v367, %v371
  %vm373 = vweird.f32 %v332
  %vm374 = vweird.f32 %v367
  %vm375 = vmor %vm373, %vm374
  %v376 = vsel %vm375, %v367, %v372
  %v377 = vrsqrt.pop %v333
  %v378 = vmul.f32 %v377, %v333
  %v379 = vmul.f32 %v378, %v377
  %v380 = vmul.f32 0.5, %v379
  %v381 = vsub.f32 1.5, %v380
  %v382 = vmul.f32 %v377, %v381
  %vm383 = vweird.f32 %v333
  %vm384 = vweird.f32 %v377
  %vm385 = vmor %vm383, %vm384
  %v386 = vsel %vm385, %v377, %v382
  %v387 = vrsqrt.pop %v334
  %v388 = vmul.f32 %v387, %v334
  %v389 = vmul.f32 %v388, %v387
  %v390 = vmul.f32 0.5, %v389
  %v391 = vsub.f32 1.5, %v390
  %v392 = vmul.f32 %v387, %v391
  %vm393 = vweird.f32 %v334
  %vm394 = vweird.f32 %v387
  %vm395 = vmor %vm393, %vm394
  %v396 = vsel %vm395, %v387, %v392
  %v397 = vrsqrt.pop %v335
  %v398 = vmul.f32 %v397, %v335
  %v399 = vmul.f32 %v398, %v397
  %v400 = vmul.f32 0.5, %v399
  %v401 = vsub.f32 1.5, %v400
  %v402 = vmul.f32 %v397, %v401
  %vm403 = vweird.f32 %v335
  %vm404 = vweird.f32 %v397
  %vm405 = vmor %vm403, %vm404
  %v406 = vsel %vm405, %v397, %v402
  %v407 = vrsqrt.pop %v336
  %v408 = vmul.f32 %v407, %v336
  %v409 = vmul.f32 %v408, %v407
  %v410 = vmul.f32 0.5, %v409
  %v411 = vsub.f32 1.5, %v410
  %v412 = vmul.f32 %v407, %v411
  %vm413 = vweird.f32 %v336
  %vm414 = vweird.f32 %v407
  %vm415 = vmor %vm413, %vm414
  %v416 = vsel %vm415, %v407, %v412
  %v417 = vmul.f32 %v281, %v346
  %v418 = vmul.f32 %v282, %v356
  %v419 = vmul.f32 %v283, %v366
  %v420 = vmul.f32 %v284, %v376
  %v421 = vmul.f32 %v285, %v386
  %v422 = vmul.f32 %v286, %v396
  %v423 = vmul.f32 %v287, %v406
  %v424 = vmul.f32 %v288, %v416
  %v425 = vld [vmem:[%s5] sm:$0x1]
  %v427 = vperm.slane %v425, 0
  %v429 = vmul.f32 %v417, %v427
  %v430 = vmul.f32 %v418, %v427
  %v431 = vmul.f32 %v419, %v427
  %v432 = vmul.f32 %v420, %v427
  %v433 = vmul.f32 %v421, %v427
  %v434 = vmul.f32 %v422, %v427
  %v435 = vmul.f32 %v423, %v427
  %v436 = vmul.f32 %v424, %v427
  %v437 = vld [vmem:[%s6] sm:$0x1]
  %v439 = vperm.slane %v437, 0
  %v441 = vadd.f32 %v429, %v439
  %v442 = vadd.f32 %v430, %v439
  %v443 = vadd.f32 %v431, %v439
  %v444 = vadd.f32 %v432, %v439
  %v445 = vadd.f32 %v433, %v439
  %v446 = vadd.f32 %v434, %v439
  %v447 = vadd.f32 %v435, %v439
  %v448 = vadd.f32 %v436, %v439
  %v449 = vpack.c.bf16 %v441, %v441
  %v450 = vpack.c.bf16 %v442, %v442
  %v451 = vpack.c.bf16 %v443, %v443
  %v452 = vpack.c.bf16 %v444, %v444
  %v453 = vpack.c.bf16 %v445, %v445
  %v454 = vpack.c.bf16 %v446, %v446
  %v455 = vpack.c.bf16 %v447, %v447
  %v456 = vpack.c.bf16 %v448, %v448
  %vm457 = vcmask 257024
  %458 = vst.msk [vmem:[%s7] sm:$0xf] %vm457, %v449
  %459 = vst.msk [vmem:[%s7 + $0x4] sm:$0xf] %vm457, %v450
  %460 = vst.msk [vmem:[%s7 + $0x8] sm:$0xf] %vm457, %v451
  %461 = vst.msk [vmem:[%s7 + $0xc] sm:$0xf] %vm457, %v452
  %462 = vst.msk [vmem:[%s7 + $0x10] sm:$0xf] %vm457, %v453
  %463 = vst.msk [vmem:[%s7 + $0x14] sm:$0xf] %vm457, %v454
  %464 = vst.msk [vmem:[%s7 + $0x18] sm:$0xf] %vm457, %v455
  %465 = vst.msk [vmem:[%s7 + $0x1c] sm:$0xf] %vm457, %v456
  // Predicated region
  $region30: #{_lambda_.25} parent=0 // pred_check
    _
  $region31: #{_lambda_.25} parent=0 // pred_check_branch
    %467 = sbr.rel (0) target = $region33
  $region32: #{_lambda_.25} parent=0 // pred_region
    _
  $region33: #{_lambda_.25} parent=0 // pred_fallthru
    _
  // Predicated region
  $region34: #{_lambda_.25} parent=0 // pred_check
    _
  $region35: #{_lambda_.25} parent=0 // pred_check_branch
    %469 = sbr.rel (0) target = $region37
  $region36: #{_lambda_.25} parent=0 // pred_region
    _
  $region37: #{_lambda_.25} parent=0 // pred_fallthru
    _

// kernel: _lambda_.20
$region0: #{_lambda_.20}
  #allocation0 [shape = 'u32[]', space=smem, size = 0x4, offset = 0x4, fixed_abs, tag = 'smem constant byte address 0x4 - core index']
  #allocation1 [shape = 'u32[72,128]{1,0:T(1,128)}', space=vmem, size = 0x9000, scoped, tag = 'internal scratch']
  %s0 = inlined_call_operand.vmem [shape: bf16[8,8,32], index: 0, kind: input, shape index: {}]
  %s1 = inlined_call_operand.vmem [shape: bf16[8,8,32], index: 1, kind: input, shape index: {}]
  %s2 = inlined_call_operand.vmem [shape: bf16[8,8,32], index: 2, kind: input, shape index: {}]
  %s3 = inlined_call_operand.vmem [shape: bf16[8,8,32], index: 3, kind: output, shape index: {}]
  %s4 = sld [smem:[#allocation0]]
  $region22: #{_lambda_.20} parent=0
    _
  %s6 = ssub.s32 1, %s4
  %s7 = scalar_select 0, %s6, %s4
  // Predicated region
  $region2: #{_lambda_.20} parent=0 // pred_check
    _
  $region3: #{_lambda_.20} parent=0 // pred_check_branch
    %9 = sbr.rel (0) target = $region5
  $region4: #{_lambda_.20} parent=0 // pred_region
    _
  $region5: #{_lambda_.20} parent=0 // pred_fallthru
    _
  // Predicated region
  $region6: #{_lambda_.20} parent=0 // pred_check
    _
  $region7: #{_lambda_.20} parent=0 // pred_check_branch
    %11 = sbr.rel (0) target = $region9
  $region8: #{_lambda_.20} parent=0 // pred_region
    _
  $region9: #{_lambda_.20} parent=0 // pred_fallthru
    _
  // Predicated region
  $region10: #{_lambda_.20} parent=0 // pred_check
    _
  $region11: #{_lambda_.20} parent=0 // pred_check_branch
    %13 = sbr.rel (0) target = $region13
  $region12: #{_lambda_.20} parent=0 // pred_region
    _
  $region13: #{_lambda_.20} parent=0 // pred_fallthru
    _
  %v15 = vld [vmem:[%s0] sm:$0xf]
  %v16 = vld [vmem:[%s0 + $0x4] sm:$0xf]
  %v17 = vld [vmem:[%s0 + $0x8] sm:$0xf]
  %v18 = vld [vmem:[%s0 + $0xc] sm:$0xf]
  %v19 = vld [vmem:[%s0 + $0x10] sm:$0xf]
  %v20 = vld [vmem:[%s0 + $0x14] sm:$0xf]
  %v21 = vld [vmem:[%s0 + $0x18] sm:$0xf]
  %v22 = vld [vmem:[%s0 + $0x1c] sm:$0xf]
  %v23 = vld [vmem:[%s1] sm:$0xf]
  %v24 = vld [vmem:[%s1 + $0x4] sm:$0xf]
  %v25 = vld [vmem:[%s1 + $0x8] sm:$0xf]
  %v26 = vld [vmem:[%s1 + $0xc] sm:$0xf]
  %v27 = vld [vmem:[%s1 + $0x10] sm:$0xf]
  %v28 = vld [vmem:[%s1 + $0x14] sm:$0xf]
  %v29 = vld [vmem:[%s1 + $0x18] sm:$0xf]
  %v30 = vld [vmem:[%s1 + $0x1c] sm:$0xf]
  %v31 = vld [vmem:[%s2] sm:$0xf]
  %v32 = vld [vmem:[%s2 + $0x4] sm:$0xf]
  %v33 = vld [vmem:[%s2 + $0x8] sm:$0xf]
  %v34 = vld [vmem:[%s2 + $0xc] sm:$0xf]
  %v35 = vld [vmem:[%s2 + $0x10] sm:$0xf]
  %v36 = vld [vmem:[%s2 + $0x14] sm:$0xf]
  %v37 = vld [vmem:[%s2 + $0x18] sm:$0xf]
  %v38 = vld [vmem:[%s2 + $0x1c] sm:$0xf]
  %vm39 = vcmask 64512
  %v41 = vsel %vm39, %v15, 0
  %v44 = vsel %vm39, %v23, 0
  %46 = vmatpush.bf16.xpose.msra.mxu0 0
  %47 = vmatpush.bf16.xpose.msra.mxu0 0
  %48 = vmatpush.bf16.xpose.msra.mxu0 0
  %49 = vmatpush.bf16.xpose.msra.mxu0 0
  %50 = vmatpush.bf16.xpose.msra.mxu0 0
  %51 = vmatpush.bf16.xpose.msra.mxu0 0
  %52 = vmatpush.bf16.xpose.msra.mxu0 0
  %53 = vmatpush.bf16.xpose.msra.mxu0 %v44
  %54 = vmatmul.bf16.gmra.mxu0 %v41
  %v55 = vpop.f32.mrf.mxu0
  %v56 = vadd.f32 0.0, %v55
  %v57 = vpop.f32.mrf.mxu0
  %58 = vdwg.mxu0
  %v60 = vsel %vm39, %v16, 0
  %v63 = vsel %vm39, %v24, 0
  %65 = vmatpush.bf16.xpose.msra.mxu0 0
  %66 = vmatpush.bf16.xpose.msra.mxu0 0
  %67 = vmatpush.bf16.xpose.msra.mxu0 0
  %68 = vmatpush.bf16.xpose.msra.mxu0 0
  %69 = vmatpush.bf16.xpose.msra.mxu0 0
  %70 = vmatpush.bf16.xpose.msra.mxu0 0
  %71 = vmatpush.bf16.xpose.msra.mxu0 0
  %72 = vmatpush.bf16.xpose.msra.mxu0 %v63
  %73 = vmatmul.bf16.gmra.mxu0 %v60
  %v74 = vpop.f32.mrf.mxu0
  %v75 = vadd.f32 0.0, %v74
  %v76 = vpop.f32.mrf.mxu0
  %77 = vdwg.mxu0
  %v79 = vsel %vm39, %v17, 0
  %v82 = vsel %vm39, %v25, 0
  %84 = vmatpush.bf16.xpose.msra.mxu0 0
  %85 = vmatpush.bf16.xpose.msra.mxu0 0
  %86 = vmatpush.bf16.xpose.msra.mxu0 0
  %87 = vmatpush.bf16.xpose.msra.mxu0 0
  %88 = vmatpush.bf16.xpose.msra.mxu0 0
  %89 = vmatpush.bf16.xpose.msra.mxu0 0
  %90 = vmatpush.bf16.xpose.msra.mxu0 0
  %91 = vmatpush.bf16.xpose.msra.mxu0 %v82
  %92 = vmatmul.bf16.gmra.mxu0 %v79
  %v93 = vpop.f32.mrf.mxu0
  %v94 = vadd.f32 0.0, %v93
  %v95 = vpop.f32.mrf.mxu0
  %96 = vdwg.mxu0
  %v98 = vsel %vm39, %v18, 0
  %v101 = vsel %vm39, %v26, 0
  %103 = vmatpush.bf16.xpose.msra.mxu0 0
  %104 = vmatpush.bf16.xpose.msra.mxu0 0
  %105 = vmatpush.bf16.xpose.msra.mxu0 0
  %106 = vmatpush.bf16.xpose.msra.mxu0 0
  %107 = vmatpush.bf16.xpose.msra.mxu0 0
  %108 = vmatpush.bf16.xpose.msra.mxu0 0
  %109 = vmatpush.bf16.xpose.msra.mxu0 0
  %110 = vmatpush.bf16.xpose.msra.mxu0 %v101
  %111 = vmatmul.bf16.gmra.mxu0 %v98
  %v112 = vpop.f32.mrf.mxu0
  %v113 = vadd.f32 0.0, %v112
  %v114 = vpop.f32.mrf.mxu0
  %115 = vdwg.mxu0
  %v117 = vsel %vm39, %v19, 0
  %v120 = vsel %vm39, %v27, 0
  %122 = vmatpush.bf16.xpose.msra.mxu0 0
  %123 = vmatpush.bf16.xpose.msra.mxu0 0
  %124 = vmatpush.bf16.xpose.msra.mxu0 0
  %125 = vmatpush.bf16.xpose.msra.mxu0 0
  %126 = vmatpush.bf16.xpose.msra.mxu0 0
  %127 = vmatpush.bf16.xpose.msra.mxu0 0
  %128 = vmatpush.bf16.xpose.msra.mxu0 0
  %129 = vmatpush.bf16.xpose.msra.mxu0 %v120
  %130 = vmatmul.bf16.gmra.mxu0 %v117
  %v131 = vpop.f32.mrf.mxu0
  %v132 = vadd.f32 0.0, %v131
  %v133 = vpop.f32.mrf.mxu0
  %134 = vdwg.mxu0
  %v136 = vsel %vm39, %v20, 0
  %v139 = vsel %vm39, %v28, 0
  %141 = vmatpush.bf16.xpose.msra.mxu0 0
  %142 = vmatpush.bf16.xpose.msra.mxu0 0
  %143 = vmatpush.bf16.xpose.msra.mxu0 0
  %144 = vmatpush.bf16.xpose.msra.mxu0 0
  %145 = vmatpush.bf16.xpose.msra.mxu0 0
  %146 = vmatpush.bf16.xpose.msra.mxu0 0
  %147 = vmatpush.bf16.xpose.msra.mxu0 0
  %148 = vmatpush.bf16.xpose.msra.mxu0 %v139
  %149 = vmatmul.bf16.gmra.mxu0 %v136
  %v150 = vpop.f32.mrf.mxu0
  %v151 = vadd.f32 0.0, %v150
  %v152 = vpop.f32.mrf.mxu0
  %153 = vdwg.mxu0
  %v155 = vsel %vm39, %v21, 0
  %v158 = vsel %vm39, %v29, 0
  %160 = vmatpush.bf16.xpose.msra.mxu0 0
  %161 = vmatpush.bf16.xpose.msra.mxu0 0
  %162 = vmatpush.bf16.xpose.msra.mxu0 0
  %163 = vmatpush.bf16.xpose.msra.mxu0 0
  %164 = vmatpush.bf16.xpose.msra.mxu0 0
  %165 = vmatpush.bf16.xpose.msra.mxu0 0
  %166 = vmatpush.bf16.xpose.msra.mxu0 0
  %167 = vmatpush.bf16.xpose.msra.mxu0 %v158
  %168 = vmatmul.bf16.gmra.mxu0 %v155
  %v169 = vpop.f32.mrf.mxu0
  %v170 = vadd.f32 0.0, %v169
  %v171 = vpop.f32.mrf.mxu0
  %172 = vdwg.mxu0
  %v174 = vsel %vm39, %v22, 0
  %v177 = vsel %vm39, %v30, 0
  %179 = vmatpush.bf16.xpose.msra.mxu0 0
  %180 = vmatpush.bf16.xpose.msra.mxu0 0
  %181 = vmatpush.bf16.xpose.msra.mxu0 0
  %182 = vmatpush.bf16.xpose.msra.mxu0 0
  %183 = vmatpush.bf16.xpose.msra.mxu0 0
  %184 = vmatpush.bf16.xpose.msra.mxu0 0
  %185 = vmatpush.bf16.xpose.msra.mxu0 0
  %186 = vmatpush.bf16.xpose.msra.mxu0 %v177
  %187 = vmatmul.bf16.gmra.mxu0 %v174
  %v188 = vpop.f32.mrf.mxu0
  %v189 = vadd.f32 0.0, %v188
  %v190 = vpop.f32.mrf.mxu0
  %191 = vdwg.mxu0
  %v192 = vmul.f32 %v56, 0.35355338
  %v193 = vmul.f32 %v75, 0.35355338
  %v194 = vmul.f32 %v94, 0.35355338
  %v195 = vmul.f32 %v113, 0.35355338
  %v196 = vmul.f32 %v132, 0.35355338
  %v197 = vmul.f32 %v151, 0.35355338
  %v198 = vmul.f32 %v170, 0.35355338
  %v199 = vmul.f32 %v189, 0.35355338
  %v200 = vsel %vm39, %v192, -inf
  %201 = vmax.xlane.f32.xlu0 %v200
  %v202 = vpop.xlane.xlu0 %201
  %v203 = vsel %vm39, %v193, -inf
  %204 = vmax.xlane.f32.xlu0 %v203
  %v205 = vpop.xlane.xlu0 %204
  %v206 = vsel %vm39, %v194, -inf
  %207 = vmax.xlane.f32.xlu0 %v206
  %v208 = vpop.xlane.xlu0 %207
  %v209 = vsel %vm39, %v195, -inf
  %210 = vmax.xlane.f32.xlu0 %v209
  %v211 = vpop.xlane.xlu0 %210
  %v212 = vsel %vm39, %v196, -inf
  %213 = vmax.xlane.f32.xlu0 %v212
  %v214 = vpop.xlane.xlu0 %213
  %v215 = vsel %vm39, %v197, -inf
  %216 = vmax.xlane.f32.xlu0 %v215
  %v217 = vpop.xlane.xlu0 %216
  %v218 = vsel %vm39, %v198, -inf
  %219 = vmax.xlane.f32.xlu0 %v218
  %v220 = vpop.xlane.xlu0 %219
  %v221 = vsel %vm39, %v199, -inf
  %222 = vmax.xlane.f32.xlu0 %v221
  %v223 = vpop.xlane.xlu0 %222
  %v224 = vsub.f32 %v192, %v202
  %v225 = vsub.f32 %v193, %v205
  %v226 = vsub.f32 %v194, %v208
  %v227 = vsub.f32 %v195, %v211
  %v228 = vsub.f32 %v196, %v214
  %v229 = vsub.f32 %v197, %v217
  %v230 = vsub.f32 %v198, %v220
  %v231 = vsub.f32 %v199, %v223
  %v232 = vmul.f32 %v224, 1.442695
  %v233 = vpow.pop %v232
  %v234 = vmul.f32 %v225, 1.442695
  %v235 = vpow.pop %v234
  %v236 = vmul.f32 %v226, 1.442695
  %v237 = vpow.pop %v236
  %v238 = vmul.f32 %v227, 1.442695
  %v239 = vpow.pop %v238
  %v240 = vmul.f32 %v228, 1.442695
  %v241 = vpow.pop %v240
  %v242 = vmul.f32 %v229, 1.442695
  %v243 = vpow.pop %v242
  %v244 = vmul.f32 %v230, 1.442695
  %v245 = vpow.pop %v244
  %v246 = vmul.f32 %v231, 1.442695
  %v247 = vpow.pop %v246
  %v248 = vsel %vm39, %v233, 0.0
  %249 = vadd.xlane.f32.xlu0 %v248
  %v250 = vpop.xlane.xlu0 %249
  %v251 = vsel %vm39, %v235, 0.0
  %252 = vadd.xlane.f32.xlu0 %v251
  %v253 = vpop.xlane.xlu0 %252
  %v254 = vsel %vm39, %v237, 0.0
  %255 = vadd.xlane.f32.xlu0 %v254
  %v256 = vpop.xlane.xlu0 %255
  %v257 = vsel %vm39, %v239, 0.0
  %258 = vadd.xlane.f32.xlu0 %v257
  %v259 = vpop.xlane.xlu0 %258
  %v260 = vsel %vm39, %v241, 0.0
  %261 = vadd.xlane.f32.xlu0 %v260
  %v262 = vpop.xlane.xlu0 %261
  %v263 = vsel %vm39, %v243, 0.0
  %264 = vadd.xlane.f32.xlu0 %v263
  %v265 = vpop.xlane.xlu0 %264
  %v266 = vsel %vm39, %v245, 0.0
  %267 = vadd.xlane.f32.xlu0 %v266
  %v268 = vpop.xlane.xlu0 %267
  %v269 = vsel %vm39, %v247, 0.0
  %270 = vadd.xlane.f32.xlu0 %v269
  %v271 = vpop.xlane.xlu0 %270
  %v272 = vrcp.pop %v250
  %v273 = vmul.f32 %v250, %v272
  %v274 = vsub.f32 1.0, %v273
  %v275 = vmul.f32 %v272, %v274
  %v276 = vadd.f32 %v272, %v275
  %vm277 = vweird.f32 %v250
  %vm278 = vweird.f32 %v272
  %vm279 = vmor %vm277, %vm278
  %v280 = vsel %vm279, %v272, %v276
  %v281 = vand.u32 2147483647, %v250
  %vm282 = vcmp.eq.f32.partialorder %v281, 8.507059e+37
  %v283 = vand.u32 %v250, 2147483648
  %v284 = vor.u32 1.1754944e-38, %v283
  %v285 = vsel %vm282, %v284, %v280
  %v286 = vmul.f32 %v233, %v285
  %v287 = vrcp.pop %v253
  %v288 = vmul.f32 %v253, %v287
  %v289 = vsub.f32 1.0, %v288
  %v290 = vmul.f32 %v287, %v289
  %v291 = vadd.f32 %v287, %v290
  %vm292 = vweird.f32 %v253
  %vm293 = vweird.f32 %v287
  %vm294 = vmor %vm292, %vm293
  %v295 = vsel %vm294, %v287, %v291
  %v296 = vand.u32 2147483647, %v253
  %vm297 = vcmp.eq.f32.partialorder %v296, 8.507059e+37
  %v298 = vand.u32 %v253, 2147483648
  %v299 = vor.u32 1.1754944e-38, %v298
  %v300 = vsel %vm297, %v299, %v295
  %v301 = vmul.f32 %v235, %v300
  %v302 = vrcp.pop %v256
  %v303 = vmul.f32 %v256, %v302
  %v304 = vsub.f32 1.0, %v303
  %v305 = vmul.f32 %v302, %v304
  %v306 = vadd.f32 %v302, %v305
  %vm307 = vweird.f32 %v256
  %vm308 = vweird.f32 %v302
  %vm309 = vmor %vm307, %vm308
  %v310 = vsel %vm309, %v302, %v306
  %v311 = vand.u32 2147483647, %v256
  %vm312 = vcmp.eq.f32.partialorder %v311, 8.507059e+37
  %v313 = vand.u32 %v256, 2147483648
  %v314 = vor.u32 1.1754944e-38, %v313
  %v315 = vsel %vm312, %v314, %v310
  %v316 = vmul.f32 %v237, %v315
  %v317 = vrcp.pop %v259
  %v318 = vmul.f32 %v259, %v317
  %v319 = vsub.f32 1.0, %v318
  %v320 = vmul.f32 %v317, %v319
  %v321 = vadd.f32 %v317, %v320
  %vm322 = vweird.f32 %v259
  %vm323 = vweird.f32 %v317
  %vm324 = vmor %vm322, %vm323
  %v325 = vsel %vm324, %v317, %v321
  %v326 = vand.u32 2147483647, %v259
  %vm327 = vcmp.eq.f32.partialorder %v326, 8.507059e+37
  %v328 = vand.u32 %v259, 2147483648
  %v329 = vor.u32 1.1754944e-38, %v328
  %v330 = vsel %vm327, %v329, %v325
  %v331 = vmul.f32 %v239, %v330
  %v332 = vrcp.pop %v262
  %v333 = vmul.f32 %v262, %v332
  %v334 = vsub.f32 1.0, %v333
  %v335 = vmul.f32 %v332, %v334
  %v336 = vadd.f32 %v332, %v335
  %vm337 = vweird.f32 %v262
  %vm338 = vweird.f32 %v332
  %vm339 = vmor %vm337, %vm338
  %v340 = vsel %vm339, %v332, %v336
  %v341 = vand.u32 2147483647, %v262
  %vm342 = vcmp.eq.f32.partialorder %v341, 8.507059e+37
  %v343 = vand.u32 %v262, 2147483648
  %v344 = vor.u32 1.1754944e-38, %v343
  %v345 = vsel %vm342, %v344, %v340
  %v346 = vmul.f32 %v241, %v345
  %v347 = vrcp.pop %v265
  %v348 = vmul.f32 %v265, %v347
  %v349 = vsub.f32 1.0, %v348
  %v350 = vmul.f32 %v347, %v349
  %v351 = vadd.f32 %v347, %v350
  %vm352 = vweird.f32 %v265
  %vm353 = vweird.f32 %v347
  %vm354 = vmor %vm352, %vm353
  %v355 = vsel %vm354, %v347, %v351
  %v356 = vand.u32 2147483647, %v265
  %vm357 = vcmp.eq.f32.partialorder %v356, 8.507059e+37
  %v358 = vand.u32 %v265, 2147483648
  %v359 = vor.u32 1.1754944e-38, %v358
  %v360 = vsel %vm357, %v359, %v355
  %v361 = vmul.f32 %v243, %v360
  %v362 = vrcp.pop %v268
  %v363 = vmul.f32 %v268, %v362
  %v364 = vsub.f32 1.0, %v363
  %v365 = vmul.f32 %v362, %v364
  %v366 = vadd.f32 %v362, %v365
  %vm367 = vweird.f32 %v268
  %vm368 = vweird.f32 %v362
  %vm369 = vmor %vm367, %vm368
  %v370 = vsel %vm369, %v362, %v366
  %v371 = vand.u32 2147483647, %v268
  %vm372 = vcmp.eq.f32.partialorder %v371, 8.507059e+37
  %v373 = vand.u32 %v268, 2147483648
  %v374 = vor.u32 1.1754944e-38, %v373
  %v375 = vsel %vm372, %v374, %v370
  %v376 = vmul.f32 %v245, %v375
  %v377 = vrcp.pop %v271
  %v378 = vmul.f32 %v271, %v377
  %v379 = vsub.f32 1.0, %v378
  %v380 = vmul.f32 %v377, %v379
  %v381 = vadd.f32 %v377, %v380
  %vm382 = vweird.f32 %v271
  %vm383 = vweird.f32 %v377
  %vm384 = vmor %vm382, %vm383
  %v385 = vsel %vm384, %v377, %v381
  %v386 = vand.u32 2147483647, %v271
  %vm387 = vcmp.eq.f32.partialorder %v386, 8.507059e+37
  %v388 = vand.u32 %v271, 2147483648
  %v389 = vor.u32 1.1754944e-38, %v388
  %v390 = vsel %vm387, %v389, %v385
  %v391 = vmul.f32 %v247, %v390
  %v392 = vpack.c.bf16 %v286, %v286
  %v393 = vpack.c.bf16 %v301, %v301
  %v394 = vpack.c.bf16 %v316, %v316
  %v395 = vpack.c.bf16 %v331, %v331
  %v396 = vpack.c.bf16 %v346, %v346
  %v397 = vpack.c.bf16 %v361, %v361
  %v398 = vpack.c.bf16 %v376, %v376
  %v399 = vpack.c.bf16 %v391, %v391
  %v401 = vsel %vm39, %v392, 0
  %vm403 = vcmask 1043456
  %v405 = vsel %vm403, %v31, 0
  %407 = vmatpush.bf16.msra.mxu0 0
  %408 = vmatpush.bf16.msra.mxu0 0
  %409 = vmatpush.bf16.msra.mxu0 0
  %410 = vmatpush.bf16.msra.mxu0 0
  %411 = vmatpush.bf16.msra.mxu0 0
  %412 = vmatpush.bf16.msra.mxu0 0
  %413 = vmatpush.bf16.msra.mxu0 0
  %414 = vmatpush.bf16.msra.mxu0 %v405
  %415 = vmatmul.bf16.gmra.mxu0 %v401
  %v416 = vpop.f32.mrf.mxu0
  %v417 = vadd.f32 0.0, %v416
  %v418 = vpop.f32.mrf.mxu0
  %419 = vdwg.mxu0
  %v421 = vsel %vm39, %v393, 0
  %v424 = vsel %vm403, %v32, 0
  %426 = vmatpush.bf16.msra.mxu0 0
  %427 = vmatpush.bf16.msra.mxu0 0
  %428 = vmatpush.bf16.msra.mxu0 0
  %429 = vmatpush.bf16.msra.mxu0 0
  %430 = vmatpush.bf16.msra.mxu0 0
  %431 = vmatpush.bf16.msra.mxu0 0
  %432 = vmatpush.bf16.msra.mxu0 0
  %433 = vmatpush.bf16.msra.mxu0 %v424
  %434 = vmatmul.bf16.gmra.mxu0 %v421
  %v435 = vpop.f32.mrf.mxu0
  %v436 = vadd.f32 0.0, %v435
  %v437 = vpop.f32.mrf.mxu0
  %438 = vdwg.mxu0
  %v440 = vsel %vm39, %v394, 0
  %v443 = vsel %vm403, %v33, 0
  %445 = vmatpush.bf16.msra.mxu0 0
  %446 = vmatpush.bf16.msra.mxu0 0
  %447 = vmatpush.bf16.msra.mxu0 0
  %448 = vmatpush.bf16.msra.mxu0 0
  %449 = vmatpush.bf16.msra.mxu0 0
  %450 = vmatpush.bf16.msra.mxu0 0
  %451 = vmatpush.bf16.msra.mxu0 0
  %452 = vmatpush.bf16.msra.mxu0 %v443
  %453 = vmatmul.bf16.gmra.mxu0 %v440
  %v454 = vpop.f32.mrf.mxu0
  %v455 = vadd.f32 0.0, %v454
  %v456 = vpop.f32.mrf.mxu0
  %457 = vdwg.mxu0
  %v459 = vsel %vm39, %v395, 0
  %v462 = vsel %vm403, %v34, 0
  %464 = vmatpush.bf16.msra.mxu0 0
  %465 = vmatpush.bf16.msra.mxu0 0
  %466 = vmatpush.bf16.msra.mxu0 0
  %467 = vmatpush.bf16.msra.mxu0 0
  %468 = vmatpush.bf16.msra.mxu0 0
  %469 = vmatpush.bf16.msra.mxu0 0
  %470 = vmatpush.bf16.msra.mxu0 0
  %471 = vmatpush.bf16.msra.mxu0 %v462
  %472 = vmatmul.bf16.gmra.mxu0 %v459
  %v473 = vpop.f32.mrf.mxu0
  %v474 = vadd.f32 0.0, %v473
  %v475 = vpop.f32.mrf.mxu0
  %476 = vdwg.mxu0
  %v478 = vsel %vm39, %v396, 0
  %v481 = vsel %vm403, %v35, 0
  %483 = vmatpush.bf16.msra.mxu0 0
  %484 = vmatpush.bf16.msra.mxu0 0
  %485 = vmatpush.bf16.msra.mxu0 0
  %486 = vmatpush.bf16.msra.mxu0 0
  %487 = vmatpush.bf16.msra.mxu0 0
  %488 = vmatpush.bf16.msra.mxu0 0
  %489 = vmatpush.bf16.msra.mxu0 0
  %490 = vmatpush.bf16.msra.mxu0 %v481
  %491 = vmatmul.bf16.gmra.mxu0 %v478
  %v492 = vpop.f32.mrf.mxu0
  %v493 = vadd.f32 0.0, %v492
  %v494 = vpop.f32.mrf.mxu0
  %495 = vdwg.mxu0
  %v497 = vsel %vm39, %v397, 0
  %v500 = vsel %vm403, %v36, 0
  %502 = vmatpush.bf16.msra.mxu0 0
  %503 = vmatpush.bf16.msra.mxu0 0
  %504 = vmatpush.bf16.msra.mxu0 0
  %505 = vmatpush.bf16.msra.mxu0 0
  %506 = vmatpush.bf16.msra.mxu0 0
  %507 = vmatpush.bf16.msra.mxu0 0
  %508 = vmatpush.bf16.msra.mxu0 0
  %509 = vmatpush.bf16.msra.mxu0 %v500
  %510 = vmatmul.bf16.gmra.mxu0 %v497
  %v511 = vpop.f32.mrf.mxu0
  %v512 = vadd.f32 0.0, %v511
  %v513 = vpop.f32.mrf.mxu0
  %514 = vdwg.mxu0
  %v516 = vsel %vm39, %v398, 0
  %v519 = vsel %vm403, %v37, 0
  %521 = vmatpush.bf16.msra.mxu0 0
  %522 = vmatpush.bf16.msra.mxu0 0
  %523 = vmatpush.bf16.msra.mxu0 0
  %524 = vmatpush.bf16.msra.mxu0 0
  %525 = vmatpush.bf16.msra.mxu0 0
  %526 = vmatpush.bf16.msra.mxu0 0
  %527 = vmatpush.bf16.msra.mxu0 0
  %528 = vmatpush.bf16.msra.mxu0 %v519
  %529 = vmatmul.bf16.gmra.mxu0 %v516
  %v530 = vpop.f32.mrf.mxu0
  %v531 = vadd.f32 0.0, %v530
  %v532 = vpop.f32.mrf.mxu0
  %533 = vdwg.mxu0
  %v535 = vsel %vm39, %v399, 0
  %v538 = vsel %vm403, %v38, 0
  %540 = vmatpush.bf16.msra.mxu0 0
  %541 = vmatpush.bf16.msra.mxu0 0
  %542 = vmatpush.bf16.msra.mxu0 0
  %543 = vmatpush.bf16.msra.mxu0 0
  %544 = vmatpush.bf16.msra.mxu0 0
  %545 = vmatpush.bf16.msra.mxu0 0
  %546 = vmatpush.bf16.msra.mxu0 0
  %547 = vmatpush.bf16.msra.mxu0 %v538
  %548 = vmatmul.bf16.gmra.mxu0 %v535
  %v549 = vpop.f32.mrf.mxu0
  %v550 = vadd.f32 0.0, %v549
  %v551 = vpop.f32.mrf.mxu0
  %552 = vdwg.mxu0
  %v553 = vpack.c.bf16 %v417, %v417
  %v554 = vpack.c.bf16 %v436, %v436
  %v555 = vpack.c.bf16 %v455, %v455
  %v556 = vpack.c.bf16 %v474, %v474
  %v557 = vpack.c.bf16 %v493, %v493
  %v558 = vpack.c.bf16 %v512, %v512
  %v559 = vpack.c.bf16 %v531, %v531
  %v560 = vpack.c.bf16 %v550, %v550
  %vm561 = vcmask 60416
  %562 = vst.msk [vmem:[%s3] sm:$0xf] %vm561, %v553
  %563 = vst.msk [vmem:[%s3 + $0x4] sm:$0xf] %vm561, %v554
  %564 = vst.msk [vmem:[%s3 + $0x8] sm:$0xf] %vm561, %v555
  %565 = vst.msk [vmem:[%s3 + $0xc] sm:$0xf] %vm561, %v556
  %566 = vst.msk [vmem:[%s3 + $0x10] sm:$0xf] %vm561, %v557
  %567 = vst.msk [vmem:[%s3 + $0x14] sm:$0xf] %vm561, %v558
  %568 = vst.msk [vmem:[%s3 + $0x18] sm:$0xf] %vm561, %v559
  %569 = vst.msk [vmem:[%s3 + $0x1c] sm:$0xf] %vm561, %v560
  %v571 = vunpack.c.l.b16 %v15
  %v572 = vpack.c.b16 %v571, %v571
  %573 = vrot.lane.b32.xlu0 %v572, 120
  %v574 = vpop.permute.xlu0 %573
  %v576 = vunpack.c.l.b16 %v23
  %v577 = vpack.c.b16 %v576, %v576
  %578 = vrot.lane.b32.xlu0 %v577, 120
  %v579 = vpop.permute.xlu0 %578
  %v581 = vsel %vm39, %v574, 0
  %v584 = vsel %vm39, %v579, 0
  %586 = vmatpush.bf16.xpose.msra.mxu0 0
  %587 = vmatpush.bf16.xpose.msra.mxu0 0
  %588 = vmatpush.bf16.xpose.msra.mxu0 0
  %589 = vmatpush.bf16.xpose.msra.mxu0 0
  %590 = vmatpush.bf16.xpose.msra.mxu0 0
  %591 = vmatpush.bf16.xpose.msra.mxu0 0
  %592 = vmatpush.bf16.xpose.msra.mxu0 0
  %593 = vmatpush.bf16.xpose.msra.mxu0 %v584
  %594 = vmatmul.bf16.gmra.mxu0 %v581
  %v595 = vpop.f32.mrf.mxu0
  %v596 = vadd.f32 0.0, %v595
  %v597 = vpop.f32.mrf.mxu0
  %598 = vdwg.mxu0
  %v600 = vunpack.c.l.b16 %v16
  %v601 = vpack.c.b16 %v600, %v600
  %602 = vrot.lane.b32.xlu0 %v601, 120
  %v603 = vpop.permute.xlu0 %602
  %v605 = vunpack.c.l.b16 %v24
  %v606 = vpack.c.b16 %v605, %v605
  %607 = vrot.lane.b32.xlu0 %v606, 120
  %v608 = vpop.permute.xlu0 %607
  %v610 = vsel %vm39, %v603, 0
  %v613 = vsel %vm39, %v608, 0
  %615 = vmatpush.bf16.xpose.msra.mxu0 0
  %616 = vmatpush.bf16.xpose.msra.mxu0 0
  %617 = vmatpush.bf16.xpose.msra.mxu0 0
  %618 = vmatpush.bf16.xpose.msra.mxu0 0
  %619 = vmatpush.bf16.xpose.msra.mxu0 0
  %620 = vmatpush.bf16.xpose.msra.mxu0 0
  %621 = vmatpush.bf16.xpose.msra.mxu0 0
  %622 = vmatpush.bf16.xpose.msra.mxu0 %v613
  %623 = vmatmul.bf16.gmra.mxu0 %v610
  %v624 = vpop.f32.mrf.mxu0
  %v625 = vadd.f32 0.0, %v624
  %v626 = vpop.f32.mrf.mxu0
  %627 = vdwg.mxu0
  %v629 = vunpack.c.l.b16 %v17
  %v630 = vpack.c.b16 %v629, %v629
  %631 = vrot.lane.b32.xlu0 %v630, 120
  %v632 = vpop.permute.xlu0 %631
  %v634 = vunpack.c.l.b16 %v25
  %v635 = vpack.c.b16 %v634, %v634
  %636 = vrot.lane.b32.xlu0 %v635, 120
  %v637 = vpop.permute.xlu0 %636
  %v639 = vsel %vm39, %v632, 0
  %v642 = vsel %vm39, %v637, 0
  %644 = vmatpush.bf16.xpose.msra.mxu0 0
  %645 = vmatpush.bf16.xpose.msra.mxu0 0
  %646 = vmatpush.bf16.xpose.msra.mxu0 0
  %647 = vmatpush.bf16.xpose.msra.mxu0 0
  %648 = vmatpush.bf16.xpose.msra.mxu0 0
  %649 = vmatpush.bf16.xpose.msra.mxu0 0
  %650 = vmatpush.bf16.xpose.msra.mxu0 0
  %651 = vmatpush.bf16.xpose.msra.mxu0 %v642
  %652 = vmatmul.bf16.gmra.mxu0 %v639
  %v653 = vpop.f32.mrf.mxu0
  %v654 = vadd.f32 0.0, %v653
  %v655 = vpop.f32.mrf.mxu0
  %656 = vdwg.mxu0
  %v658 = vunpack.c.l.b16 %v18
  %v659 = vpack.c.b16 %v658, %v658
  %660 = vrot.lane.b32.xlu0 %v659, 120
  %v661 = vpop.permute.xlu0 %660
  %v663 = vunpack.c.l.b16 %v26
  %v664 = vpack.c.b16 %v663, %v663
  %665 = vrot.lane.b32.xlu0 %v664, 120
  %v666 = vpop.permute.xlu0 %665
  %v668 = vsel %vm39, %v661, 0
  %v671 = vsel %vm39, %v666, 0
  %673 = vmatpush.bf16.xpose.msra.mxu0 0
  %674 = vmatpush.bf16.xpose.msra.mxu0 0
  %675 = vmatpush.bf16.xpose.msra.mxu0 0
  %676 = vmatpush.bf16.xpose.msra.mxu0 0
  %677 = vmatpush.bf16.xpose.msra.mxu0 0
  %678 = vmatpush.bf16.xpose.msra.mxu0 0
  %679 = vmatpush.bf16.xpose.msra.mxu0 0
  %680 = vmatpush.bf16.xpose.msra.mxu0 %v671
  %681 = vmatmul.bf16.gmra.mxu0 %v668
  %v682 = vpop.f32.mrf.mxu0
  %v683 = vadd.f32 0.0, %v682
  %v684 = vpop.f32.mrf.mxu0
  %685 = vdwg.mxu0
  %v687 = vunpack.c.l.b16 %v19
  %v688 = vpack.c.b16 %v687, %v687
  %689 = vrot.lane.b32.xlu0 %v688, 120
  %v690 = vpop.permute.xlu0 %689
  %v692 = vunpack.c.l.b16 %v27
  %v693 = vpack.c.b16 %v692, %v692
  %694 = vrot.lane.b32.xlu0 %v693, 120
  %v695 = vpop.permute.xlu0 %694
  %v697 = vsel %vm39, %v690, 0
  %v700 = vsel %vm39, %v695, 0
  %702 = vmatpush.bf16.xpose.msra.mxu0 0
  %703 = vmatpush.bf16.xpose.msra.mxu0 0
  %704 = vmatpush.bf16.xpose.msra.mxu0 0
  %705 = vmatpush.bf16.xpose.msra.mxu0 0
  %706 = vmatpush.bf16.xpose.msra.mxu0 0
  %707 = vmatpush.bf16.xpose.msra.mxu0 0
  %708 = vmatpush.bf16.xpose.msra.mxu0 0
  %709 = vmatpush.bf16.xpose.msra.mxu0 %v700
  %710 = vmatmul.bf16.gmra.mxu0 %v697
  %v711 = vpop.f32.mrf.mxu0
  %v712 = vadd.f32 0.0, %v711
  %v713 = vpop.f32.mrf.mxu0
  %714 = vdwg.mxu0
  %v716 = vunpack.c.l.b16 %v20
  %v717 = vpack.c.b16 %v716, %v716
  %718 = vrot.lane.b32.xlu0 %v717, 120
  %v719 = vpop.permute.xlu0 %718
  %v721 = vunpack.c.l.b16 %v28
  %v722 = vpack.c.b16 %v721, %v721
  %723 = vrot.lane.b32.xlu0 %v722, 120
  %v724 = vpop.permute.xlu0 %723
  %v726 = vsel %vm39, %v719, 0
  %v729 = vsel %vm39, %v724, 0
  %731 = vmatpush.bf16.xpose.msra.mxu0 0
  %732 = vmatpush.bf16.xpose.msra.mxu0 0
  %733 = vmatpush.bf16.xpose.msra.mxu0 0
  %734 = vmatpush.bf16.xpose.msra.mxu0 0
  %735 = vmatpush.bf16.xpose.msra.mxu0 0
  %736 = vmatpush.bf16.xpose.msra.mxu0 0
  %737 = vmatpush.bf16.xpose.msra.mxu0 0
  %738 = vmatpush.bf16.xpose.msra.mxu0 %v729
  %739 = vmatmul.bf16.gmra.mxu0 %v726
  %v740 = vpop.f32.mrf.mxu0
  %v741 = vadd.f32 0.0, %v740
  %v742 = vpop.f32.mrf.mxu0
  %743 = vdwg.mxu0
  %v745 = vunpack.c.l.b16 %v21
  %v746 = vpack.c.b16 %v745, %v745
  %747 = vrot.lane.b32.xlu0 %v746, 120
  %v748 = vpop.permute.xlu0 %747
  %v750 = vunpack.c.l.b16 %v29
  %v751 = vpack.c.b16 %v750, %v750
  %752 = vrot.lane.b32.xlu0 %v751, 120
  %v753 = vpop.permute.xlu0 %752
  %v755 = vsel %vm39, %v748, 0
  %v758 = vsel %vm39, %v753, 0
  %760 = vmatpush.bf16.xpose.msra.mxu0 0
  %761 = vmatpush.bf16.xpose.msra.mxu0 0
  %762 = vmatpush.bf16.xpose.msra.mxu0 0
  %763 = vmatpush.bf16.xpose.msra.mxu0 0
  %764 = vmatpush.bf16.xpose.msra.mxu0 0
  %765 = vmatpush.bf16.xpose.msra.mxu0 0
  %766 = vmatpush.bf16.xpose.msra.mxu0 0
  %767 = vmatpush.bf16.xpose.msra.mxu0 %v758
  %768 = vmatmul.bf16.gmra.mxu0 %v755
  %v769 = vpop.f32.mrf.mxu0
  %v770 = vadd.f32 0.0, %v769
  %v771 = vpop.f32.mrf.mxu0
  %772 = vdwg.mxu0
  %v774 = vunpack.c.l.b16 %v22
  %v775 = vpack.c.b16 %v774, %v774
  %776 = vrot.lane.b32.xlu0 %v775, 120
  %v777 = vpop.permute.xlu0 %776
  %v779 = vunpack.c.l.b16 %v30
  %v780 = vpack.c.b16 %v779, %v779
  %781 = vrot.lane.b32.xlu0 %v780, 120
  %v782 = vpop.permute.xlu0 %781
  %v784 = vsel %vm39, %v777, 0
  %v787 = vsel %vm39, %v782, 0
  %789 = vmatpush.bf16.xpose.msra.mxu0 0
  %790 = vmatpush.bf16.xpose.msra.mxu0 0
  %791 = vmatpush.bf16.xpose.msra.mxu0 0
  %792 = vmatpush.bf16.xpose.msra.mxu0 0
  %793 = vmatpush.bf16.xpose.msra.mxu0 0
  %794 = vmatpush.bf16.xpose.msra.mxu0 0
  %795 = vmatpush.bf16.xpose.msra.mxu0 0
  %796 = vmatpush.bf16.xpose.msra.mxu0 %v787
  %797 = vmatmul.bf16.gmra.mxu0 %v784
  %v798 = vpop.f32.mrf.mxu0
  %v799 = vadd.f32 0.0, %v798
  %v800 = vpop.f32.mrf.mxu0
  %801 = vdwg.mxu0
  %v802 = vmul.f32 %v596, 0.35355338
  %v803 = vmul.f32 %v625, 0.35355338
  %v804 = vmul.f32 %v654, 0.35355338
  %v805 = vmul.f32 %v683, 0.35355338
  %v806 = vmul.f32 %v712, 0.35355338
  %v807 = vmul.f32 %v741, 0.35355338
  %v808 = vmul.f32 %v770, 0.35355338
  %v809 = vmul.f32 %v799, 0.35355338
  %v810 = vsel %vm39, %v802, -inf
  %811 = vmax.xlane.f32.xlu0 %v810
  %v812 = vpop.xlane.xlu0 %811
  %v813 = vsel %vm39, %v803, -inf
  %814 = vmax.xlane.f32.xlu0 %v813
  %v815 = vpop.xlane.xlu0 %814
  %v816 = vsel %vm39, %v804, -inf
  %817 = vmax.xlane.f32.xlu0 %v816
  %v818 = vpop.xlane.xlu0 %817
  %v819 = vsel %vm39, %v805, -inf
  %820 = vmax.xlane.f32.xlu0 %v819
  %v821 = vpop.xlane.xlu0 %820
  %v822 = vsel %vm39, %v806, -inf
  %823 = vmax.xlane.f32.xlu0 %v822
  %v824 = vpop.xlane.xlu0 %823
  %v825 = vsel %vm39, %v807, -inf
  %826 = vmax.xlane.f32.xlu0 %v825
  %v827 = vpop.xlane.xlu0 %826
  %v828 = vsel %vm39, %v808, -inf
  %829 = vmax.xlane.f32.xlu0 %v828
  %v830 = vpop.xlane.xlu0 %829
  %v831 = vsel %vm39, %v809, -inf
  %832 = vmax.xlane.f32.xlu0 %v831
  %v833 = vpop.xlane.xlu0 %832
  %v834 = vsub.f32 %v802, %v812
  %v835 = vsub.f32 %v803, %v815
  %v836 = vsub.f32 %v804, %v818
  %v837 = vsub.f32 %v805, %v821
  %v838 = vsub.f32 %v806, %v824
  %v839 = vsub.f32 %v807, %v827
  %v840 = vsub.f32 %v808, %v830
  %v841 = vsub.f32 %v809, %v833
  %v842 = vmul.f32 %v834, 1.442695
  %v843 = vpow.pop %v842
  %v844 = vmul.f32 %v835, 1.442695
  %v845 = vpow.pop %v844
  %v846 = vmul.f32 %v836, 1.442695
  %v847 = vpow.pop %v846
  %v848 = vmul.f32 %v837, 1.442695
  %v849 = vpow.pop %v848
  %v850 = vmul.f32 %v838, 1.442695
  %v851 = vpow.pop %v850
  %v852 = vmul.f32 %v839, 1.442695
  %v853 = vpow.pop %v852
  %v854 = vmul.f32 %v840, 1.442695
  %v855 = vpow.pop %v854
  %v856 = vmul.f32 %v841, 1.442695
  %v857 = vpow.pop %v856
  %v858 = vsel %vm39, %v843, 0.0
  %859 = vadd.xlane.f32.xlu0 %v858
  %v860 = vpop.xlane.xlu0 %859
  %v861 = vsel %vm39, %v845, 0.0
  %862 = vadd.xlane.f32.xlu0 %v861
  %v863 = vpop.xlane.xlu0 %862
  %v864 = vsel %vm39, %v847, 0.0
  %865 = vadd.xlane.f32.xlu0 %v864
  %v866 = vpop.xlane.xlu0 %865
  %v867 = vsel %vm39, %v849, 0.0
  %868 = vadd.xlane.f32.xlu0 %v867
  %v869 = vpop.xlane.xlu0 %868
  %v870 = vsel %vm39, %v851, 0.0
  %871 = vadd.xlane.f32.xlu0 %v870
  %v872 = vpop.xlane.xlu0 %871
  %v873 = vsel %vm39, %v853, 0.0
  %874 = vadd.xlane.f32.xlu0 %v873
  %v875 = vpop.xlane.xlu0 %874
  %v876 = vsel %vm39, %v855, 0.0
  %877 = vadd.xlane.f32.xlu0 %v876
  %v878 = vpop.xlane.xlu0 %877
  %v879 = vsel %vm39, %v857, 0.0
  %880 = vadd.xlane.f32.xlu0 %v879
  %v881 = vpop.xlane.xlu0 %880
  %v882 = vrcp.pop %v860
  %v883 = vmul.f32 %v860, %v882
  %v884 = vsub.f32 1.0, %v883
  %v885 = vmul.f32 %v882, %v884
  %v886 = vadd.f32 %v882, %v885
  %vm887 = vweird.f32 %v860
  %vm888 = vweird.f32 %v882
  %vm889 = vmor %vm887, %vm888
  %v890 = vsel %vm889, %v882, %v886
  %v891 = vand.u32 2147483647, %v860
  %vm892 = vcmp.eq.f32.partialorder %v891, 8.507059e+37
  %v893 = vand.u32 %v860, 2147483648
  %v894 = vor.u32 1.1754944e-38, %v893
  %v895 = vsel %vm892, %v894, %v890
  %v896 = vmul.f32 %v843, %v895
  %v897 = vrcp.pop %v863
  %v898 = vmul.f32 %v863, %v897
  %v899 = vsub.f32 1.0, %v898
  %v900 = vmul.f32 %v897, %v899
  %v901 = vadd.f32 %v897, %v900
  %vm902 = vweird.f32 %v863
  %vm903 = vweird.f32 %v897
  %vm904 = vmor %vm902, %vm903
  %v905 = vsel %vm904, %v897, %v901
  %v906 = vand.u32 2147483647, %v863
  %vm907 = vcmp.eq.f32.partialorder %v906, 8.507059e+37
  %v908 = vand.u32 %v863, 2147483648
  %v909 = vor.u32 1.1754944e-38, %v908
  %v910 = vsel %vm907, %v909, %v905
  %v911 = vmul.f32 %v845, %v910
  %v912 = vrcp.pop %v866
  %v913 = vmul.f32 %v866, %v912
  %v914 = vsub.f32 1.0, %v913
  %v915 = vmul.f32 %v912, %v914
  %v916 = vadd.f32 %v912, %v915
  %vm917 = vweird.f32 %v866
  %vm918 = vweird.f32 %v912
  %vm919 = vmor %vm917, %vm918
  %v920 = vsel %vm919, %v912, %v916
  %v921 = vand.u32 2147483647, %v866
  %vm922 = vcmp.eq.f32.partialorder %v921, 8.507059e+37
  %v923 = vand.u32 %v866, 2147483648
  %v924 = vor.u32 1.1754944e-38, %v923
  %v925 = vsel %vm922, %v924, %v920
  %v926 = vmul.f32 %v847, %v925
  %v927 = vrcp.pop %v869
  %v928 = vmul.f32 %v869, %v927
  %v929 = vsub.f32 1.0, %v928
  %v930 = vmul.f32 %v927, %v929
  %v931 = vadd.f32 %v927, %v930
  %vm932 = vweird.f32 %v869
  %vm933 = vweird.f32 %v927
  %vm934 = vmor %vm932, %vm933
  %v935 = vsel %vm934, %v927, %v931
  %v936 = vand.u32 2147483647, %v869
  %vm937 = vcmp.eq.f32.partialorder %v936, 8.507059e+37
  %v938 = vand.u32 %v869, 2147483648
  %v939 = vor.u32 1.1754944e-38, %v938
  %v940 = vsel %vm937, %v939, %v935
  %v941 = vmul.f32 %v849, %v940
  %v942 = vrcp.pop %v872
  %v943 = vmul.f32 %v872, %v942
  %v944 = vsub.f32 1.0, %v943
  %v945 = vmul.f32 %v942, %v944
  %v946 = vadd.f32 %v942, %v945
  %vm947 = vweird.f32 %v872
  %vm948 = vweird.f32 %v942
  %vm949 = vmor %vm947, %vm948
  %v950 = vsel %vm949, %v942, %v946
  %v951 = vand.u32 2147483647, %v872
  %vm952 = vcmp.eq.f32.partialorder %v951, 8.507059e+37
  %v953 = vand.u32 %v872, 2147483648
  %v954 = vor.u32 1.1754944e-38, %v953
  %v955 = vsel %vm952, %v954, %v950
  %v956 = vmul.f32 %v851, %v955
  %v957 = vrcp.pop %v875
  %v958 = vmul.f32 %v875, %v957
  %v959 = vsub.f32 1.0, %v958
  %v960 = vmul.f32 %v957, %v959
  %v961 = vadd.f32 %v957, %v960
  %vm962 = vweird.f32 %v875
  %vm963 = vweird.f32 %v957
  %vm964 = vmor %vm962, %vm963
  %v965 = vsel %vm964, %v957, %v961
  %v966 = vand.u32 2147483647, %v875
  %vm967 = vcmp.eq.f32.partialorder %v966, 8.507059e+37
  %v968 = vand.u32 %v875, 2147483648
  %v969 = vor.u32 1.1754944e-38, %v968
  %v970 = vsel %vm967, %v969, %v965
  %v971 = vmul.f32 %v853, %v970
  %v972 = vrcp.pop %v878
  %v973 = vmul.f32 %v878, %v972
  %v974 = vsub.f32 1.0, %v973
  %v975 = vmul.f32 %v972, %v974
  %v976 = vadd.f32 %v972, %v975
  %vm977 = vweird.f32 %v878
  %vm978 = vweird.f32 %v972
  %vm979 = vmor %vm977, %vm978
  %v980 = vsel %vm979, %v972, %v976
  %v981 = vand.u32 2147483647, %v878
  %vm982 = vcmp.eq.f32.partialorder %v981, 8.507059e+37
  %v983 = vand.u32 %v878, 2147483648
  %v984 = vor.u32 1.1754944e-38, %v983
  %v985 = vsel %vm982, %v984, %v980
  %v986 = vmul.f32 %v855, %v985
  %v987 = vrcp.pop %v881
  %v988 = vmul.f32 %v881, %v987
  %v989 = vsub.f32 1.0, %v988
  %v990 = vmul.f32 %v987, %v989
  %v991 = vadd.f32 %v987, %v990
  %vm992 = vweird.f32 %v881
  %vm993 = vweird.f32 %v987
  %vm994 = vmor %vm992, %vm993
  %v995 = vsel %vm994, %v987, %v991
  %v996 = vand.u32 2147483647, %v881
  %vm997 = vcmp.eq.f32.partialorder %v996, 8.507059e+37
  %v998 = vand.u32 %v881, 2147483648
  %v999 = vor.u32 1.1754944e-38, %v998
  %v1000 = vsel %vm997, %v999, %v995
  %v1001 = vmul.f32 %v857, %v1000
  %v1002 = vpack.c.bf16 %v896, %v896
  %v1003 = vpack.c.bf16 %v911, %v911
  %v1004 = vpack.c.bf16 %v926, %v926
  %v1005 = vpack.c.bf16 %v941, %v941
  %v1006 = vpack.c.bf16 %v956, %v956
  %v1007 = vpack.c.bf16 %v971, %v971
  %v1008 = vpack.c.bf16 %v986, %v986
  %v1009 = vpack.c.bf16 %v1001, %v1001
  %v1011 = vunpack.c.l.b16 %v31
  %v1012 = vpack.c.b16 %v1011, %v1011
  %1013 = vrot.lane.b32.xlu0 %v1012, 120
  %v1014 = vpop.permute.xlu0 %1013
  %v1016 = vsel %vm39, %v1002, 0
  %v1019 = vsel %vm403, %v1014, 0
  %1021 = vmatpush.bf16.msra.mxu0 0
  %1022 = vmatpush.bf16.msra.mxu0 0
  %1023 = vmatpush.bf16.msra.mxu0 0
  %1024 = vmatpush.bf16.msra.mxu0 0
  %1025 = vmatpush.bf16.msra.mxu0 0
  %1026 = vmatpush.bf16.msra.mxu0 0
  %1027 = vmatpush.bf16.msra.mxu0 0
  %1028 = vmatpush.bf16.msra.mxu0 %v1019
  %1029 = vmatmul.bf16.gmra.mxu0 %v1016
  %v1030 = vpop.f32.mrf.mxu0
  %v1031 = vadd.f32 0.0, %v1030
  %v1032 = vpop.f32.mrf.mxu0
  %1033 = vdwg.mxu0
  %v1035 = vunpack.c.l.b16 %v32
  %v1036 = vpack.c.b16 %v1035, %v1035
  %1037 = vrot.lane.b32.xlu0 %v1036, 120
  %v1038 = vpop.permute.xlu0 %1037
  %v1040 = vsel %vm39, %v1003, 0
  %v1043 = vsel %vm403, %v1038, 0
  %1045 = vmatpush.bf16.msra.mxu0 0
  %1046 = vmatpush.bf16.msra.mxu0 0
  %1047 = vmatpush.bf16.msra.mxu0 0
  %1048 = vmatpush.bf16.msra.mxu0 0
  %1049 = vmatpush.bf16.msra.mxu0 0
  %1050 = vmatpush.bf16.msra.mxu0 0
  %1051 = vmatpush.bf16.msra.mxu0 0
  %1052 = vmatpush.bf16.msra.mxu0 %v1043
  %1053 = vmatmul.bf16.gmra.mxu0 %v1040
  %v1054 = vpop.f32.mrf.mxu0
  %v1055 = vadd.f32 0.0, %v1054
  %v1056 = vpop.f32.mrf.mxu0
  %1057 = vdwg.mxu0
  %v1059 = vunpack.c.l.b16 %v33
  %v1060 = vpack.c.b16 %v1059, %v1059
  %1061 = vrot.lane.b32.xlu0 %v1060, 120
  %v1062 = vpop.permute.xlu0 %1061
  %v1064 = vsel %vm39, %v1004, 0
  %v1067 = vsel %vm403, %v1062, 0
  %1069 = vmatpush.bf16.msra.mxu0 0
  %1070 = vmatpush.bf16.msra.mxu0 0
  %1071 = vmatpush.bf16.msra.mxu0 0
  %1072 = vmatpush.bf16.msra.mxu0 0
  %1073 = vmatpush.bf16.msra.mxu0 0
  %1074 = vmatpush.bf16.msra.mxu0 0
  %1075 = vmatpush.bf16.msra.mxu0 0
  %1076 = vmatpush.bf16.msra.mxu0 %v1067
  %1077 = vmatmul.bf16.gmra.mxu0 %v1064
  %v1078 = vpop.f32.mrf.mxu0
  %v1079 = vadd.f32 0.0, %v1078
  %v1080 = vpop.f32.mrf.mxu0
  %1081 = vdwg.mxu0
  %v1083 = vunpack.c.l.b16 %v34
  %v1084 = vpack.c.b16 %v1083, %v1083
  %1085 = vrot.lane.b32.xlu0 %v1084, 120
  %v1086 = vpop.permute.xlu0 %1085
  %v1088 = vsel %vm39, %v1005, 0
  %v1091 = vsel %vm403, %v1086, 0
  %1093 = vmatpush.bf16.msra.mxu0 0
  %1094 = vmatpush.bf16.msra.mxu0 0
  %1095 = vmatpush.bf16.msra.mxu0 0
  %1096 = vmatpush.bf16.msra.mxu0 0
  %1097 = vmatpush.bf16.msra.mxu0 0
  %1098 = vmatpush.bf16.msra.mxu0 0
  %1099 = vmatpush.bf16.msra.mxu0 0
  %1100 = vmatpush.bf16.msra.mxu0 %v1091
  %1101 = vmatmul.bf16.gmra.mxu0 %v1088
  %v1102 = vpop.f32.mrf.mxu0
  %v1103 = vadd.f32 0.0, %v1102
  %v1104 = vpop.f32.mrf.mxu0
  %1105 = vdwg.mxu0
  %v1107 = vunpack.c.l.b16 %v35
  %v1108 = vpack.c.b16 %v1107, %v1107
  %1109 = vrot.lane.b32.xlu0 %v1108, 120
  %v1110 = vpop.permute.xlu0 %1109
  %v1112 = vsel %vm39, %v1006, 0
  %v1115 = vsel %vm403, %v1110, 0
  %1117 = vmatpush.bf16.msra.mxu0 0
  %1118 = vmatpush.bf16.msra.mxu0 0
  %1119 = vmatpush.bf16.msra.mxu0 0
  %1120 = vmatpush.bf16.msra.mxu0 0
  %1121 = vmatpush.bf16.msra.mxu0 0
  %1122 = vmatpush.bf16.msra.mxu0 0
  %1123 = vmatpush.bf16.msra.mxu0 0
  %1124 = vmatpush.bf16.msra.mxu0 %v1115
  %1125 = vmatmul.bf16.gmra.mxu0 %v1112
  %v1126 = vpop.f32.mrf.mxu0
  %v1127 = vadd.f32 0.0, %v1126
  %v1128 = vpop.f32.mrf.mxu0
  %1129 = vdwg.mxu0
  %v1131 = vunpack.c.l.b16 %v36
  %v1132 = vpack.c.b16 %v1131, %v1131
  %1133 = vrot.lane.b32.xlu0 %v1132, 120
  %v1134 = vpop.permute.xlu0 %1133
  %v1136 = vsel %vm39, %v1007, 0
  %v1139 = vsel %vm403, %v1134, 0
  %1141 = vmatpush.bf16.msra.mxu0 0
  %1142 = vmatpush.bf16.msra.mxu0 0
  %1143 = vmatpush.bf16.msra.mxu0 0
  %1144 = vmatpush.bf16.msra.mxu0 0
  %1145 = vmatpush.bf16.msra.mxu0 0
  %1146 = vmatpush.bf16.msra.mxu0 0
  %1147 = vmatpush.bf16.msra.mxu0 0
  %1148 = vmatpush.bf16.msra.mxu0 %v1139
  %1149 = vmatmul.bf16.gmra.mxu0 %v1136
  %v1150 = vpop.f32.mrf.mxu0
  %v1151 = vadd.f32 0.0, %v1150
  %v1152 = vpop.f32.mrf.mxu0
  %1153 = vdwg.mxu0
  %v1155 = vunpack.c.l.b16 %v37
  %v1156 = vpack.c.b16 %v1155, %v1155
  %1157 = vrot.lane.b32.xlu0 %v1156, 120
  %v1158 = vpop.permute.xlu0 %1157
  %v1160 = vsel %vm39, %v1008, 0
  %v1163 = vsel %vm403, %v1158, 0
  %1165 = vmatpush.bf16.msra.mxu0 0
  %1166 = vmatpush.bf16.msra.mxu0 0
  %1167 = vmatpush.bf16.msra.mxu0 0
  %1168 = vmatpush.bf16.msra.mxu0 0
  %1169 = vmatpush.bf16.msra.mxu0 0
  %1170 = vmatpush.bf16.msra.mxu0 0
  %1171 = vmatpush.bf16.msra.mxu0 0
  %1172 = vmatpush.bf16.msra.mxu0 %v1163
  %1173 = vmatmul.bf16.gmra.mxu0 %v1160
  %v1174 = vpop.f32.mrf.mxu0
  %v1175 = vadd.f32 0.0, %v1174
  %v1176 = vpop.f32.mrf.mxu0
  %1177 = vdwg.mxu0
  %v1179 = vunpack.c.l.b16 %v38
  %v1180 = vpack.c.b16 %v1179, %v1179
  %1181 = vrot.lane.b32.xlu0 %v1180, 120
  %v1182 = vpop.permute.xlu0 %1181
  %v1184 = vsel %vm39, %v1009, 0
  %v1187 = vsel %vm403, %v1182, 0
  %1189 = vmatpush.bf16.msra.mxu0 0
  %1190 = vmatpush.bf16.msra.mxu0 0
  %1191 = vmatpush.bf16.msra.mxu0 0
  %1192 = vmatpush.bf16.msra.mxu0 0
  %1193 = vmatpush.bf16.msra.mxu0 0
  %1194 = vmatpush.bf16.msra.mxu0 0
  %1195 = vmatpush.bf16.msra.mxu0 0
  %1196 = vmatpush.bf16.msra.mxu0 %v1187
  %1197 = vmatmul.bf16.gmra.mxu0 %v1184
  %v1198 = vpop.f32.mrf.mxu0
  %v1199 = vadd.f32 0.0, %v1198
  %v1200 = vpop.f32.mrf.mxu0
  %1201 = vdwg.mxu0
  %v1202 = vpack.c.bf16 %v1031, %v1031
  %v1203 = vpack.c.bf16 %v1055, %v1055
  %v1204 = vpack.c.bf16 %v1079, %v1079
  %v1205 = vpack.c.bf16 %v1103, %v1103
  %v1206 = vpack.c.bf16 %v1127, %v1127
  %v1207 = vpack.c.bf16 %v1151, %v1151
  %v1208 = vpack.c.bf16 %v1175, %v1175
  %v1209 = vpack.c.bf16 %v1199, %v1199
  %1218 = vrot.lane.b32.xlu0 %v1202, 8
  %v1219 = vpop.permute.xlu0 %1218
  %1220 = vrot.lane.b32.xlu0 %v1203, 8
  %v1221 = vpop.permute.xlu0 %1220
  %1222 = vrot.lane.b32.xlu0 %v1204, 8
  %v1223 = vpop.permute.xlu0 %1222
  %1224 = vrot.lane.b32.xlu0 %v1205, 8
  %v1225 = vpop.permute.xlu0 %1224
  %1226 = vrot.lane.b32.xlu0 %v1206, 8
  %v1227 = vpop.permute.xlu0 %1226
  %1228 = vrot.lane.b32.xlu0 %v1207, 8
  %v1229 = vpop.permute.xlu0 %1228
  %1230 = vrot.lane.b32.xlu0 %v1208, 8
  %v1231 = vpop.permute.xlu0 %1230
  %1232 = vrot.lane.b32.xlu0 %v1209, 8
  %v1233 = vpop.permute.xlu0 %1232
  %vm1242 = vcmask 126016
  %1243 = vst.msk [vmem:[%s3] sm:$0xf] %vm1242, %v1219
  %1244 = vst.msk [vmem:[%s3 + $0x4] sm:$0xf] %vm1242, %v1221
  %1245 = vst.msk [vmem:[%s3 + $0x8] sm:$0xf] %vm1242, %v1223
  %1246 = vst.msk [vmem:[%s3 + $0xc] sm:$0xf] %vm1242, %v1225
  %1247 = vst.msk [vmem:[%s3 + $0x10] sm:$0xf] %vm1242, %v1227
  %1248 = vst.msk [vmem:[%s3 + $0x14] sm:$0xf] %vm1242, %v1229
  %1249 = vst.msk [vmem:[%s3 + $0x18] sm:$0xf] %vm1242, %v1231
  %1250 = vst.msk [vmem:[%s3 + $0x1c] sm:$0xf] %vm1242, %v1233
  %1251 = vrot.lane.b32.xlu0 %v572, 112
  %v1252 = vpop.permute.xlu0 %1251
  %1253 = vrot.lane.b32.xlu0 %v577, 112
  %v1254 = vpop.permute.xlu0 %1253
  %v1256 = vsel %vm39, %v1252, 0
  %v1259 = vsel %vm39, %v1254, 0
  %1261 = vmatpush.bf16.xpose.msra.mxu0 0
  %1262 = vmatpush.bf16.xpose.msra.mxu0 0
  %1263 = vmatpush.bf16.xpose.msra.mxu0 0
  %1264 = vmatpush.bf16.xpose.msra.mxu0 0
  %1265 = vmatpush.bf16.xpose.msra.mxu0 0
  %1266 = vmatpush.bf16.xpose.msra.mxu0 0
  %1267 = vmatpush.bf16.xpose.msra.mxu0 0
  %1268 = vmatpush.bf16.xpose.msra.mxu0 %v1259
  %1269 = vmatmul.bf16.gmra.mxu0 %v1256
  %v1270 = vpop.f32.mrf.mxu0
  %v1271 = vadd.f32 0.0, %v1270
  %v1272 = vpop.f32.mrf.mxu0
  %1273 = vdwg.mxu0
  %1274 = vrot.lane.b32.xlu0 %v601, 112
  %v1275 = vpop.permute.xlu0 %1274
  %1276 = vrot.lane.b32.xlu0 %v606, 112
  %v1277 = vpop.permute.xlu0 %1276
  %v1279 = vsel %vm39, %v1275, 0
  %v1282 = vsel %vm39, %v1277, 0
  %1284 = vmatpush.bf16.xpose.msra.mxu0 0
  %1285 = vmatpush.bf16.xpose.msra.mxu0 0
  %1286 = vmatpush.bf16.xpose.msra.mxu0 0
  %1287 = vmatpush.bf16.xpose.msra.mxu0 0
  %1288 = vmatpush.bf16.xpose.msra.mxu0 0
  %1289 = vmatpush.bf16.xpose.msra.mxu0 0
  %1290 = vmatpush.bf16.xpose.msra.mxu0 0
  %1291 = vmatpush.bf16.xpose.msra.mxu0 %v1282
  %1292 = vmatmul.bf16.gmra.mxu0 %v1279
  %v1293 = vpop.f32.mrf.mxu0
  %v1294 = vadd.f32 0.0, %v1293
  %v1295 = vpop.f32.mrf.mxu0
  %1296 = vdwg.mxu0
  %1297 = vrot.lane.b32.xlu0 %v630, 112
  %v1298 = vpop.permute.xlu0 %1297
  %1299 = vrot.lane.b32.xlu0 %v635, 112
  %v1300 = vpop.permute.xlu0 %1299
  %v1302 = vsel %vm39, %v1298, 0
  %v1305 = vsel %vm39, %v1300, 0
  %1307 = vmatpush.bf16.xpose.msra.mxu0 0
  %1308 = vmatpush.bf16.xpose.msra.mxu0 0
  %1309 = vmatpush.bf16.xpose.msra.mxu0 0
  %1310 = vmatpush.bf16.xpose.msra.mxu0 0
  %1311 = vmatpush.bf16.xpose.msra.mxu0 0
  %1312 = vmatpush.bf16.xpose.msra.mxu0 0
  %1313 = vmatpush.bf16.xpose.msra.mxu0 0
  %1314 = vmatpush.bf16.xpose.msra.mxu0 %v1305
  %1315 = vmatmul.bf16.gmra.mxu0 %v1302
  %v1316 = vpop.f32.mrf.mxu0
  %v1317 = vadd.f32 0.0, %v1316
  %v1318 = vpop.f32.mrf.mxu0
  %1319 = vdwg.mxu0
  %1320 = vrot.lane.b32.xlu0 %v659, 112
  %v1321 = vpop.permute.xlu0 %1320
  %1322 = vrot.lane.b32.xlu0 %v664, 112
  %v1323 = vpop.permute.xlu0 %1322
  %v1325 = vsel %vm39, %v1321, 0
  %v1328 = vsel %vm39, %v1323, 0
  %1330 = vmatpush.bf16.xpose.msra.mxu0 0
  %1331 = vmatpush.bf16.xpose.msra.mxu0 0
  %1332 = vmatpush.bf16.xpose.msra.mxu0 0
  %1333 = vmatpush.bf16.xpose.msra.mxu0 0
  %1334 = vmatpush.bf16.xpose.msra.mxu0 0
  %1335 = vmatpush.bf16.xpose.msra.mxu0 0
  %1336 = vmatpush.bf16.xpose.msra.mxu0 0
  %1337 = vmatpush.bf16.xpose.msra.mxu0 %v1328
  %1338 = vmatmul.bf16.gmra.mxu0 %v1325
  %v1339 = vpop.f32.mrf.mxu0
  %v1340 = vadd.f32 0.0, %v1339
  %v1341 = vpop.f32.mrf.mxu0
  %1342 = vdwg.mxu0
  %1343 = vrot.lane.b32.xlu0 %v688, 112
  %v1344 = vpop.permute.xlu0 %1343
  %1345 = vrot.lane.b32.xlu0 %v693, 112
  %v1346 = vpop.permute.xlu0 %1345
  %v1348 = vsel %vm39, %v1344, 0
  %v1351 = vsel %vm39, %v1346, 0
  %1353 = vmatpush.bf16.xpose.msra.mxu0 0
  %1354 = vmatpush.bf16.xpose.msra.mxu0 0
  %1355 = vmatpush.bf16.xpose.msra.mxu0 0
  %1356 = vmatpush.bf16.xpose.msra.mxu0 0
  %1357 = vmatpush.bf16.xpose.msra.mxu0 0
  %1358 = vmatpush.bf16.xpose.msra.mxu0 0
  %1359 = vmatpush.bf16.xpose.msra.mxu0 0
  %1360 = vmatpush.bf16.xpose.msra.mxu0 %v1351
  %1361 = vmatmul.bf16.gmra.mxu0 %v1348
  %v1362 = vpop.f32.mrf.mxu0
  %v1363 = vadd.f32 0.0, %v1362
  %v1364 = vpop.f32.mrf.mxu0
  %1365 = vdwg.mxu0
  %1366 = vrot.lane.b32.xlu0 %v717, 112
  %v1367 = vpop.permute.xlu0 %1366
  %1368 = vrot.lane.b32.xlu0 %v722, 112
  %v1369 = vpop.permute.xlu0 %1368
  %v1371 = vsel %vm39, %v1367, 0
  %v1374 = vsel %vm39, %v1369, 0
  %1376 = vmatpush.bf16.xpose.msra.mxu0 0
  %1377 = vmatpush.bf16.xpose.msra.mxu0 0
  %1378 = vmatpush.bf16.xpose.msra.mxu0 0
  %1379 = vmatpush.bf16.xpose.msra.mxu0 0
  %1380 = vmatpush.bf16.xpose.msra.mxu0 0
  %1381 = vmatpush.bf16.xpose.msra.mxu0 0
  %1382 = vmatpush.bf16.xpose.msra.mxu0 0
  %1383 = vmatpush.bf16.xpose.msra.mxu0 %v1374
  %1384 = vmatmul.bf16.gmra.mxu0 %v1371
  %v1385 = vpop.f32.mrf.mxu0
  %v1386 = vadd.f32 0.0, %v1385
  %v1387 = vpop.f32.mrf.mxu0
  %1388 = vdwg.mxu0
  %1389 = vrot.lane.b32.xlu0 %v746, 112
  %v1390 = vpop.permute.xlu0 %1389
  %1391 = vrot.lane.b32.xlu0 %v751, 112
  %v1392 = vpop.permute.xlu0 %1391
  %v1394 = vsel %vm39, %v1390, 0
  %v1397 = vsel %vm39, %v1392, 0
  %1399 = vmatpush.bf16.xpose.msra.mxu0 0
  %1400 = vmatpush.bf16.xpose.msra.mxu0 0
  %1401 = vmatpush.bf16.xpose.msra.mxu0 0
  %1402 = vmatpush.bf16.xpose.msra.mxu0 0
  %1403 = vmatpush.bf16.xpose.msra.mxu0 0
  %1404 = vmatpush.bf16.xpose.msra.mxu0 0
  %1405 = vmatpush.bf16.xpose.msra.mxu0 0
  %1406 = vmatpush.bf16.xpose.msra.mxu0 %v1397
  %1407 = vmatmul.bf16.gmra.mxu0 %v1394
  %v1408 = vpop.f32.mrf.mxu0
  %v1409 = vadd.f32 0.0, %v1408
  %v1410 = vpop.f32.mrf.mxu0
  %1411 = vdwg.mxu0
  %1412 = vrot.lane.b32.xlu0 %v775, 112
  %v1413 = vpop.permute.xlu0 %1412
  %1414 = vrot.lane.b32.xlu0 %v780, 112
  %v1415 = vpop.permute.xlu0 %1414
  %v1417 = vsel %vm39, %v1413, 0
  %v1420 = vsel %vm39, %v1415, 0
  %1422 = vmatpush.bf16.xpose.msra.mxu0 0
  %1423 = vmatpush.bf16.xpose.msra.mxu0 0
  %1424 = vmatpush.bf16.xpose.msra.mxu0 0
  %1425 = vmatpush.bf16.xpose.msra.mxu0 0
  %1426 = vmatpush.bf16.xpose.msra.mxu0 0
  %1427 = vmatpush.bf16.xpose.msra.mxu0 0
  %1428 = vmatpush.bf16.xpose.msra.mxu0 0
  %1429 = vmatpush.bf16.xpose.msra.mxu0 %v1420
  %1430 = vmatmul.bf16.gmra.mxu0 %v1417
  %v1431 = vpop.f32.mrf.mxu0
  %v1432 = vadd.f32 0.0, %v1431
  %v1433 = vpop.f32.mrf.mxu0
  %1434 = vdwg.mxu0
  %v1435 = vmul.f32 %v1271, 0.35355338
  %v1436 = vmul.f32 %v1294, 0.35355338
  %v1437 = vmul.f32 %v1317, 0.35355338
  %v1438 = vmul.f32 %v1340, 0.35355338
  %v1439 = vmul.f32 %v1363, 0.35355338
  %v1440 = vmul.f32 %v1386, 0.35355338
  %v1441 = vmul.f32 %v1409, 0.35355338
  %v1442 = vmul.f32 %v1432, 0.35355338
  %v1443 = vsel %vm39, %v1435, -inf
  %1444 = vmax.xlane.f32.xlu0 %v1443
  %v1445 = vpop.xlane.xlu0 %1444
  %v1446 = vsel %vm39, %v1436, -inf
  %1447 = vmax.xlane.f32.xlu0 %v1446
  %v1448 = vpop.xlane.xlu0 %1447
  %v1449 = vsel %vm39, %v1437, -inf
  %1450 = vmax.xlane.f32.xlu0 %v1449
  %v1451 = vpop.xlane.xlu0 %1450
  %v1452 = vsel %vm39, %v1438, -inf
  %1453 = vmax.xlane.f32.xlu0 %v1452
  %v1454 = vpop.xlane.xlu0 %1453
  %v1455 = vsel %vm39, %v1439, -inf
  %1456 = vmax.xlane.f32.xlu0 %v1455
  %v1457 = vpop.xlane.xlu0 %1456
  %v1458 = vsel %vm39, %v1440, -inf
  %1459 = vmax.xlane.f32.xlu0 %v1458
  %v1460 = vpop.xlane.xlu0 %1459
  %v1461 = vsel %vm39, %v1441, -inf
  %1462 = vmax.xlane.f32.xlu0 %v1461
  %v1463 = vpop.xlane.xlu0 %1462
  %v1464 = vsel %vm39, %v1442, -inf
  %1465 = vmax.xlane.f32.xlu0 %v1464
  %v1466 = vpop.xlane.xlu0 %1465
  %v1467 = vsub.f32 %v1435, %v1445
  %v1468 = vsub.f32 %v1436, %v1448
  %v1469 = vsub.f32 %v1437, %v1451
  %v1470 = vsub.f32 %v1438, %v1454
  %v1471 = vsub.f32 %v1439, %v1457
  %v1472 = vsub.f32 %v1440, %v1460
  %v1473 = vsub.f32 %v1441, %v1463
  %v1474 = vsub.f32 %v1442, %v1466
  %v1475 = vmul.f32 %v1467, 1.442695
  %v1476 = vpow.pop %v1475
  %v1477 = vmul.f32 %v1468, 1.442695
  %v1478 = vpow.pop %v1477
  %v1479 = vmul.f32 %v1469, 1.442695
  %v1480 = vpow.pop %v1479
  %v1481 = vmul.f32 %v1470, 1.442695
  %v1482 = vpow.pop %v1481
  %v1483 = vmul.f32 %v1471, 1.442695
  %v1484 = vpow.pop %v1483
  %v1485 = vmul.f32 %v1472, 1.442695
  %v1486 = vpow.pop %v1485
  %v1487 = vmul.f32 %v1473, 1.442695
  %v1488 = vpow.pop %v1487
  %v1489 = vmul.f32 %v1474, 1.442695
  %v1490 = vpow.pop %v1489
  %v1491 = vsel %vm39, %v1476, 0.0
  %1492 = vadd.xlane.f32.xlu0 %v1491
  %v1493 = vpop.xlane.xlu0 %1492
  %v1494 = vsel %vm39, %v1478, 0.0
  %1495 = vadd.xlane.f32.xlu0 %v1494
  %v1496 = vpop.xlane.xlu0 %1495
  %v1497 = vsel %vm39, %v1480, 0.0
  %1498 = vadd.xlane.f32.xlu0 %v1497
  %v1499 = vpop.xlane.xlu0 %1498
  %v1500 = vsel %vm39, %v1482, 0.0
  %1501 = vadd.xlane.f32.xlu0 %v1500
  %v1502 = vpop.xlane.xlu0 %1501
  %v1503 = vsel %vm39, %v1484, 0.0
  %1504 = vadd.xlane.f32.xlu0 %v1503
  %v1505 = vpop.xlane.xlu0 %1504
  %v1506 = vsel %vm39, %v1486, 0.0
  %1507 = vadd.xlane.f32.xlu0 %v1506
  %v1508 = vpop.xlane.xlu0 %1507
  %v1509 = vsel %vm39, %v1488, 0.0
  %1510 = vadd.xlane.f32.xlu0 %v1509
  %v1511 = vpop.xlane.xlu0 %1510
  %v1512 = vsel %vm39, %v1490, 0.0
  %1513 = vadd.xlane.f32.xlu0 %v1512
  %v1514 = vpop.xlane.xlu0 %1513
  %v1515 = vrcp.pop %v1493
  %v1516 = vmul.f32 %v1493, %v1515
  %v1517 = vsub.f32 1.0, %v1516
  %v1518 = vmul.f32 %v1515, %v1517
  %v1519 = vadd.f32 %v1515, %v1518
  %vm1520 = vweird.f32 %v1493
  %vm1521 = vweird.f32 %v1515
  %vm1522 = vmor %vm1520, %vm1521
  %v1523 = vsel %vm1522, %v1515, %v1519
  %v1524 = vand.u32 2147483647, %v1493
  %vm1525 = vcmp.eq.f32.partialorder %v1524, 8.507059e+37
  %v1526 = vand.u32 %v1493, 2147483648
  %v1527 = vor.u32 1.1754944e-38, %v1526
  %v1528 = vsel %vm1525, %v1527, %v1523
  %v1529 = vmul.f32 %v1476, %v1528
  %v1530 = vrcp.pop %v1496
  %v1531 = vmul.f32 %v1496, %v1530
  %v1532 = vsub.f32 1.0, %v1531
  %v1533 = vmul.f32 %v1530, %v1532
  %v1534 = vadd.f32 %v1530, %v1533
  %vm1535 = vweird.f32 %v1496
  %vm1536 = vweird.f32 %v1530
  %vm1537 = vmor %vm1535, %vm1536
  %v1538 = vsel %vm1537, %v1530, %v1534
  %v1539 = vand.u32 2147483647, %v1496
  %vm1540 = vcmp.eq.f32.partialorder %v1539, 8.507059e+37
  %v1541 = vand.u32 %v1496, 2147483648
  %v1542 = vor.u32 1.1754944e-38, %v1541
  %v1543 = vsel %vm1540, %v1542, %v1538
  %v1544 = vmul.f32 %v1478, %v1543
  %v1545 = vrcp.pop %v1499
  %v1546 = vmul.f32 %v1499, %v1545
  %v1547 = vsub.f32 1.0, %v1546
  %v1548 = vmul.f32 %v1545, %v1547
  %v1549 = vadd.f32 %v1545, %v1548
  %vm1550 = vweird.f32 %v1499
  %vm1551 = vweird.f32 %v1545
  %vm1552 = vmor %vm1550, %vm1551
  %v1553 = vsel %vm1552, %v1545, %v1549
  %v1554 = vand.u32 2147483647, %v1499
  %vm1555 = vcmp.eq.f32.partialorder %v1554, 8.507059e+37
  %v1556 = vand.u32 %v1499, 2147483648
  %v1557 = vor.u32 1.1754944e-38, %v1556
  %v1558 = vsel %vm1555, %v1557, %v1553
  %v1559 = vmul.f32 %v1480, %v1558
  %v1560 = vrcp.pop %v1502
  %v1561 = vmul.f32 %v1502, %v1560
  %v1562 = vsub.f32 1.0, %v1561
  %v1563 = vmul.f32 %v1560, %v1562
  %v1564 = vadd.f32 %v1560, %v1563
  %vm1565 = vweird.f32 %v1502
  %vm1566 = vweird.f32 %v1560
  %vm1567 = vmor %vm1565, %vm1566
  %v1568 = vsel %vm1567, %v1560, %v1564
  %v1569 = vand.u32 2147483647, %v1502
  %vm1570 = vcmp.eq.f32.partialorder %v1569, 8.507059e+37
  %v1571 = vand.u32 %v1502, 2147483648
  %v1572 = vor.u32 1.1754944e-38, %v1571
  %v1573 = vsel %vm1570, %v1572, %v1568
  %v1574 = vmul.f32 %v1482, %v1573
  %v1575 = vrcp.pop %v1505
  %v1576 = vmul.f32 %v1505, %v1575
  %v1577 = vsub.f32 1.0, %v1576
  %v1578 = vmul.f32 %v1575, %v1577
  %v1579 = vadd.f32 %v1575, %v1578
  %vm1580 = vweird.f32 %v1505
  %vm1581 = vweird.f32 %v1575
  %vm1582 = vmor %vm1580, %vm1581
  %v1583 = vsel %vm1582, %v1575, %v1579
  %v1584 = vand.u32 2147483647, %v1505
  %vm1585 = vcmp.eq.f32.partialorder %v1584, 8.507059e+37
  %v1586 = vand.u32 %v1505, 2147483648
  %v1587 = vor.u32 1.1754944e-38, %v1586
  %v1588 = vsel %vm1585, %v1587, %v1583
  %v1589 = vmul.f32 %v1484, %v1588
  %v1590 = vrcp.pop %v1508
  %v1591 = vmul.f32 %v1508, %v1590
  %v1592 = vsub.f32 1.0, %v1591
  %v1593 = vmul.f32 %v1590, %v1592
  %v1594 = vadd.f32 %v1590, %v1593
  %vm1595 = vweird.f32 %v1508
  %vm1596 = vweird.f32 %v1590
  %vm1597 = vmor %vm1595, %vm1596
  %v1598 = vsel %vm1597, %v1590, %v1594
  %v1599 = vand.u32 2147483647, %v1508
  %vm1600 = vcmp.eq.f32.partialorder %v1599, 8.507059e+37
  %v1601 = vand.u32 %v1508, 2147483648
  %v1602 = vor.u32 1.1754944e-38, %v1601
  %v1603 = vsel %vm1600, %v1602, %v1598
  %v1604 = vmul.f32 %v1486, %v1603
  %v1605 = vrcp.pop %v1511
  %v1606 = vmul.f32 %v1511, %v1605
  %v1607 = vsub.f32 1.0, %v1606
  %v1608 = vmul.f32 %v1605, %v1607
  %v1609 = vadd.f32 %v1605, %v1608
  %vm1610 = vweird.f32 %v1511
  %vm1611 = vweird.f32 %v1605
  %vm1612 = vmor %vm1610, %vm1611
  %v1613 = vsel %vm1612, %v1605, %v1609
  %v1614 = vand.u32 2147483647, %v1511
  %vm1615 = vcmp.eq.f32.partialorder %v1614, 8.507059e+37
  %v1616 = vand.u32 %v1511, 2147483648
  %v1617 = vor.u32 1.1754944e-38, %v1616
  %v1618 = vsel %vm1615, %v1617, %v1613
  %v1619 = vmul.f32 %v1488, %v1618
  %v1620 = vrcp.pop %v1514
  %v1621 = vmul.f32 %v1514, %v1620
  %v1622 = vsub.f32 1.0, %v1621
  %v1623 = vmul.f32 %v1620, %v1622
  %v1624 = vadd.f32 %v1620, %v1623
  %vm1625 = vweird.f32 %v1514
  %vm1626 = vweird.f32 %v1620
  %vm1627 = vmor %vm1625, %vm1626
  %v1628 = vsel %vm1627, %v1620, %v1624
  %v1629 = vand.u32 2147483647, %v1514
  %vm1630 = vcmp.eq.f32.partialorder %v1629, 8.507059e+37
  %v1631 = vand.u32 %v1514, 2147483648
  %v1632 = vor.u32 1.1754944e-38, %v1631
  %v1633 = vsel %vm1630, %v1632, %v1628
  %v1634 = vmul.f32 %v1490, %v1633
  %v1635 = vpack.c.bf16 %v1529, %v1529
  %v1636 = vpack.c.bf16 %v1544, %v1544
  %v1637 = vpack.c.bf16 %v1559, %v1559
  %v1638 = vpack.c.bf16 %v1574, %v1574
  %v1639 = vpack.c.bf16 %v1589, %v1589
  %v1640 = vpack.c.bf16 %v1604, %v1604
  %v1641 = vpack.c.bf16 %v1619, %v1619
  %v1642 = vpack.c.bf16 %v1634, %v1634
  %1643 = vrot.lane.b32.xlu0 %v1012, 112
  %v1644 = vpop.permute.xlu0 %1643
  %v1646 = vsel %vm39, %v1635, 0
  %v1649 = vsel %vm403, %v1644, 0
  %1651 = vmatpush.bf16.msra.mxu0 0
  %1652 = vmatpush.bf16.msra.mxu0 0
  %1653 = vmatpush.bf16.msra.mxu0 0
  %1654 = vmatpush.bf16.msra.mxu0 0
  %1655 = vmatpush.bf16.msra.mxu0 0
  %1656 = vmatpush.bf16.msra.mxu0 0
  %1657 = vmatpush.bf16.msra.mxu0 0
  %1658 = vmatpush.bf16.msra.mxu0 %v1649
  %1659 = vmatmul.bf16.gmra.mxu0 %v1646
  %v1660 = vpop.f32.mrf.mxu0
  %v1661 = vadd.f32 0.0, %v1660
  %v1662 = vpop.f32.mrf.mxu0
  %1663 = vdwg.mxu0
  %1664 = vrot.lane.b32.xlu0 %v1036, 112
  %v1665 = vpop.permute.xlu0 %1664
  %v1667 = vsel %vm39, %v1636, 0
  %v1670 = vsel %vm403, %v1665, 0
  %1672 = vmatpush.bf16.msra.mxu0 0
  %1673 = vmatpush.bf16.msra.mxu0 0
  %1674 = vmatpush.bf16.msra.mxu0 0
  %1675 = vmatpush.bf16.msra.mxu0 0
  %1676 = vmatpush.bf16.msra.mxu0 0
  %1677 = vmatpush.bf16.msra.mxu0 0
  %1678 = vmatpush.bf16.msra.mxu0 0
  %1679 = vmatpush.bf16.msra.mxu0 %v1670
  %1680 = vmatmul.bf16.gmra.mxu0 %v1667
  %v1681 = vpop.f32.mrf.mxu0
  %v1682 = vadd.f32 0.0, %v1681
  %v1683 = vpop.f32.mrf.mxu0
  %1684 = vdwg.mxu0
  %1685 = vrot.lane.b32.xlu0 %v1060, 112
  %v1686 = vpop.permute.xlu0 %1685
  %v1688 = vsel %vm39, %v1637, 0
  %v1691 = vsel %vm403, %v1686, 0
  %1693 = vmatpush.bf16.msra.mxu0 0
  %1694 = vmatpush.bf16.msra.mxu0 0
  %1695 = vmatpush.bf16.msra.mxu0 0
  %1696 = vmatpush.bf16.msra.mxu0 0
  %1697 = vmatpush.bf16.msra.mxu0 0
  %1698 = vmatpush.bf16.msra.mxu0 0
  %1699 = vmatpush.bf16.msra.mxu0 0
  %1700 = vmatpush.bf16.msra.mxu0 %v1691
  %1701 = vmatmul.bf16.gmra.mxu0 %v1688
  %v1702 = vpop.f32.mrf.mxu0
  %v1703 = vadd.f32 0.0, %v1702
  %v1704 = vpop.f32.mrf.mxu0
  %1705 = vdwg.mxu0
  %1706 = vrot.lane.b32.xlu0 %v1084, 112
  %v1707 = vpop.permute.xlu0 %1706
  %v1709 = vsel %vm39, %v1638, 0
  %v1712 = vsel %vm403, %v1707, 0
  %1714 = vmatpush.bf16.msra.mxu0 0
  %1715 = vmatpush.bf16.msra.mxu0 0
  %1716 = vmatpush.bf16.msra.mxu0 0
  %1717 = vmatpush.bf16.msra.mxu0 0
  %1718 = vmatpush.bf16.msra.mxu0 0
  %1719 = vmatpush.bf16.msra.mxu0 0
  %1720 = vmatpush.bf16.msra.mxu0 0
  %1721 = vmatpush.bf16.msra.mxu0 %v1712
  %1722 = vmatmul.bf16.gmra.mxu0 %v1709
  %v1723 = vpop.f32.mrf.mxu0
  %v1724 = vadd.f32 0.0, %v1723
  %v1725 = vpop.f32.mrf.mxu0
  %1726 = vdwg.mxu0
  %1727 = vrot.lane.b32.xlu0 %v1108, 112
  %v1728 = vpop.permute.xlu0 %1727
  %v1730 = vsel %vm39, %v1639, 0
  %v1733 = vsel %vm403, %v1728, 0
  %1735 = vmatpush.bf16.msra.mxu0 0
  %1736 = vmatpush.bf16.msra.mxu0 0
  %1737 = vmatpush.bf16.msra.mxu0 0
  %1738 = vmatpush.bf16.msra.mxu0 0
  %1739 = vmatpush.bf16.msra.mxu0 0
  %1740 = vmatpush.bf16.msra.mxu0 0
  %1741 = vmatpush.bf16.msra.mxu0 0
  %1742 = vmatpush.bf16.msra.mxu0 %v1733
  %1743 = vmatmul.bf16.gmra.mxu0 %v1730
  %v1744 = vpop.f32.mrf.mxu0
  %v1745 = vadd.f32 0.0, %v1744
  %v1746 = vpop.f32.mrf.mxu0
  %1747 = vdwg.mxu0
  %1748 = vrot.lane.b32.xlu0 %v1132, 112
  %v1749 = vpop.permute.xlu0 %1748
  %v1751 = vsel %vm39, %v1640, 0
  %v1754 = vsel %vm403, %v1749, 0
  %1756 = vmatpush.bf16.msra.mxu0 0
  %1757 = vmatpush.bf16.msra.mxu0 0
  %1758 = vmatpush.bf16.msra.mxu0 0
  %1759 = vmatpush.bf16.msra.mxu0 0
  %1760 = vmatpush.bf16.msra.mxu0 0
  %1761 = vmatpush.bf16.msra.mxu0 0
  %1762 = vmatpush.bf16.msra.mxu0 0
  %1763 = vmatpush.bf16.msra.mxu0 %v1754
  %1764 = vmatmul.bf16.gmra.mxu0 %v1751
  %v1765 = vpop.f32.mrf.mxu0
  %v1766 = vadd.f32 0.0, %v1765
  %v1767 = vpop.f32.mrf.mxu0
  %1768 = vdwg.mxu0
  %1769 = vrot.lane.b32.xlu0 %v1156, 112
  %v1770 = vpop.permute.xlu0 %1769
  %v1772 = vsel %vm39, %v1641, 0
  %v1775 = vsel %vm403, %v1770, 0
  %1777 = vmatpush.bf16.msra.mxu0 0
  %1778 = vmatpush.bf16.msra.mxu0 0
  %1779 = vmatpush.bf16.msra.mxu0 0
  %1780 = vmatpush.bf16.msra.mxu0 0
  %1781 = vmatpush.bf16.msra.mxu0 0
  %1782 = vmatpush.bf16.msra.mxu0 0
  %1783 = vmatpush.bf16.msra.mxu0 0
  %1784 = vmatpush.bf16.msra.mxu0 %v1775
  %1785 = vmatmul.bf16.gmra.mxu0 %v1772
  %v1786 = vpop.f32.mrf.mxu0
  %v1787 = vadd.f32 0.0, %v1786
  %v1788 = vpop.f32.mrf.mxu0
  %1789 = vdwg.mxu0
  %1790 = vrot.lane.b32.xlu0 %v1180, 112
  %v1791 = vpop.permute.xlu0 %1790
  %v1793 = vsel %vm39, %v1642, 0
  %v1796 = vsel %vm403, %v1791, 0
  %1798 = vmatpush.bf16.msra.mxu0 0
  %1799 = vmatpush.bf16.msra.mxu0 0
  %1800 = vmatpush.bf16.msra.mxu0 0
  %1801 = vmatpush.bf16.msra.mxu0 0
  %1802 = vmatpush.bf16.msra.mxu0 0
  %1803 = vmatpush.bf16.msra.mxu0 0
  %1804 = vmatpush.bf16.msra.mxu0 0
  %1805 = vmatpush.bf16.msra.mxu0 %v1796
  %1806 = vmatmul.bf16.gmra.mxu0 %v1793
  %v1807 = vpop.f32.mrf.mxu0
  %v1808 = vadd.f32 0.0, %v1807
  %v1809 = vpop.f32.mrf.mxu0
  %1810 = vdwg.mxu0
  %v1811 = vpack.c.bf16 %v1661, %v1661
  %v1812 = vpack.c.bf16 %v1682, %v1682
  %v1813 = vpack.c.bf16 %v1703, %v1703
  %v1814 = vpack.c.bf16 %v1724, %v1724
  %v1815 = vpack.c.bf16 %v1745, %v1745
  %v1816 = vpack.c.bf16 %v1766, %v1766
  %v1817 = vpack.c.bf16 %v1787, %v1787
  %v1818 = vpack.c.bf16 %v1808, %v1808
  %1827 = vrot.lane.b32.xlu0 %v1811, 16
  %v1828 = vpop.permute.xlu0 %1827
  %1829 = vrot.lane.b32.xlu0 %v1812, 16
  %v1830 = vpop.permute.xlu0 %1829
  %1831 = vrot.lane.b32.xlu0 %v1813, 16
  %v1832 = vpop.permute.xlu0 %1831
  %1833 = vrot.lane.b32.xlu0 %v1814, 16
  %v1834 = vpop.permute.xlu0 %1833
  %1835 = vrot.lane.b32.xlu0 %v1815, 16
  %v1836 = vpop.permute.xlu0 %1835
  %1837 = vrot.lane.b32.xlu0 %v1816, 16
  %v1838 = vpop.permute.xlu0 %1837
  %1839 = vrot.lane.b32.xlu0 %v1817, 16
  %v1840 = vpop.permute.xlu0 %1839
  %1841 = vrot.lane.b32.xlu0 %v1818, 16
  %v1842 = vpop.permute.xlu0 %1841
  %vm1851 = vcmask 191616
  %1852 = vst.msk [vmem:[%s3] sm:$0xf] %vm1851, %v1828
  %1853 = vst.msk [vmem:[%s3 + $0x4] sm:$0xf] %vm1851, %v1830
  %1854 = vst.msk [vmem:[%s3 + $0x8] sm:$0xf] %vm1851, %v1832
  %1855 = vst.msk [vmem:[%s3 + $0xc] sm:$0xf] %vm1851, %v1834
  %1856 = vst.msk [vmem:[%s3 + $0x10] sm:$0xf] %vm1851, %v1836
  %1857 = vst.msk [vmem:[%s3 + $0x14] sm:$0xf] %vm1851, %v1838
  %1858 = vst.msk [vmem:[%s3 + $0x18] sm:$0xf] %vm1851, %v1840
  %1859 = vst.msk [vmem:[%s3 + $0x1c] sm:$0xf] %vm1851, %v1842
  %1860 = vrot.lane.b32.xlu0 %v572, 104
  %v1861 = vpop.permute.xlu0 %1860
  %1862 = vrot.lane.b32.xlu0 %v577, 104
  %v1863 = vpop.permute.xlu0 %1862
  %v1865 = vsel %vm39, %v1861, 0
  %v1868 = vsel %vm39, %v1863, 0
  %1870 = vmatpush.bf16.xpose.msra.mxu0 0
  %1871 = vmatpush.bf16.xpose.msra.mxu0 0
  %1872 = vmatpush.bf16.xpose.msra.mxu0 0
  %1873 = vmatpush.bf16.xpose.msra.mxu0 0
  %1874 = vmatpush.bf16.xpose.msra.mxu0 0
  %1875 = vmatpush.bf16.xpose.msra.mxu0 0
  %1876 = vmatpush.bf16.xpose.msra.mxu0 0
  %1877 = vmatpush.bf16.xpose.msra.mxu0 %v1868
  %1878 = vmatmul.bf16.gmra.mxu0 %v1865
  %v1879 = vpop.f32.mrf.mxu0
  %v1880 = vadd.f32 0.0, %v1879
  %v1881 = vpop.f32.mrf.mxu0
  %1882 = vdwg.mxu0
  %1883 = vrot.lane.b32.xlu0 %v601, 104
  %v1884 = vpop.permute.xlu0 %1883
  %1885 = vrot.lane.b32.xlu0 %v606, 104
  %v1886 = vpop.permute.xlu0 %1885
  %v1888 = vsel %vm39, %v1884, 0
  %v1891 = vsel %vm39, %v1886, 0
  %1893 = vmatpush.bf16.xpose.msra.mxu0 0
  %1894 = vmatpush.bf16.xpose.msra.mxu0 0
  %1895 = vmatpush.bf16.xpose.msra.mxu0 0
  %1896 = vmatpush.bf16.xpose.msra.mxu0 0
  %1897 = vmatpush.bf16.xpose.msra.mxu0 0
  %1898 = vmatpush.bf16.xpose.msra.mxu0 0
  %1899 = vmatpush.bf16.xpose.msra.mxu0 0
  %1900 = vmatpush.bf16.xpose.msra.mxu0 %v1891
  %1901 = vmatmul.bf16.gmra.mxu0 %v1888
  %v1902 = vpop.f32.mrf.mxu0
  %v1903 = vadd.f32 0.0, %v1902
  %v1904 = vpop.f32.mrf.mxu0
  %1905 = vdwg.mxu0
  %1906 = vrot.lane.b32.xlu0 %v630, 104
  %v1907 = vpop.permute.xlu0 %1906
  %1908 = vrot.lane.b32.xlu0 %v635, 104
  %v1909 = vpop.permute.xlu0 %1908
  %v1911 = vsel %vm39, %v1907, 0
  %v1914 = vsel %vm39, %v1909, 0
  %1916 = vmatpush.bf16.xpose.msra.mxu0 0
  %1917 = vmatpush.bf16.xpose.msra.mxu0 0
  %1918 = vmatpush.bf16.xpose.msra.mxu0 0
  %1919 = vmatpush.bf16.xpose.msra.mxu0 0
  %1920 = vmatpush.bf16.xpose.msra.mxu0 0
  %1921 = vmatpush.bf16.xpose.msra.mxu0 0
  %1922 = vmatpush.bf16.xpose.msra.mxu0 0
  %1923 = vmatpush.bf16.xpose.msra.mxu0 %v1914
  %1924 = vmatmul.bf16.gmra.mxu0 %v1911
  %v1925 = vpop.f32.mrf.mxu0
  %v1926 = vadd.f32 0.0, %v1925
  %v1927 = vpop.f32.mrf.mxu0
  %1928 = vdwg.mxu0
  %1929 = vrot.lane.b32.xlu0 %v659, 104
  %v1930 = vpop.permute.xlu0 %1929
  %1931 = vrot.lane.b32.xlu0 %v664, 104
  %v1932 = vpop.permute.xlu0 %1931
  %v1934 = vsel %vm39, %v1930, 0
  %v1937 = vsel %vm39, %v1932, 0
  %1939 = vmatpush.bf16.xpose.msra.mxu0 0
  %1940 = vmatpush.bf16.xpose.msra.mxu0 0
  %1941 = vmatpush.bf16.xpose.msra.mxu0 0
  %1942 = vmatpush.bf16.xpose.msra.mxu0 0
  %1943 = vmatpush.bf16.xpose.msra.mxu0 0
  %1944 = vmatpush.bf16.xpose.msra.mxu0 0
  %1945 = vmatpush.bf16.xpose.msra.mxu0 0
  %1946 = vmatpush.bf16.xpose.msra.mxu0 %v1937
  %1947 = vmatmul.bf16.gmra.mxu0 %v1934
  %v1948 = vpop.f32.mrf.mxu0
  %v1949 = vadd.f32 0.0, %v1948
  %v1950 = vpop.f32.mrf.mxu0
  %1951 = vdwg.mxu0
  %1952 = vrot.lane.b32.xlu0 %v688, 104
  %v1953 = vpop.permute.xlu0 %1952
  %1954 = vrot.lane.b32.xlu0 %v693, 104
  %v1955 = vpop.permute.xlu0 %1954
  %v1957 = vsel %vm39, %v1953, 0
  %v1960 = vsel %vm39, %v1955, 0
  %1962 = vmatpush.bf16.xpose.msra.mxu0 0
  %1963 = vmatpush.bf16.xpose.msra.mxu0 0
  %1964 = vmatpush.bf16.xpose.msra.mxu0 0
  %1965 = vmatpush.bf16.xpose.msra.mxu0 0
  %1966 = vmatpush.bf16.xpose.msra.mxu0 0
  %1967 = vmatpush.bf16.xpose.msra.mxu0 0
  %1968 = vmatpush.bf16.xpose.msra.mxu0 0
  %1969 = vmatpush.bf16.xpose.msra.mxu0 %v1960
  %1970 = vmatmul.bf16.gmra.mxu0 %v1957
  %v1971 = vpop.f32.mrf.mxu0
  %v1972 = vadd.f32 0.0, %v1971
  %v1973 = vpop.f32.mrf.mxu0
  %1974 = vdwg.mxu0
  %1975 = vrot.lane.b32.xlu0 %v717, 104
  %v1976 = vpop.permute.xlu0 %1975
  %1977 = vrot.lane.b32.xlu0 %v722, 104
  %v1978 = vpop.permute.xlu0 %1977
  %v1980 = vsel %vm39, %v1976, 0
  %v1983 = vsel %vm39, %v1978, 0
  %1985 = vmatpush.bf16.xpose.msra.mxu0 0
  %1986 = vmatpush.bf16.xpose.msra.mxu0 0
  %1987 = vmatpush.bf16.xpose.msra.mxu0 0
  %1988 = vmatpush.bf16.xpose.msra.mxu0 0
  %1989 = vmatpush.bf16.xpose.msra.mxu0 0
  %1990 = vmatpush.bf16.xpose.msra.mxu0 0
  %1991 = vmatpush.bf16.xpose.msra.mxu0 0
  %1992 = vmatpush.bf16.xpose.msra.mxu0 %v1983
  %1993 = vmatmul.bf16.gmra.mxu0 %v1980
  %v1994 = vpop.f32.mrf.mxu0
  %v1995 = vadd.f32 0.0, %v1994
  %v1996 = vpop.f32.mrf.mxu0
  %1997 = vdwg.mxu0
  %1998 = vrot.lane.b32.xlu0 %v746, 104
  %v1999 = vpop.permute.xlu0 %1998
  %2000 = vrot.lane.b32.xlu0 %v751, 104
  %v2001 = vpop.permute.xlu0 %2000
  %v2003 = vsel %vm39, %v1999, 0
  %v2006 = vsel %vm39, %v2001, 0
  %2008 = vmatpush.bf16.xpose.msra.mxu0 0
  %2009 = vmatpush.bf16.xpose.msra.mxu0 0
  %2010 = vmatpush.bf16.xpose.msra.mxu0 0
  %2011 = vmatpush.bf16.xpose.msra.mxu0 0
  %2012 = vmatpush.bf16.xpose.msra.mxu0 0
  %2013 = vmatpush.bf16.xpose.msra.mxu0 0
  %2014 = vmatpush.bf16.xpose.msra.mxu0 0
  %2015 = vmatpush.bf16.xpose.msra.mxu0 %v2006
  %2016 = vmatmul.bf16.gmra.mxu0 %v2003
  %v2017 = vpop.f32.mrf.mxu0
  %v2018 = vadd.f32 0.0, %v2017
  %v2019 = vpop.f32.mrf.mxu0
  %2020 = vdwg.mxu0
  %2021 = vrot.lane.b32.xlu0 %v775, 104
  %v2022 = vpop.permute.xlu0 %2021
  %2023 = vrot.lane.b32.xlu0 %v780, 104
  %v2024 = vpop.permute.xlu0 %2023
  %v2026 = vsel %vm39, %v2022, 0
  %v2029 = vsel %vm39, %v2024, 0
  %2031 = vmatpush.bf16.xpose.msra.mxu0 0
  %2032 = vmatpush.bf16.xpose.msra.mxu0 0
  %2033 = vmatpush.bf16.xpose.msra.mxu0 0
  %2034 = vmatpush.bf16.xpose.msra.mxu0 0
  %2035 = vmatpush.bf16.xpose.msra.mxu0 0
  %2036 = vmatpush.bf16.xpose.msra.mxu0 0
  %2037 = vmatpush.bf16.xpose.msra.mxu0 0
  %2038 = vmatpush.bf16.xpose.msra.mxu0 %v2029
  %2039 = vmatmul.bf16.gmra.mxu0 %v2026
  %v2040 = vpop.f32.mrf.mxu0
  %v2041 = vadd.f32 0.0, %v2040
  %v2042 = vpop.f32.mrf.mxu0
  %2043 = vdwg.mxu0
  %v2044 = vmul.f32 %v1880, 0.35355338
  %v2045 = vmul.f32 %v1903, 0.35355338
  %v2046 = vmul.f32 %v1926, 0.35355338
  %v2047 = vmul.f32 %v1949, 0.35355338
  %v2048 = vmul.f32 %v1972, 0.35355338
  %v2049 = vmul.f32 %v1995, 0.35355338
  %v2050 = vmul.f32 %v2018, 0.35355338
  %v2051 = vmul.f32 %v2041, 0.35355338
  %v2052 = vsel %vm39, %v2044, -inf
  %2053 = vmax.xlane.f32.xlu0 %v2052
  %v2054 = vpop.xlane.xlu0 %2053
  %v2055 = vsel %vm39, %v2045, -inf
  %2056 = vmax.xlane.f32.xlu0 %v2055
  %v2057 = vpop.xlane.xlu0 %2056
  %v2058 = vsel %vm39, %v2046, -inf
  %2059 = vmax.xlane.f32.xlu0 %v2058
  %v2060 = vpop.xlane.xlu0 %2059
  %v2061 = vsel %vm39, %v2047, -inf
  %2062 = vmax.xlane.f32.xlu0 %v2061
  %v2063 = vpop.xlane.xlu0 %2062
  %v2064 = vsel %vm39, %v2048, -inf
  %2065 = vmax.xlane.f32.xlu0 %v2064
  %v2066 = vpop.xlane.xlu0 %2065
  %v2067 = vsel %vm39, %v2049, -inf
  %2068 = vmax.xlane.f32.xlu0 %v2067
  %v2069 = vpop.xlane.xlu0 %2068
  %v2070 = vsel %vm39, %v2050, -inf
  %2071 = vmax.xlane.f32.xlu0 %v2070
  %v2072 = vpop.xlane.xlu0 %2071
  %v2073 = vsel %vm39, %v2051, -inf
  %2074 = vmax.xlane.f32.xlu0 %v2073
  %v2075 = vpop.xlane.xlu0 %2074
  %v2076 = vsub.f32 %v2044, %v2054
  %v2077 = vsub.f32 %v2045, %v2057
  %v2078 = vsub.f32 %v2046, %v2060
  %v2079 = vsub.f32 %v2047, %v2063
  %v2080 = vsub.f32 %v2048, %v2066
  %v2081 = vsub.f32 %v2049, %v2069
  %v2082 = vsub.f32 %v2050, %v2072
  %v2083 = vsub.f32 %v2051, %v2075
  %v2084 = vmul.f32 %v2076, 1.442695
  %v2085 = vpow.pop %v2084
  %v2086 = vmul.f32 %v2077, 1.442695
  %v2087 = vpow.pop %v2086
  %v2088 = vmul.f32 %v2078, 1.442695
  %v2089 = vpow.pop %v2088
  %v2090 = vmul.f32 %v2079, 1.442695
  %v2091 = vpow.pop %v2090
  %v2092 = vmul.f32 %v2080, 1.442695
  %v2093 = vpow.pop %v2092
  %v2094 = vmul.f32 %v2081, 1.442695
  %v2095 = vpow.pop %v2094
  %v2096 = vmul.f32 %v2082, 1.442695
  %v2097 = vpow.pop %v2096
  %v2098 = vmul.f32 %v2083, 1.442695
  %v2099 = vpow.pop %v2098
  %v2100 = vsel %vm39, %v2085, 0.0
  %2101 = vadd.xlane.f32.xlu0 %v2100
  %v2102 = vpop.xlane.xlu0 %2101
  %v2103 = vsel %vm39, %v2087, 0.0
  %2104 = vadd.xlane.f32.xlu0 %v2103
  %v2105 = vpop.xlane.xlu0 %2104
  %v2106 = vsel %vm39, %v2089, 0.0
  %2107 = vadd.xlane.f32.xlu0 %v2106
  %v2108 = vpop.xlane.xlu0 %2107
  %v2109 = vsel %vm39, %v2091, 0.0
  %2110 = vadd.xlane.f32.xlu0 %v2109
  %v2111 = vpop.xlane.xlu0 %2110
  %v2112 = vsel %vm39, %v2093, 0.0
  %2113 = vadd.xlane.f32.xlu0 %v2112
  %v2114 = vpop.xlane.xlu0 %2113
  %v2115 = vsel %vm39, %v2095, 0.0
  %2116 = vadd.xlane.f32.xlu0 %v2115
  %v2117 = vpop.xlane.xlu0 %2116
  %v2118 = vsel %vm39, %v2097, 0.0
  %2119 = vadd.xlane.f32.xlu0 %v2118
  %v2120 = vpop.xlane.xlu0 %2119
  %v2121 = vsel %vm39, %v2099, 0.0
  %2122 = vadd.xlane.f32.xlu0 %v2121
  %v2123 = vpop.xlane.xlu0 %2122
  %v2124 = vrcp.pop %v2102
  %v2125 = vmul.f32 %v2102, %v2124
  %v2126 = vsub.f32 1.0, %v2125
  %v2127 = vmul.f32 %v2124, %v2126
  %v2128 = vadd.f32 %v2124, %v2127
  %vm2129 = vweird.f32 %v2102
  %vm2130 = vweird.f32 %v2124
  %vm2131 = vmor %vm2129, %vm2130
  %v2132 = vsel %vm2131, %v2124, %v2128
  %v2133 = vand.u32 2147483647, %v2102
  %vm2134 = vcmp.eq.f32.partialorder %v2133, 8.507059e+37
  %v2135 = vand.u32 %v2102, 2147483648
  %v2136 = vor.u32 1.1754944e-38, %v2135
  %v2137 = vsel %vm2134, %v2136, %v2132
  %v2138 = vmul.f32 %v2085, %v2137
  %v2139 = vrcp.pop %v2105
  %v2140 = vmul.f32 %v2105, %v2139
  %v2141 = vsub.f32 1.0, %v2140
  %v2142 = vmul.f32 %v2139, %v2141
  %v2143 = vadd.f32 %v2139, %v2142
  %vm2144 = vweird.f32 %v2105
  %vm2145 = vweird.f32 %v2139
  %vm2146 = vmor %vm2144, %vm2145
  %v2147 = vsel %vm2146, %v2139, %v2143
  %v2148 = vand.u32 2147483647, %v2105
  %vm2149 = vcmp.eq.f32.partialorder %v2148, 8.507059e+37
  %v2150 = vand.u32 %v2105, 2147483648
  %v2151 = vor.u32 1.1754944e-38, %v2150
  %v2152 = vsel %vm2149, %v2151, %v2147
  %v2153 = vmul.f32 %v2087, %v2152
  %v2154 = vrcp.pop %v2108
  %v2155 = vmul.f32 %v2108, %v2154
  %v2156 = vsub.f32 1.0, %v2155
  %v2157 = vmul.f32 %v2154, %v2156
  %v2158 = vadd.f32 %v2154, %v2157
  %vm2159 = vweird.f32 %v2108
  %vm2160 = vweird.f32 %v2154
  %vm2161 = vmor %vm2159, %vm2160
  %v2162 = vsel %vm2161, %v2154, %v2158
  %v2163 = vand.u32 2147483647, %v2108
  %vm2164 = vcmp.eq.f32.partialorder %v2163, 8.507059e+37
  %v2165 = vand.u32 %v2108, 2147483648
  %v2166 = vor.u32 1.1754944e-38, %v2165
  %v2167 = vsel %vm2164, %v2166, %v2162
  %v2168 = vmul.f32 %v2089, %v2167
  %v2169 = vrcp.pop %v2111
  %v2170 = vmul.f32 %v2111, %v2169
  %v2171 = vsub.f32 1.0, %v2170
  %v2172 = vmul.f32 %v2169, %v2171
  %v2173 = vadd.f32 %v2169, %v2172
  %vm2174 = vweird.f32 %v2111
  %vm2175 = vweird.f32 %v2169
  %vm2176 = vmor %vm2174, %vm2175
  %v2177 = vsel %vm2176, %v2169, %v2173
  %v2178 = vand.u32 2147483647, %v2111
  %vm2179 = vcmp.eq.f32.partialorder %v2178, 8.507059e+37
  %v2180 = vand.u32 %v2111, 2147483648
  %v2181 = vor.u32 1.1754944e-38, %v2180
  %v2182 = vsel %vm2179, %v2181, %v2177
  %v2183 = vmul.f32 %v2091, %v2182
  %v2184 = vrcp.pop %v2114
  %v2185 = vmul.f32 %v2114, %v2184
  %v2186 = vsub.f32 1.0, %v2185
  %v2187 = vmul.f32 %v2184, %v2186
  %v2188 = vadd.f32 %v2184, %v2187
  %vm2189 = vweird.f32 %v2114
  %vm2190 = vweird.f32 %v2184
  %vm2191 = vmor %vm2189, %vm2190
  %v2192 = vsel %vm2191, %v2184, %v2188
  %v2193 = vand.u32 2147483647, %v2114
  %vm2194 = vcmp.eq.f32.partialorder %v2193, 8.507059e+37
  %v2195 = vand.u32 %v2114, 2147483648
  %v2196 = vor.u32 1.1754944e-38, %v2195
  %v2197 = vsel %vm2194, %v2196, %v2192
  %v2198 = vmul.f32 %v2093, %v2197
  %v2199 = vrcp.pop %v2117
  %v2200 = vmul.f32 %v2117, %v2199
  %v2201 = vsub.f32 1.0, %v2200
  %v2202 = vmul.f32 %v2199, %v2201
  %v2203 = vadd.f32 %v2199, %v2202
  %vm2204 = vweird.f32 %v2117
  %vm2205 = vweird.f32 %v2199
  %vm2206 = vmor %vm2204, %vm2205
  %v2207 = vsel %vm2206, %v2199, %v2203
  %v2208 = vand.u32 2147483647, %v2117
  %vm2209 = vcmp.eq.f32.partialorder %v2208, 8.507059e+37
  %v2210 = vand.u32 %v2117, 2147483648
  %v2211 = vor.u32 1.1754944e-38, %v2210
  %v2212 = vsel %vm2209, %v2211, %v2207
  %v2213 = vmul.f32 %v2095, %v2212
  %v2214 = vrcp.pop %v2120
  %v2215 = vmul.f32 %v2120, %v2214
  %v2216 = vsub.f32 1.0, %v2215
  %v2217 = vmul.f32 %v2214, %v2216
  %v2218 = vadd.f32 %v2214, %v2217
  %vm2219 = vweird.f32 %v2120
  %vm2220 = vweird.f32 %v2214
  %vm2221 = vmor %vm2219, %vm2220
  %v2222 = vsel %vm2221, %v2214, %v2218
  %v2223 = vand.u32 2147483647, %v2120
  %vm2224 = vcmp.eq.f32.partialorder %v2223, 8.507059e+37
  %v2225 = vand.u32 %v2120, 2147483648
  %v2226 = vor.u32 1.1754944e-38, %v2225
  %v2227 = vsel %vm2224, %v2226, %v2222
  %v2228 = vmul.f32 %v2097, %v2227
  %v2229 = vrcp.pop %v2123
  %v2230 = vmul.f32 %v2123, %v2229
  %v2231 = vsub.f32 1.0, %v2230
  %v2232 = vmul.f32 %v2229, %v2231
  %v2233 = vadd.f32 %v2229, %v2232
  %vm2234 = vweird.f32 %v2123
  %vm2235 = vweird.f32 %v2229
  %vm2236 = vmor %vm2234, %vm2235
  %v2237 = vsel %vm2236, %v2229, %v2233
  %v2238 = vand.u32 2147483647, %v2123
  %vm2239 = vcmp.eq.f32.partialorder %v2238, 8.507059e+37
  %v2240 = vand.u32 %v2123, 2147483648
  %v2241 = vor.u32 1.1754944e-38, %v2240
  %v2242 = vsel %vm2239, %v2241, %v2237
  %v2243 = vmul.f32 %v2099, %v2242
  %v2244 = vpack.c.bf16 %v2138, %v2138
  %v2245 = vpack.c.bf16 %v2153, %v2153
  %v2246 = vpack.c.bf16 %v2168, %v2168
  %v2247 = vpack.c.bf16 %v2183, %v2183
  %v2248 = vpack.c.bf16 %v2198, %v2198
  %v2249 = vpack.c.bf16 %v2213, %v2213
  %v2250 = vpack.c.bf16 %v2228, %v2228
  %v2251 = vpack.c.bf16 %v2243, %v2243
  %2252 = vrot.lane.b32.xlu0 %v1012, 104
  %v2253 = vpop.permute.xlu0 %2252
  %v2255 = vsel %vm39, %v2244, 0
  %v2258 = vsel %vm403, %v2253, 0
  %2260 = vmatpush.bf16.msra.mxu0 0
  %2261 = vmatpush.bf16.msra.mxu0 0
  %2262 = vmatpush.bf16.msra.mxu0 0
  %2263 = vmatpush.bf16.msra.mxu0 0
  %2264 = vmatpush.bf16.msra.mxu0 0
  %2265 = vmatpush.bf16.msra.mxu0 0
  %2266 = vmatpush.bf16.msra.mxu0 0
  %2267 = vmatpush.bf16.msra.mxu0 %v2258
  %2268 = vmatmul.bf16.gmra.mxu0 %v2255
  %v2269 = vpop.f32.mrf.mxu0
  %v2270 = vadd.f32 0.0, %v2269
  %v2271 = vpop.f32.mrf.mxu0
  %2272 = vdwg.mxu0
  %2273 = vrot.lane.b32.xlu0 %v1036, 104
  %v2274 = vpop.permute.xlu0 %2273
  %v2276 = vsel %vm39, %v2245, 0
  %v2279 = vsel %vm403, %v2274, 0
  %2281 = vmatpush.bf16.msra.mxu0 0
  %2282 = vmatpush.bf16.msra.mxu0 0
  %2283 = vmatpush.bf16.msra.mxu0 0
  %2284 = vmatpush.bf16.msra.mxu0 0
  %2285 = vmatpush.bf16.msra.mxu0 0
  %2286 = vmatpush.bf16.msra.mxu0 0
  %2287 = vmatpush.bf16.msra.mxu0 0
  %2288 = vmatpush.bf16.msra.mxu0 %v2279
  %2289 = vmatmul.bf16.gmra.mxu0 %v2276
  %v2290 = vpop.f32.mrf.mxu0
  %v2291 = vadd.f32 0.0, %v2290
  %v2292 = vpop.f32.mrf.mxu0
  %2293 = vdwg.mxu0
  %2294 = vrot.lane.b32.xlu0 %v1060, 104
  %v2295 = vpop.permute.xlu0 %2294
  %v2297 = vsel %vm39, %v2246, 0
  %v2300 = vsel %vm403, %v2295, 0
  %2302 = vmatpush.bf16.msra.mxu0 0
  %2303 = vmatpush.bf16.msra.mxu0 0
  %2304 = vmatpush.bf16.msra.mxu0 0
  %2305 = vmatpush.bf16.msra.mxu0 0
  %2306 = vmatpush.bf16.msra.mxu0 0
  %2307 = vmatpush.bf16.msra.mxu0 0
  %2308 = vmatpush.bf16.msra.mxu0 0
  %2309 = vmatpush.bf16.msra.mxu0 %v2300
  %2310 = vmatmul.bf16.gmra.mxu0 %v2297
  %v2311 = vpop.f32.mrf.mxu0
  %v2312 = vadd.f32 0.0, %v2311
  %v2313 = vpop.f32.mrf.mxu0
  %2314 = vdwg.mxu0
  %2315 = vrot.lane.b32.xlu0 %v1084, 104
  %v2316 = vpop.permute.xlu0 %2315
  %v2318 = vsel %vm39, %v2247, 0
  %v2321 = vsel %vm403, %v2316, 0
  %2323 = vmatpush.bf16.msra.mxu0 0
  %2324 = vmatpush.bf16.msra.mxu0 0
  %2325 = vmatpush.bf16.msra.mxu0 0
  %2326 = vmatpush.bf16.msra.mxu0 0
  %2327 = vmatpush.bf16.msra.mxu0 0
  %2328 = vmatpush.bf16.msra.mxu0 0
  %2329 = vmatpush.bf16.msra.mxu0 0
  %2330 = vmatpush.bf16.msra.mxu0 %v2321
  %2331 = vmatmul.bf16.gmra.mxu0 %v2318
  %v2332 = vpop.f32.mrf.mxu0
  %v2333 = vadd.f32 0.0, %v2332
  %v2334 = vpop.f32.mrf.mxu0
  %2335 = vdwg.mxu0
  %2336 = vrot.lane.b32.xlu0 %v1108, 104
  %v2337 = vpop.permute.xlu0 %2336
  %v2339 = vsel %vm39, %v2248, 0
  %v2342 = vsel %vm403, %v2337, 0
  %2344 = vmatpush.bf16.msra.mxu0 0
  %2345 = vmatpush.bf16.msra.mxu0 0
  %2346 = vmatpush.bf16.msra.mxu0 0
  %2347 = vmatpush.bf16.msra.mxu0 0
  %2348 = vmatpush.bf16.msra.mxu0 0
  %2349 = vmatpush.bf16.msra.mxu0 0
  %2350 = vmatpush.bf16.msra.mxu0 0
  %2351 = vmatpush.bf16.msra.mxu0 %v2342
  %2352 = vmatmul.bf16.gmra.mxu0 %v2339
  %v2353 = vpop.f32.mrf.mxu0
  %v2354 = vadd.f32 0.0, %v2353
  %v2355 = vpop.f32.mrf.mxu0
  %2356 = vdwg.mxu0
  %2357 = vrot.lane.b32.xlu0 %v1132, 104
  %v2358 = vpop.permute.xlu0 %2357
  %v2360 = vsel %vm39, %v2249, 0
  %v2363 = vsel %vm403, %v2358, 0
  %2365 = vmatpush.bf16.msra.mxu0 0
  %2366 = vmatpush.bf16.msra.mxu0 0
  %2367 = vmatpush.bf16.msra.mxu0 0
  %2368 = vmatpush.bf16.msra.mxu0 0
  %2369 = vmatpush.bf16.msra.mxu0 0
  %2370 = vmatpush.bf16.msra.mxu0 0
  %2371 = vmatpush.bf16.msra.mxu0 0
  %2372 = vmatpush.bf16.msra.mxu0 %v2363
  %2373 = vmatmul.bf16.gmra.mxu0 %v2360
  %v2374 = vpop.f32.mrf.mxu0
  %v2375 = vadd.f32 0.0, %v2374
  %v2376 = vpop.f32.mrf.mxu0
  %2377 = vdwg.mxu0
  %2378 = vrot.lane.b32.xlu0 %v1156, 104
  %v2379 = vpop.permute.xlu0 %2378
  %v2381 = vsel %vm39, %v2250, 0
  %v2384 = vsel %vm403, %v2379, 0
  %2386 = vmatpush.bf16.msra.mxu0 0
  %2387 = vmatpush.bf16.msra.mxu0 0
  %2388 = vmatpush.bf16.msra.mxu0 0
  %2389 = vmatpush.bf16.msra.mxu0 0
  %2390 = vmatpush.bf16.msra.mxu0 0
  %2391 = vmatpush.bf16.msra.mxu0 0
  %2392 = vmatpush.bf16.msra.mxu0 0
  %2393 = vmatpush.bf16.msra.mxu0 %v2384
  %2394 = vmatmul.bf16.gmra.mxu0 %v2381
  %v2395 = vpop.f32.mrf.mxu0
  %v2396 = vadd.f32 0.0, %v2395
  %v2397 = vpop.f32.mrf.mxu0
  %2398 = vdwg.mxu0
  %2399 = vrot.lane.b32.xlu0 %v1180, 104
  %v2400 = vpop.permute.xlu0 %2399
  %v2402 = vsel %vm39, %v2251, 0
  %v2405 = vsel %vm403, %v2400, 0
  %2407 = vmatpush.bf16.msra.mxu0 0
  %2408 = vmatpush.bf16.msra.mxu0 0
  %2409 = vmatpush.bf16.msra.mxu0 0
  %2410 = vmatpush.bf16.msra.mxu0 0
  %2411 = vmatpush.bf16.msra.mxu0 0
  %2412 = vmatpush.bf16.msra.mxu0 0
  %2413 = vmatpush.bf16.msra.mxu0 0
  %2414 = vmatpush.bf16.msra.mxu0 %v2405
  %2415 = vmatmul.bf16.gmra.mxu0 %v2402
  %v2416 = vpop.f32.mrf.mxu0
  %v2417 = vadd.f32 0.0, %v2416
  %v2418 = vpop.f32.mrf.mxu0
  %2419 = vdwg.mxu0
  %v2420 = vpack.c.bf16 %v2270, %v2270
  %v2421 = vpack.c.bf16 %v2291, %v2291
  %v2422 = vpack.c.bf16 %v2312, %v2312
  %v2423 = vpack.c.bf16 %v2333, %v2333
  %v2424 = vpack.c.bf16 %v2354, %v2354
  %v2425 = vpack.c.bf16 %v2375, %v2375
  %v2426 = vpack.c.bf16 %v2396, %v2396
  %v2427 = vpack.c.bf16 %v2417, %v2417
  %2436 = vrot.lane.b32.xlu0 %v2420, 24
  %v2437 = vpop.permute.xlu0 %2436
  %2438 = vrot.lane.b32.xlu0 %v2421, 24
  %v2439 = vpop.permute.xlu0 %2438
  %2440 = vrot.lane.b32.xlu0 %v2422, 24
  %v2441 = vpop.permute.xlu0 %2440
  %2442 = vrot.lane.b32.xlu0 %v2423, 24
  %v2443 = vpop.permute.xlu0 %2442
  %2444 = vrot.lane.b32.xlu0 %v2424, 24
  %v2445 = vpop.permute.xlu0 %2444
  %2446 = vrot.lane.b32.xlu0 %v2425, 24
  %v2447 = vpop.permute.xlu0 %2446
  %2448 = vrot.lane.b32.xlu0 %v2426, 24
  %v2449 = vpop.permute.xlu0 %2448
  %2450 = vrot.lane.b32.xlu0 %v2427, 24
  %v2451 = vpop.permute.xlu0 %2450
  %vm2460 = vcmask 257216
  %2461 = vst.msk [vmem:[%s3] sm:$0xf] %vm2460, %v2437
  %2462 = vst.msk [vmem:[%s3 + $0x4] sm:$0xf] %vm2460, %v2439
  %2463 = vst.msk [vmem:[%s3 + $0x8] sm:$0xf] %vm2460, %v2441
  %2464 = vst.msk [vmem:[%s3 + $0xc] sm:$0xf] %vm2460, %v2443
  %2465 = vst.msk [vmem:[%s3 + $0x10] sm:$0xf] %vm2460, %v2445
  %2466 = vst.msk [vmem:[%s3 + $0x14] sm:$0xf] %vm2460, %v2447
  %2467 = vst.msk [vmem:[%s3 + $0x18] sm:$0xf] %vm2460, %v2449
  %2468 = vst.msk [vmem:[%s3 + $0x1c] sm:$0xf] %vm2460, %v2451
  // Predicated region
  $region14: #{_lambda_.20} parent=0 // pred_check
    _
  $region15: #{_lambda_.20} parent=0 // pred_check_branch
    %2470 = sbr.rel (0) target = $region17
  $region16: #{_lambda_.20} parent=0 // pred_region
    _
  $region17: #{_lambda_.20} parent=0 // pred_fallthru
    _
  // Predicated region
  $region18: #{_lambda_.20} parent=0 // pred_check
    _
  $region19: #{_lambda_.20} parent=0 // pred_check_branch
    %2472 = sbr.rel (0) target = $region21
  $region20: #{_lambda_.20} parent=0 // pred_region
    _
  $region21: #{_lambda_.20} parent=0 // pred_fallthru
    _

// kernel: _lambda_.33
$region0: #{_lambda_.33}
  #allocation0 [shape = 'u32[]', space=smem, size = 0x4, offset = 0x4, fixed_abs, tag = 'smem constant byte address 0x4 - core index']
  #allocation1 [shape = 'u32[72,128]{1,0:T(1,128)}', space=vmem, size = 0x9000, scoped, tag = 'internal scratch']
  #allocation2 [shape = 'f32[64,64]{1,0:T(8,128)}', space=vmem, size = 0x8000, scoped, tag = 'scratch operand']
  %s0 = inlined_call_operand.vmem [shape: bf16[64,32], index: 0, kind: input, shape index: {}]
  %s1 = inlined_call_operand.vmem [shape: bf16[32,64], index: 1, kind: input, shape index: {}]
  %s2 = inlined_call_operand.vmem [shape: f32[1,64], index: 2, kind: input, shape index: {}]
  %s3 = inlined_call_operand.hbm [shape: f32[64,64], index: 3, kind: output, shape index: {}]
  %s4 = sld [smem:[#allocation0]]
  $region30: #{_lambda_.33} parent=0
    _
  %s6 = ssub.s32 1, %s4
  %s7 = scalar_select 0, %s6, %s4
  $region1: #{_lambda_.33} parent=0
    #allocation3 [shape = 'u8[32768]{0}', space=vmem, size = 0x8000, scoped, tag = 'output window, operand 0, single buffered']
    #allocation4 [shape = 's32[1]{0}', space=sflag, size = 0x4, scoped, tag = 'scoped memory for _lambda_.33']
    %8 = vsyncpa [#allocation4], 0
    // Predicated region
    $region2: #{_lambda_.33} parent=1 // pred_check
      _
    $region3: #{_lambda_.33} parent=1 // pred_check_branch
      %10 = sbr.rel (0) target = $region5
    $region4: #{_lambda_.33} parent=1 // pred_region
      _
    $region5: #{_lambda_.33} parent=1 // pred_fallthru
      _
    // Predicated region
    $region6: #{_lambda_.33} parent=1 // pred_check
      _
    $region7: #{_lambda_.33} parent=1 // pred_check_branch
      %12 = sbr.rel (0) target = $region9
    $region8: #{_lambda_.33} parent=1 // pred_region
      _
    $region9: #{_lambda_.33} parent=1 // pred_fallthru
      _
    // Predicated region
    $region10: #{_lambda_.33} parent=1 // pred_check
      _
    $region11: #{_lambda_.33} parent=1 // pred_check_branch
      %14 = sbr.rel (0) target = $region13
    $region12: #{_lambda_.33} parent=1 // pred_region
      _
    $region13: #{_lambda_.33} parent=1 // pred_fallthru
      _
    %p16 = scmp.eq.s32.totalorder 0, 0
    // Predicated region
    $region14: #{_lambda_.33} parent=1 // pred_check
      %p17 = pneg %p16
    $region15: #{_lambda_.33} parent=1 // pred_check_branch
      %19 = sbr.rel (%p17) target = $region17
    $region16: #{_lambda_.33} parent=1 // pred_region
      %vm20 = vcmask 523264
      %21 = vst.msk [vmem:[#allocation2] sm:$0xff] %vm20, 0.0
      %22 = vst.msk [vmem:[#allocation2 + $0x8] sm:$0xff] %vm20, 0.0
      %23 = vst.msk [vmem:[#allocation2 + $0x10] sm:$0xff] %vm20, 0.0
      %24 = vst.msk [vmem:[#allocation2 + $0x18] sm:$0xff] %vm20, 0.0
      %25 = vst.msk [vmem:[#allocation2 + $0x20] sm:$0xff] %vm20, 0.0
      %26 = vst.msk [vmem:[#allocation2 + $0x28] sm:$0xff] %vm20, 0.0
      %27 = vst.msk [vmem:[#allocation2 + $0x30] sm:$0xff] %vm20, 0.0
      %28 = vst.msk [vmem:[#allocation2 + $0x38] sm:$0xff] %vm20, 0.0
    $region17: #{_lambda_.33} parent=1 // pred_fallthru
      _
    %v29 = vld [vmem:[#allocation2] sm:$0xff]
    %v30 = vld [vmem:[#allocation2 + $0x8] sm:$0xff]
    %v31 = vld [vmem:[#allocation2 + $0x10] sm:$0xff]
    %v32 = vld [vmem:[#allocation2 + $0x18] sm:$0xff]
    %v33 = vld [vmem:[#allocation2 + $0x20] sm:$0xff]
    %v34 = vld [vmem:[#allocation2 + $0x28] sm:$0xff]
    %v35 = vld [vmem:[#allocation2 + $0x30] sm:$0xff]
    %v36 = vld [vmem:[#allocation2 + $0x38] sm:$0xff]
    %v37 = vld [vmem:[%s0] sm:$0xf]
    %v38 = vld [vmem:[%s0 + $0x4] sm:$0xf]
    %v39 = vld [vmem:[%s0 + $0x8] sm:$0xf]
    %v40 = vld [vmem:[%s0 + $0xc] sm:$0xf]
    %v41 = vld [vmem:[%s0 + $0x10] sm:$0xf]
    %v42 = vld [vmem:[%s0 + $0x14] sm:$0xf]
    %v43 = vld [vmem:[%s0 + $0x18] sm:$0xf]
    %v44 = vld [vmem:[%s0 + $0x1c] sm:$0xf]
    %v45 = vld [vmem:[%s1] sm:$0xf]
    %v46 = vld [vmem:[%s1 + $0x4] sm:$0xf]
    %v47 = vld [vmem:[%s1 + $0x8] sm:$0xf]
    %v48 = vld [vmem:[%s1 + $0xc] sm:$0xf]
    %v57 = vunpack.c.l.b16 %v37
    %v58 = vunpack.c.l.b16 %v38
    %v59 = vunpack.c.l.b16 %v39
    %v60 = vunpack.c.l.b16 %v40
    %v61 = vunpack.c.l.b16 %v41
    %v62 = vunpack.c.l.b16 %v42
    %v63 = vunpack.c.l.b16 %v43
    %v64 = vunpack.c.l.b16 %v44
    %v65 = vpack.c.b16 %v58, %v57
    %v66 = vpack.c.b16 %v60, %v59
    %v67 = vpack.c.b16 %v62, %v61
    %v68 = vpack.c.b16 %v64, %v63
    %v73 = vunpack.c.l.b16 %v45
    %v74 = vunpack.c.l.b16 %v46
    %v75 = vunpack.c.l.b16 %v47
    %v76 = vunpack.c.l.b16 %v48
    %v77 = vpack.c.b16 %v74, %v73
    %v78 = vpack.c.b16 %v76, %v75
    %vm81 = vcmask 261120
    %v83 = vsel %vm81, %v65, 0
    %v86 = vsel %vm81, %v66, 0
    %v89 = vsel %vm81, %v67, 0
    %v92 = vsel %vm81, %v68, 0
    %94 = vmatpush.bf16.msra.mxu0 0
    %95 = vmatpush.bf16.msra.mxu0 0
    %96 = vmatpush.bf16.msra.mxu0 0
    %97 = vmatpush.bf16.msra.mxu0 0
    %98 = vmatpush.bf16.msra.mxu0 0
    %99 = vmatpush.bf16.msra.mxu0 0
    %100 = vmatpush.bf16.msra.mxu0 %v78
    %101 = vmatpush.bf16.msra.mxu0 %v77
    %102 = vmatmul.bf16.gmra.mxu0 %v83
    %v103 = vpop.f32.mrf.mxu0
    %v104 = vadd.f32 0.0, %v103
    %v105 = vpop.f32.mrf.mxu0
    %v106 = vadd.f32 0.0, %v105
    %107 = vmatmul.bf16.gmra.mxu0 %v86
    %v108 = vpop.f32.mrf.mxu0
    %v109 = vadd.f32 0.0, %v108
    %v110 = vpop.f32.mrf.mxu0
    %v111 = vadd.f32 0.0, %v110
    %112 = vmatmul.bf16.gmra.mxu0 %v89
    %v113 = vpop.f32.mrf.mxu0
    %v114 = vadd.f32 0.0, %v113
    %v115 = vpop.f32.mrf.mxu0
    %v116 = vadd.f32 0.0, %v115
    %117 = vmatmul.bf16.gmra.mxu0 %v92
    %v118 = vpop.f32.mrf.mxu0
    %v119 = vadd.f32 0.0, %v118
    %v120 = vpop.f32.mrf.mxu0
    %v121 = vadd.f32 0.0, %v120
    %122 = vdwg.mxu0
    %v123 = vadd.f32 %v29, %v104
    %v124 = vadd.f32 %v30, %v106
    %v125 = vadd.f32 %v31, %v109
    %v126 = vadd.f32 %v32, %v111
    %v127 = vadd.f32 %v33, %v114
    %v128 = vadd.f32 %v34, %v116
    %v129 = vadd.f32 %v35, %v119
    %v130 = vadd.f32 %v36, %v121
    %vm131 = vcmask 523264
    %132 = vst.msk [vmem:[#allocation2] sm:$0xff] %vm131, %v123
    %133 = vst.msk [vmem:[#allocation2 + $0x8] sm:$0xff] %vm131, %v124
    %134 = vst.msk [vmem:[#allocation2 + $0x10] sm:$0xff] %vm131, %v125
    %135 = vst.msk [vmem:[#allocation2 + $0x18] sm:$0xff] %vm131, %v126
    %136 = vst.msk [vmem:[#allocation2 + $0x20] sm:$0xff] %vm131, %v127
    %137 = vst.msk [vmem:[#allocation2 + $0x28] sm:$0xff] %vm131, %v128
    %138 = vst.msk [vmem:[#allocation2 + $0x30] sm:$0xff] %vm131, %v129
    %139 = vst.msk [vmem:[#allocation2 + $0x38] sm:$0xff] %vm131, %v130
    // Predicated region
    $region18: #{_lambda_.33} parent=1 // pred_check
      %p140 = pneg %p16
    $region19: #{_lambda_.33} parent=1 // pred_check_branch
      %142 = sbr.rel (%p140) target = $region21
    $region20: #{_lambda_.33} parent=1 // pred_region
      %v143 = vld [vmem:[#allocation2] sm:$0xff]
      %v144 = vld [vmem:[#allocation2 + $0x8] sm:$0xff]
      %v145 = vld [vmem:[#allocation2 + $0x10] sm:$0xff]
      %v146 = vld [vmem:[#allocation2 + $0x18] sm:$0xff]
      %v147 = vld [vmem:[#allocation2 + $0x20] sm:$0xff]
      %v148 = vld [vmem:[#allocation2 + $0x28] sm:$0xff]
      %v149 = vld [vmem:[#allocation2 + $0x30] sm:$0xff]
      %v150 = vld [vmem:[#allocation2 + $0x38] sm:$0xff]
      %v151 = vld [vmem:[%s2] sm:$0x1]
      %v153 = vperm.slane %v151, 0
      %v155 = vadd.f32 %v143, %v153
      %v156 = vadd.f32 %v144, %v153
      %v157 = vadd.f32 %v145, %v153
      %v158 = vadd.f32 %v146, %v153
      %v159 = vadd.f32 %v147, %v153
      %v160 = vadd.f32 %v148, %v153
      %v161 = vadd.f32 %v149, %v153
      %v162 = vadd.f32 %v150, %v153
      %163 = vst.msk [vmem:[#allocation3] sm:$0xff] %vm131, %v155
      %164 = vst.msk [vmem:[#allocation3 + $0x8] sm:$0xff] %vm131, %v156
      %165 = vst.msk [vmem:[#allocation3 + $0x10] sm:$0xff] %vm131, %v157
      %166 = vst.msk [vmem:[#allocation3 + $0x18] sm:$0xff] %vm131, %v158
      %167 = vst.msk [vmem:[#allocation3 + $0x20] sm:$0xff] %vm131, %v159
      %168 = vst.msk [vmem:[#allocation3 + $0x28] sm:$0xff] %vm131, %v160
      %169 = vst.msk [vmem:[#allocation3 + $0x30] sm:$0xff] %vm131, %v161
      %170 = vst.msk [vmem:[#allocation3 + $0x38] sm:$0xff] %vm131, %v162
    $region21: #{_lambda_.33} parent=1 // pred_fallthru
      _
    // Predicated region
    $region22: #{_lambda_.33} parent=1 // pred_check
      _
    $region23: #{_lambda_.33} parent=1 // pred_check_branch
      %172 = sbr.rel (0) target = $region25
    $region24: #{_lambda_.33} parent=1 // pred_region
      %174 = vsyncadd [#allocation4], 0
      %s175 = sshll.u32 [#allocation3], 4
      %s176 = int_to_ptr.vmem [resolvable:$true] %s175
      %s177 = sshll.u32 %s3, 4
      %s178 = int_to_ptr.hbm [resolvable:$true] %s177
      %183 = dma.vmem_to_hbm [thread:$0]  %s176, 1024, %s178, [#allocation4], 128, 128, 8
    $region25: #{_lambda_.33} parent=1 // pred_fallthru
      _
    // Predicated region
    $region26: #{_lambda_.33} parent=1 // pred_check
      _
    $region27: #{_lambda_.33} parent=1 // pred_check_branch
      %185 = sbr.rel (0) target = $region29
    $region28: #{_lambda_.33} parent=1 // pred_region
      %187 = dma.done [#allocation4], 1024
    $region29: #{_lambda_.33} parent=1 // pred_fallthru
      _
    %188 = vsyncpa [#allocation4], 1

</llo_original>
